<compile_context>
chip_gen: v6e
topology: v6e:2x2x1
jax: 0.10.0
libtpu: 0.0.40
codegen_flags: <defaults>
</compile_context>

<pallas_src>
import functools

import jax
import jax.numpy as jnp
from jax.experimental import pallas as pl
from jax.experimental.pallas import tpu as pltpu

EPS = 1e-5  # nn.InstanceNorm2d default eps


def _round_up(x, m):
    return ((x + m - 1) // m) * m


def _conv3x3_in_relu(src_ref, w_ref, vmask, *, pad, wo1, nb, seg, hw):
    """3x3 conv (pad=1) + InstanceNorm2d(affine=False) + ReLU over NB packed samples.

    src_ref: (2*PAD + NB*SEG, C) bf16 padded strip; sample s occupies rows
             [PAD + s*SEG, PAD + s*SEG + Mseg) in separator layout
             (row i = h*(Wo+1) + w, column w == Wo is always zero); all other rows 0.
    w_ref:   (9, C, Cout) bf16, tap-major (ky*3 + kx).
    vmask:   (1, SEG, 1) f32, 1.0 at real pixels, 0.0 at separator / halo rows.
    Returns  (NB, SEG, Cout) f32 with invalid rows zeroed.
    """
    cout = w_ref.shape[2]
    mtot = nb * seg

    # 9 accumulated MXU matmuls over the whole batched strip (one per tap).
    acc = jnp.zeros((mtot, cout), jnp.float32)
    for ky in range(3):
        for kx in range(3):
            off = (ky - 1) * wo1 + (kx - 1)
            sl = src_ref[pl.ds(pad + off, mtot), :]          # bf16 (MTOT, C)
            acc = acc + jnp.dot(sl, w_ref[ky * 3 + kx],
                                preferred_element_type=jnp.float32)

    # InstanceNorm2d: per-(sample, channel) biased statistics over the HW real pixels.
    accr = acc.reshape(nb, seg, cout)
    inv_hw = 1.0 / float(hw)
    mean = jnp.sum(accr * vmask, axis=1, keepdims=True) * inv_hw        # (NB,1,Cout)
    diff = accr - mean
    var = jnp.sum(jnp.square(diff) * vmask, axis=1, keepdims=True) * inv_hw
    y = jnp.maximum(diff * jax.lax.rsqrt(var + EPS), 0.0)
    return y * vmask                                                    # zero invalid rows


def _down_kernel(xp_ref, w1_ref, w2_ref, vm_ref, o_ref, pad1_ref, pad2_ref, *,
                 nb, seg, pad, wo, hw):
    wo1 = wo + 1
    mtot = nb * seg
    cin = pad1_ref.shape[1]
    cout = pad2_ref.shape[1]

    # Zero ONLY the leading / trailing halo rows (2*PAD rows each); the data window
    # [pad, pad+mtot) is fully rewritten below.  Unconditional -> correct even when
    # the parallel batch axis is sharded across multiple TensorCores.
    pad1_ref[pl.ds(0, pad), :] = jnp.zeros((pad, cin), pad1_ref.dtype)
    pad1_ref[pl.ds(pad + mtot, pad), :] = jnp.zeros((pad, cin), pad1_ref.dtype)
    pad2_ref[pl.ds(0, pad), :] = jnp.zeros((pad, cout), pad2_ref.dtype)
    pad2_ref[pl.ds(pad + mtot, pad), :] = jnp.zeros((pad, cout), pad2_ref.dtype)

    vmask = vm_ref[...][None]                               # (1, SEG, 1) f32

    # 2x2 / stride-2 max pool: the wrapper packed the four taps on axis 1; separator
    # and tail rows are zero in every tap, so their max stays zero.
    xp = xp_ref[...]                                        # (NB, 4, SEG, Cin)
    pooled = jnp.maximum(jnp.maximum(xp[:, 0], xp[:, 1]),
                         jnp.maximum(xp[:, 2], xp[:, 3]))   # (NB, SEG, Cin) f32
    pad1_ref[pl.ds(pad, mtot), :] = pooled.reshape(mtot, cin).astype(pad1_ref.dtype)

    h1 = _conv3x3_in_relu(pad1_ref, w1_ref, vmask,
                          pad=pad, wo1=wo1, nb=nb, seg=seg, hw=hw)
    pad2_ref[pl.ds(pad, mtot), :] = h1.reshape(mtot, cout).astype(pad2_ref.dtype)

    h2 = _conv3x3_in_relu(pad2_ref, w2_ref, vmask,
                          pad=pad, wo1=wo1, nb=nb, seg=seg, hw=hw)
    o_ref[...] = h2.astype(o_ref.dtype)


def down_forward(x_nchw, params):
    """Down = MaxPool2d(2) -> (Conv3x3 -> InstanceNorm -> ReLU) * 2.  NCHW in/out.

    params["b1"], params["b2"] are accepted but unused: with InstanceNorm2d
    (affine=False) the conv bias cancels exactly against the mean subtraction.
    """
    N, Cin, H, W = x_nchw.shape
    Ho, Wo = H // 2, W // 2
    HW, Wo1 = Ho * Wo, Wo + 1
    Cout = params["w1"].shape[0]

    Mseg = Ho * Wo1                    # rows per sample incl. the separator column
    PAD = _round_up(Wo + 2, 8)         # >= max |tap offset| = Wo + 2
    SEG = _round_up(Mseg, 8) + PAD     # per-sample stride (data + shared halo)

    # ---- generation-aware VMEM budget / samples-per-step (NB) ----
    try:
        vmem_cap = pltpu.get_tpu_info().vmem_capacity_bytes
    except Exception:
        vmem_cap = 64 * 1024 * 1024    # conservative (v7x-sized) fallback
    vmem_limit = max(32 * 1024 * 1024,
                     min((vmem_cap * 5) // 8, 100 * 1024 * 1024))

    itemsize = jnp.dtype(x_nchw.dtype).itemsize

    def vmem_estimate(nb):
        total = nb * SEG + 2 * PAD
        in_blk = 2 * nb * 4 * SEG * Cin * itemsize      # double-buffered input block
        out_blk = 2 * nb * SEG * Cout * itemsize        # double-buffered output block
        pads = total * (Cin + Cout) * 2                 # bf16 scratch strips
        wts = 9 * (Cin + Cout) * Cout * 2               # resident bf16 weights
        live = 4 * nb * SEG * Cout * 4                  # f32 acc/diff/h working set
        return in_blk + out_blk + pads + wts + live

    NB = min(N, 8)
    if N >= 2:
        NB = min(NB, N // 2)           # >= 2 grid steps: both v7x TCs get work
    NB = max(NB, 1)
    while NB > 1 and (N % NB != 0 or vmem_estimate(NB) > vmem_limit // 2):
        NB -= 1
    TOTAL = NB * SEG + 2 * PAD

    # ---- XLA glue: pack 2x2 pool taps, channels -> lanes, insert separator col ----
    xp = x_nchw.reshape(N, Cin, Ho, 2, Wo, 2)
    xp = jnp.transpose(xp, (0, 3, 5, 2, 4, 1)).reshape(N, 4, Ho, Wo, Cin)
    xp = jnp.pad(xp, ((0, 0), (0, 0), (0, 0), (0, Wo1 - Wo), (0, 0)))
    xp = xp.reshape(N, 4, Mseg, Cin)
    xp = jnp.pad(xp, ((0, 0), (0, 0), (0, SEG - Mseg), (0, 0)))   # zero segment tail

    # Weights: torch OIHW -> (tap, Cin, Cout), bf16 for the MXU.
    w1 = jnp.transpose(params["w1"], (2, 3, 1, 0)).reshape(9, Cin, Cout)
    w2 = jnp.transpose(params["w2"], (2, 3, 1, 0)).reshape(9, Cout, Cout)
    w1 = w1.astype(jnp.bfloat16)
    w2 = w2.astype(jnp.bfloat16)

    # Valid-pixel mask (real rows of the separator layout), used for IN statistics.
    r = jnp.arange(SEG, dtype=jnp.int32)
    vmask = jnp.logical_and(r < Mseg, r % Wo1 != Wo).astype(jnp.float32)[:, None]

    out = pl.pallas_call(
        functools.partial(_down_kernel, nb=NB, seg=SEG, pad=PAD, wo=Wo, hw=HW),
        out_shape=jax.ShapeDtypeStruct((N, SEG, Cout), x_nchw.dtype),
        grid=(N // NB,),
        in_specs=[
            pl.BlockSpec((NB, 4, SEG, Cin), lambda b: (b, 0, 0, 0)),
            pl.BlockSpec((9, Cin, Cout), lambda b: (0, 0, 0)),
            pl.BlockSpec((9, Cout, Cout), lambda b: (0, 0, 0)),
            pl.BlockSpec((SEG, 1), lambda b: (0, 0)),
        ],
        out_specs=pl.BlockSpec((NB, SEG, Cout), lambda b: (b, 0, 0)),
        scratch_shapes=[
            pltpu.VMEM((TOTAL, Cin), jnp.bfloat16),
            pltpu.VMEM((TOTAL, Cout), jnp.bfloat16),
        ],
        compiler_params=pltpu.CompilerParams(
            dimension_semantics=("parallel",),
            vmem_limit_bytes=int(vmem_limit),
        ),
    )(xp, w1, w2, vmask)

    # Drop separator / halo rows and return NCHW.
    out = out[:, :Mseg, :].reshape(N, Ho, Wo1, Cout)[:, :, :Wo, :]
    return jnp.transpose(out, (0, 3, 1, 2))


# ------------------------------ pure-JAX reference ------------------------------ #
def down_reference(x, params):
    p = x.reshape(x.shape[0], x.shape[1], x.shape[2] // 2, 2,
                  x.shape[3] // 2, 2).max(axis=(3, 5))

    def conv_in_relu_ref(y, w, b):
        z = jax.lax.conv_general_dilated(
            y, w, (1, 1), ((1, 1), (1, 1)),
            dimension_numbers=("NCHW", "OIHW", "NCHW"),
            precision=jax.lax.Precision.HIGHEST)
        z = z + b[None, :, None, None]
        m = z.mean(axis=(2, 3), keepdims=True)
        v = ((z - m) ** 2).mean(axis=(2, 3), keepdims=True)
        return jnp.maximum((z - m) / jnp.sqrt(v + EPS), 0.0)

    h = conv_in_relu_ref(p, params["w1"], params["b1"])
    return conv_in_relu_ref(h, params["w2"], params["b2"])


if __name__ == "__main__":
    key = jax.random.PRNGKey(0)
    k1, k2, k3, k4, kx = jax.random.split(key, 5)
    in_ch, out_ch = 4, 8
    N, H, W = 2, 16, 16
    params = {
        "w1": jax.random.normal(k1, (out_ch, in_ch, 3, 3), jnp.float32) * 0.2,
        "b1": jax.random.normal(k2, (out_ch,), jnp.float32) * 0.1,
        "w2": jax.random.normal(k3, (out_ch, out_ch, 3, 3), jnp.float32) * 0.2,
        "b2": jax.random.normal(k4, (out_ch,), jnp.float32) * 0.1,
    }
    x = jax.random.normal(kx, (N, in_ch, H, W), jnp.float32)

    out = jax.block_until_ready(down_forward(x, params))
    ref = jax.block_until_ready(down_reference(x, params))

    assert out.shape == (N, out_ch, H // 2, W // 2), out.shape
    assert bool(jnp.all(jnp.isfinite(out)))
    # bf16 MXU operands (f32 accumulation / normalization) => slightly looser tol.
    assert bool(jnp.allclose(out, ref, atol=5e-2, rtol=5e-2)), \
        float(jnp.max(jnp.abs(out - ref)))
    print("KERNEL_OK")
</pallas_src>

<mosaic_0001>
module attributes {stable_mosaic.version = 11 : i64} {
  func.func @_down_kernel(%arg0: i32, %arg1: memref<1x4x88x4xf32, #tpu.memory_space<vmem>>, %arg2: memref<9x4x8xbf16, #tpu.memory_space<vmem>>, %arg3: memref<9x8x8xbf16, #tpu.memory_space<vmem>>, %arg4: memref<88x1xf32, #tpu.memory_space<vmem>>, %arg5: memref<1x88x8xf32, #tpu.memory_space<vmem>>, %arg6: memref<120x4xbf16, #tpu.memory_space<vmem>>, %arg7: memref<120x8xbf16, #tpu.memory_space<vmem>>) attributes {dimension_semantics = [#tpu.dimension_semantics<parallel>], iteration_bounds = array<i64: 2>, scalar_prefetch = 0 : i64, scratch_operands = 2 : i64, tpu.core_type = #tpu.core_type<tc>, window_params = [{transform_indices = @transform_0, window_bounds = array<i64: 1, 4, 88, 4>}, {pipeline_mode = #tpu.pipeline_mode<synchronous>, transform_indices = @transform_1, window_bounds = array<i64: 9, 4, 8>}, {pipeline_mode = #tpu.pipeline_mode<synchronous>, transform_indices = @transform_2, window_bounds = array<i64: 9, 8, 8>}, {pipeline_mode = #tpu.pipeline_mode<synchronous>, transform_indices = @transform_3, window_bounds = array<i64: 88, 1>}, {transform_indices = @transform_4, window_bounds = array<i64: 1, 88, 8>}]} {
    %cst = arith.constant 0.000000e+00 : bf16
    %0 = vector.broadcast %cst : bf16 to vector<16x4xbf16>
    %c0 = arith.constant 0 : index
    %c0_0 = arith.constant 0 : index
    %1 = vector.load %arg6[%c0, %c0_0] : memref<120x4xbf16, #tpu.memory_space<vmem>>, vector<16x4xbf16>
    tpu.vector_store %arg6[%c0, %c0_0], %0 {strides = array<i32>} : memref<120x4xbf16, #tpu.memory_space<vmem>>, vector<16x4xbf16>,
    %cst_1 = arith.constant 0.000000e+00 : bf16
    %2 = vector.broadcast %cst_1 : bf16 to vector<16x4xbf16>
    %c104 = arith.constant 104 : index
    %c0_2 = arith.constant 0 : index
    %3 = vector.load %arg6[%c104, %c0_2] : memref<120x4xbf16, #tpu.memory_space<vmem>>, vector<16x4xbf16>
    tpu.vector_store %arg6[%c104, %c0_2], %2 {strides = array<i32>} : memref<120x4xbf16, #tpu.memory_space<vmem>>, vector<16x4xbf16>,
    %cst_3 = arith.constant 0.000000e+00 : bf16
    %4 = vector.broadcast %cst_3 : bf16 to vector<16x8xbf16>
    %c0_4 = arith.constant 0 : index
    %c0_5 = arith.constant 0 : index
    %5 = vector.load %arg7[%c0_4, %c0_5] : memref<120x8xbf16, #tpu.memory_space<vmem>>, vector<16x8xbf16>
    tpu.vector_store %arg7[%c0_4, %c0_5], %4 {strides = array<i32>} : memref<120x8xbf16, #tpu.memory_space<vmem>>, vector<16x8xbf16>,
    %cst_6 = arith.constant 0.000000e+00 : bf16
    %6 = vector.broadcast %cst_6 : bf16 to vector<16x8xbf16>
    %c104_7 = arith.constant 104 : index
    %c0_8 = arith.constant 0 : index
    %7 = vector.load %arg7[%c104_7, %c0_8] : memref<120x8xbf16, #tpu.memory_space<vmem>>, vector<16x8xbf16>
    tpu.vector_store %arg7[%c104_7, %c0_8], %6 {strides = array<i32>} : memref<120x8xbf16, #tpu.memory_space<vmem>>, vector<16x8xbf16>,
    %c0_9 = arith.constant 0 : index
    %c0_10 = arith.constant 0 : index
    %8 = vector.load %arg4[%c0_9, %c0_10] : memref<88x1xf32, #tpu.memory_space<vmem>>, vector<88x1xf32>
    %9 = vector.shape_cast %8 : vector<88x1xf32> to vector<1x88x1xf32>
    %c0_11 = arith.constant 0 : index
    %c0_12 = arith.constant 0 : index
    %c0_13 = arith.constant 0 : index
    %c0_14 = arith.constant 0 : index
    %10 = vector.load %arg1[%c0_11, %c0_12, %c0_13, %c0_14] : memref<1x4x88x4xf32, #tpu.memory_space<vmem>>, vector<1x4x88x4xf32>
    %11 = vector.extract_strided_slice %10 {offsets = [0, 0, 0, 0], sizes = [1, 1, 88, 4], strides = [1, 1, 1, 1]} : vector<1x4x88x4xf32> to vector<1x1x88x4xf32>
    %12 = vector.shape_cast %11 : vector<1x1x88x4xf32> to vector<1x88x4xf32>
    %13 = vector.extract_strided_slice %10 {offsets = [0, 1, 0, 0], sizes = [1, 1, 88, 4], strides = [1, 1, 1, 1]} : vector<1x4x88x4xf32> to vector<1x1x88x4xf32>
    %14 = vector.shape_cast %13 : vector<1x1x88x4xf32> to vector<1x88x4xf32>
    %15 = arith.maximumf %12, %14 : vector<1x88x4xf32>
    %16 = vector.extract_strided_slice %10 {offsets = [0, 2, 0, 0], sizes = [1, 1, 88, 4], strides = [1, 1, 1, 1]} : vector<1x4x88x4xf32> to vector<1x1x88x4xf32>
    %17 = vector.shape_cast %16 : vector<1x1x88x4xf32> to vector<1x88x4xf32>
    %18 = vector.extract_strided_slice %10 {offsets = [0, 3, 0, 0], sizes = [1, 1, 88, 4], strides = [1, 1, 1, 1]} : vector<1x4x88x4xf32> to vector<1x1x88x4xf32>
    %19 = vector.shape_cast %18 : vector<1x1x88x4xf32> to vector<1x88x4xf32>
    %20 = arith.maximumf %17, %19 : vector<1x88x4xf32>
    %21 = arith.maximumf %15, %20 : vector<1x88x4xf32>
    %22 = vector.shape_cast %21 : vector<1x88x4xf32> to vector<88x4xf32>
    %23 = arith.truncf %22 : vector<88x4xf32> to vector<88x4xbf16>
    %c16 = arith.constant 16 : index
    %c0_15 = arith.constant 0 : index
    %24 = vector.load %arg6[%c16, %c0_15] : memref<120x4xbf16, #tpu.memory_space<vmem>>, vector<88x4xbf16>
    tpu.vector_store %arg6[%c16, %c0_15], %23 {strides = array<i32>} : memref<120x4xbf16, #tpu.memory_space<vmem>>, vector<88x4xbf16>,
    %cst_16 = arith.constant 0.000000e+00 : f32
    %25 = vector.broadcast %cst_16 : f32 to vector<88x8xf32>
    %c6 = arith.constant 6 : index
    %c0_17 = arith.constant 0 : index
    %26 = vector.load %arg6[%c6, %c0_17] : memref<120x4xbf16, #tpu.memory_space<vmem>>, vector<88x4xbf16>
    %c0_18 = arith.constant 0 : index
    %c0_19 = arith.constant 0 : index
    %c0_20 = arith.constant 0 : index
    %27 = vector.load %arg2[%c0_18, %c0_19, %c0_20] : memref<9x4x8xbf16, #tpu.memory_space<vmem>>, vector<1x4x8xbf16>
    %28 = vector.shape_cast %27 : vector<1x4x8xbf16> to vector<4x8xbf16>
    %cst_21 = arith.constant dense<0.000000e+00> : vector<88x8xf32>
    %29 = tpu.matmul %26, %28, %cst_21 {dimension_numbers = #tpu.dot_dimension_numbers<[1], [0], [0], [1], [0, 0, 1, 1], [], []>} : vector<88x4xbf16>, vector<4x8xbf16>, vector<88x8xf32> -> vector<88x8xf32>
    %30 = arith.addf %25, %29 : vector<88x8xf32>
    %c7 = arith.constant 7 : index
    %c0_22 = arith.constant 0 : index
    %31 = vector.load %arg6[%c7, %c0_22] : memref<120x4xbf16, #tpu.memory_space<vmem>>, vector<88x4xbf16>
    %c1 = arith.constant 1 : index
    %c0_23 = arith.constant 0 : index
    %c0_24 = arith.constant 0 : index
    %32 = vector.load %arg2[%c1, %c0_23, %c0_24] : memref<9x4x8xbf16, #tpu.memory_space<vmem>>, vector<1x4x8xbf16>
    %33 = vector.shape_cast %32 : vector<1x4x8xbf16> to vector<4x8xbf16>
    %cst_25 = arith.constant dense<0.000000e+00> : vector<88x8xf32>
    %34 = tpu.matmul %31, %33, %cst_25 {dimension_numbers = #tpu.dot_dimension_numbers<[1], [0], [0], [1], [0, 0, 1, 1], [], []>} : vector<88x4xbf16>, vector<4x8xbf16>, vector<88x8xf32> -> vector<88x8xf32>
    %35 = arith.addf %30, %34 : vector<88x8xf32>
    %c8 = arith.constant 8 : index
    %c0_26 = arith.constant 0 : index
    %36 = vector.load %arg6[%c8, %c0_26] : memref<120x4xbf16, #tpu.memory_space<vmem>>, vector<88x4xbf16>
    %c2 = arith.constant 2 : index
    %c0_27 = arith.constant 0 : index
    %c0_28 = arith.constant 0 : index
    %37 = vector.load %arg2[%c2, %c0_27, %c0_28] : memref<9x4x8xbf16, #tpu.memory_space<vmem>>, vector<1x4x8xbf16>
    %38 = vector.shape_cast %37 : vector<1x4x8xbf16> to vector<4x8xbf16>
    %cst_29 = arith.constant dense<0.000000e+00> : vector<88x8xf32>
    %39 = tpu.matmul %36, %38, %cst_29 {dimension_numbers = #tpu.dot_dimension_numbers<[1], [0], [0], [1], [0, 0, 1, 1], [], []>} : vector<88x4xbf16>, vector<4x8xbf16>, vector<88x8xf32> -> vector<88x8xf32>
    %40 = arith.addf %35, %39 : vector<88x8xf32>
    %c15 = arith.constant 15 : index
    %c0_30 = arith.constant 0 : index
    %41 = vector.load %arg6[%c15, %c0_30] : memref<120x4xbf16, #tpu.memory_space<vmem>>, vector<88x4xbf16>
    %c3 = arith.constant 3 : index
    %c0_31 = arith.constant 0 : index
    %c0_32 = arith.constant 0 : index
    %42 = vector.load %arg2[%c3, %c0_31, %c0_32] : memref<9x4x8xbf16, #tpu.memory_space<vmem>>, vector<1x4x8xbf16>
    %43 = vector.shape_cast %42 : vector<1x4x8xbf16> to vector<4x8xbf16>
    %cst_33 = arith.constant dense<0.000000e+00> : vector<88x8xf32>
    %44 = tpu.matmul %41, %43, %cst_33 {dimension_numbers = #tpu.dot_dimension_numbers<[1], [0], [0], [1], [0, 0, 1, 1], [], []>} : vector<88x4xbf16>, vector<4x8xbf16>, vector<88x8xf32> -> vector<88x8xf32>
    %45 = arith.addf %40, %44 : vector<88x8xf32>
    %c16_34 = arith.constant 16 : index
    %c0_35 = arith.constant 0 : index
    %46 = vector.load %arg6[%c16_34, %c0_35] : memref<120x4xbf16, #tpu.memory_space<vmem>>, vector<88x4xbf16>
    %c4 = arith.constant 4 : index
    %c0_36 = arith.constant 0 : index
    %c0_37 = arith.constant 0 : index
    %47 = vector.load %arg2[%c4, %c0_36, %c0_37] : memref<9x4x8xbf16, #tpu.memory_space<vmem>>, vector<1x4x8xbf16>
    %48 = vector.shape_cast %47 : vector<1x4x8xbf16> to vector<4x8xbf16>
    %cst_38 = arith.constant dense<0.000000e+00> : vector<88x8xf32>
    %49 = tpu.matmul %46, %48, %cst_38 {dimension_numbers = #tpu.dot_dimension_numbers<[1], [0], [0], [1], [0, 0, 1, 1], [], []>} : vector<88x4xbf16>, vector<4x8xbf16>, vector<88x8xf32> -> vector<88x8xf32>
    %50 = arith.addf %45, %49 : vector<88x8xf32>
    %c17 = arith.constant 17 : index
    %c0_39 = arith.constant 0 : index
    %51 = vector.load %arg6[%c17, %c0_39] : memref<120x4xbf16, #tpu.memory_space<vmem>>, vector<88x4xbf16>
    %c5 = arith.constant 5 : index
    %c0_40 = arith.constant 0 : index
    %c0_41 = arith.constant 0 : index
    %52 = vector.load %arg2[%c5, %c0_40, %c0_41] : memref<9x4x8xbf16, #tpu.memory_space<vmem>>, vector<1x4x8xbf16>
    %53 = vector.shape_cast %52 : vector<1x4x8xbf16> to vector<4x8xbf16>
    %cst_42 = arith.constant dense<0.000000e+00> : vector<88x8xf32>
    %54 = tpu.matmul %51, %53, %cst_42 {dimension_numbers = #tpu.dot_dimension_numbers<[1], [0], [0], [1], [0, 0, 1, 1], [], []>} : vector<88x4xbf16>, vector<4x8xbf16>, vector<88x8xf32> -> vector<88x8xf32>
    %55 = arith.addf %50, %54 : vector<88x8xf32>
    %c24 = arith.constant 24 : index
    %c0_43 = arith.constant 0 : index
    %56 = vector.load %arg6[%c24, %c0_43] : memref<120x4xbf16, #tpu.memory_space<vmem>>, vector<88x4xbf16>
    %c6_44 = arith.constant 6 : index
    %c0_45 = arith.constant 0 : index
    %c0_46 = arith.constant 0 : index
    %57 = vector.load %arg2[%c6_44, %c0_45, %c0_46] : memref<9x4x8xbf16, #tpu.memory_space<vmem>>, vector<1x4x8xbf16>
    %58 = vector.shape_cast %57 : vector<1x4x8xbf16> to vector<4x8xbf16>
    %cst_47 = arith.constant dense<0.000000e+00> : vector<88x8xf32>
    %59 = tpu.matmul %56, %58, %cst_47 {dimension_numbers = #tpu.dot_dimension_numbers<[1], [0], [0], [1], [0, 0, 1, 1], [], []>} : vector<88x4xbf16>, vector<4x8xbf16>, vector<88x8xf32> -> vector<88x8xf32>
    %60 = arith.addf %55, %59 : vector<88x8xf32>
    %c25 = arith.constant 25 : index
    %c0_48 = arith.constant 0 : index
    %61 = vector.load %arg6[%c25, %c0_48] : memref<120x4xbf16, #tpu.memory_space<vmem>>, vector<88x4xbf16>
    %c7_49 = arith.constant 7 : index
    %c0_50 = arith.constant 0 : index
    %c0_51 = arith.constant 0 : index
    %62 = vector.load %arg2[%c7_49, %c0_50, %c0_51] : memref<9x4x8xbf16, #tpu.memory_space<vmem>>, vector<1x4x8xbf16>
    %63 = vector.shape_cast %62 : vector<1x4x8xbf16> to vector<4x8xbf16>
    %cst_52 = arith.constant dense<0.000000e+00> : vector<88x8xf32>
    %64 = tpu.matmul %61, %63, %cst_52 {dimension_numbers = #tpu.dot_dimension_numbers<[1], [0], [0], [1], [0, 0, 1, 1], [], []>} : vector<88x4xbf16>, vector<4x8xbf16>, vector<88x8xf32> -> vector<88x8xf32>
    %65 = arith.addf %60, %64 : vector<88x8xf32>
    %c26 = arith.constant 26 : index
    %c0_53 = arith.constant 0 : index
    %66 = vector.load %arg6[%c26, %c0_53] : memref<120x4xbf16, #tpu.memory_space<vmem>>, vector<88x4xbf16>
    %c8_54 = arith.constant 8 : index
    %c0_55 = arith.constant 0 : index
    %c0_56 = arith.constant 0 : index
    %67 = vector.load %arg2[%c8_54, %c0_55, %c0_56] : memref<9x4x8xbf16, #tpu.memory_space<vmem>>, vector<1x4x8xbf16>
    %68 = vector.shape_cast %67 : vector<1x4x8xbf16> to vector<4x8xbf16>
    %cst_57 = arith.constant dense<0.000000e+00> : vector<88x8xf32>
    %69 = tpu.matmul %66, %68, %cst_57 {dimension_numbers = #tpu.dot_dimension_numbers<[1], [0], [0], [1], [0, 0, 1, 1], [], []>} : vector<88x4xbf16>, vector<4x8xbf16>, vector<88x8xf32> -> vector<88x8xf32>
    %70 = arith.addf %65, %69 : vector<88x8xf32>
    %71 = vector.shape_cast %70 : vector<88x8xf32> to vector<1x88x8xf32>
    %72 = vector.broadcast %9 : vector<1x88x1xf32> to vector<1x88x8xf32>
    %73 = arith.mulf %71, %72 : vector<1x88x8xf32>
    %cst_58 = arith.constant dense<0.000000e+00> : vector<1x8xf32>
    %74 = vector.multi_reduction <add>, %73, %cst_58 [1] : vector<1x88x8xf32> to vector<1x8xf32>
    %75 = vector.shape_cast %74 : vector<1x8xf32> to vector<1x1x8xf32>
    %cst_59 = arith.constant 1.562500e-02 : f32
    %76 = vector.broadcast %cst_59 : f32 to vector<1x1x8xf32>
    %77 = arith.mulf %75, %76 : vector<1x1x8xf32>
    %78 = vector.broadcast %77 : vector<1x1x8xf32> to vector<1x88x8xf32>
    %79 = arith.subf %71, %78 : vector<1x88x8xf32>
    %80 = arith.mulf %79, %79 : vector<1x88x8xf32>
    %81 = vector.broadcast %9 : vector<1x88x1xf32> to vector<1x88x8xf32>
    %82 = arith.mulf %80, %81 : vector<1x88x8xf32>
    %cst_60 = arith.constant dense<0.000000e+00> : vector<1x8xf32>
    %83 = vector.multi_reduction <add>, %82, %cst_60 [1] : vector<1x88x8xf32> to vector<1x8xf32>
    %84 = vector.shape_cast %83 : vector<1x8xf32> to vector<1x1x8xf32>
    %cst_61 = arith.constant 1.562500e-02 : f32
    %85 = vector.broadcast %cst_61 : f32 to vector<1x1x8xf32>
    %86 = arith.mulf %84, %85 : vector<1x1x8xf32>
    %cst_62 = arith.constant 9.99999974E-6 : f32
    %87 = vector.broadcast %cst_62 : f32 to vector<1x1x8xf32>
    %88 = arith.addf %86, %87 : vector<1x1x8xf32>
    %89 = math.rsqrt %88 : vector<1x1x8xf32>
    %90 = vector.broadcast %89 : vector<1x1x8xf32> to vector<1x88x8xf32>
    %91 = arith.mulf %79, %90 : vector<1x88x8xf32>
    %cst_63 = arith.constant 0.000000e+00 : f32
    %92 = vector.broadcast %cst_63 : f32 to vector<1x88x8xf32>
    %93 = arith.maximumf %91, %92 : vector<1x88x8xf32>
    %94 = vector.broadcast %9 : vector<1x88x1xf32> to vector<1x88x8xf32>
    %95 = arith.mulf %93, %94 : vector<1x88x8xf32>
    %96 = vector.shape_cast %95 : vector<1x88x8xf32> to vector<88x8xf32>
    %97 = arith.truncf %96 : vector<88x8xf32> to vector<88x8xbf16>
    %c16_64 = arith.constant 16 : index
    %c0_65 = arith.constant 0 : index
    %98 = vector.load %arg7[%c16_64, %c0_65] : memref<120x8xbf16, #tpu.memory_space<vmem>>, vector<88x8xbf16>
    tpu.vector_store %arg7[%c16_64, %c0_65], %97 {strides = array<i32>} : memref<120x8xbf16, #tpu.memory_space<vmem>>, vector<88x8xbf16>,
    %cst_66 = arith.constant 0.000000e+00 : f32
    %99 = vector.broadcast %cst_66 : f32 to vector<88x8xf32>
    %c6_67 = arith.constant 6 : index
    %c0_68 = arith.constant 0 : index
    %100 = vector.load %arg7[%c6_67, %c0_68] : memref<120x8xbf16, #tpu.memory_space<vmem>>, vector<88x8xbf16>
    %c0_69 = arith.constant 0 : index
    %c0_70 = arith.constant 0 : index
    %c0_71 = arith.constant 0 : index
    %101 = vector.load %arg3[%c0_69, %c0_70, %c0_71] : memref<9x8x8xbf16, #tpu.memory_space<vmem>>, vector<1x8x8xbf16>
    %102 = vector.shape_cast %101 : vector<1x8x8xbf16> to vector<8x8xbf16>
    %cst_72 = arith.constant dense<0.000000e+00> : vector<88x8xf32>
    %103 = tpu.matmul %100, %102, %cst_72 {dimension_numbers = #tpu.dot_dimension_numbers<[1], [0], [0], [1], [0, 0, 1, 1], [], []>} : vector<88x8xbf16>, vector<8x8xbf16>, vector<88x8xf32> -> vector<88x8xf32>
    %104 = arith.addf %99, %103 : vector<88x8xf32>
    %c7_73 = arith.constant 7 : index
    %c0_74 = arith.constant 0 : index
    %105 = vector.load %arg7[%c7_73, %c0_74] : memref<120x8xbf16, #tpu.memory_space<vmem>>, vector<88x8xbf16>
    %c1_75 = arith.constant 1 : index
    %c0_76 = arith.constant 0 : index
    %c0_77 = arith.constant 0 : index
    %106 = vector.load %arg3[%c1_75, %c0_76, %c0_77] : memref<9x8x8xbf16, #tpu.memory_space<vmem>>, vector<1x8x8xbf16>
    %107 = vector.shape_cast %106 : vector<1x8x8xbf16> to vector<8x8xbf16>
    %cst_78 = arith.constant dense<0.000000e+00> : vector<88x8xf32>
    %108 = tpu.matmul %105, %107, %cst_78 {dimension_numbers = #tpu.dot_dimension_numbers<[1], [0], [0], [1], [0, 0, 1, 1], [], []>} : vector<88x8xbf16>, vector<8x8xbf16>, vector<88x8xf32> -> vector<88x8xf32>
    %109 = arith.addf %104, %108 : vector<88x8xf32>
    %c8_79 = arith.constant 8 : index
    %c0_80 = arith.constant 0 : index
    %110 = vector.load %arg7[%c8_79, %c0_80] : memref<120x8xbf16, #tpu.memory_space<vmem>>, vector<88x8xbf16>
    %c2_81 = arith.constant 2 : index
    %c0_82 = arith.constant 0 : index
    %c0_83 = arith.constant 0 : index
    %111 = vector.load %arg3[%c2_81, %c0_82, %c0_83] : memref<9x8x8xbf16, #tpu.memory_space<vmem>>, vector<1x8x8xbf16>
    %112 = vector.shape_cast %111 : vector<1x8x8xbf16> to vector<8x8xbf16>
    %cst_84 = arith.constant dense<0.000000e+00> : vector<88x8xf32>
    %113 = tpu.matmul %110, %112, %cst_84 {dimension_numbers = #tpu.dot_dimension_numbers<[1], [0], [0], [1], [0, 0, 1, 1], [], []>} : vector<88x8xbf16>, vector<8x8xbf16>, vector<88x8xf32> -> vector<88x8xf32>
    %114 = arith.addf %109, %113 : vector<88x8xf32>
    %c15_85 = arith.constant 15 : index
    %c0_86 = arith.constant 0 : index
    %115 = vector.load %arg7[%c15_85, %c0_86] : memref<120x8xbf16, #tpu.memory_space<vmem>>, vector<88x8xbf16>
    %c3_87 = arith.constant 3 : index
    %c0_88 = arith.constant 0 : index
    %c0_89 = arith.constant 0 : index
    %116 = vector.load %arg3[%c3_87, %c0_88, %c0_89] : memref<9x8x8xbf16, #tpu.memory_space<vmem>>, vector<1x8x8xbf16>
    %117 = vector.shape_cast %116 : vector<1x8x8xbf16> to vector<8x8xbf16>
    %cst_90 = arith.constant dense<0.000000e+00> : vector<88x8xf32>
    %118 = tpu.matmul %115, %117, %cst_90 {dimension_numbers = #tpu.dot_dimension_numbers<[1], [0], [0], [1], [0, 0, 1, 1], [], []>} : vector<88x8xbf16>, vector<8x8xbf16>, vector<88x8xf32> -> vector<88x8xf32>
    %119 = arith.addf %114, %118 : vector<88x8xf32>
    %c16_91 = arith.constant 16 : index
    %c0_92 = arith.constant 0 : index
    %120 = vector.load %arg7[%c16_91, %c0_92] : memref<120x8xbf16, #tpu.memory_space<vmem>>, vector<88x8xbf16>
    %c4_93 = arith.constant 4 : index
    %c0_94 = arith.constant 0 : index
    %c0_95 = arith.constant 0 : index
    %121 = vector.load %arg3[%c4_93, %c0_94, %c0_95] : memref<9x8x8xbf16, #tpu.memory_space<vmem>>, vector<1x8x8xbf16>
    %122 = vector.shape_cast %121 : vector<1x8x8xbf16> to vector<8x8xbf16>
    %cst_96 = arith.constant dense<0.000000e+00> : vector<88x8xf32>
    %123 = tpu.matmul %120, %122, %cst_96 {dimension_numbers = #tpu.dot_dimension_numbers<[1], [0], [0], [1], [0, 0, 1, 1], [], []>} : vector<88x8xbf16>, vector<8x8xbf16>, vector<88x8xf32> -> vector<88x8xf32>
    %124 = arith.addf %119, %123 : vector<88x8xf32>
    %c17_97 = arith.constant 17 : index
    %c0_98 = arith.constant 0 : index
    %125 = vector.load %arg7[%c17_97, %c0_98] : memref<120x8xbf16, #tpu.memory_space<vmem>>, vector<88x8xbf16>
    %c5_99 = arith.constant 5 : index
    %c0_100 = arith.constant 0 : index
    %c0_101 = arith.constant 0 : index
    %126 = vector.load %arg3[%c5_99, %c0_100, %c0_101] : memref<9x8x8xbf16, #tpu.memory_space<vmem>>, vector<1x8x8xbf16>
    %127 = vector.shape_cast %126 : vector<1x8x8xbf16> to vector<8x8xbf16>
    %cst_102 = arith.constant dense<0.000000e+00> : vector<88x8xf32>
    %128 = tpu.matmul %125, %127, %cst_102 {dimension_numbers = #tpu.dot_dimension_numbers<[1], [0], [0], [1], [0, 0, 1, 1], [], []>} : vector<88x8xbf16>, vector<8x8xbf16>, vector<88x8xf32> -> vector<88x8xf32>
    %129 = arith.addf %124, %128 : vector<88x8xf32>
    %c24_103 = arith.constant 24 : index
    %c0_104 = arith.constant 0 : index
    %130 = vector.load %arg7[%c24_103, %c0_104] : memref<120x8xbf16, #tpu.memory_space<vmem>>, vector<88x8xbf16>
    %c6_105 = arith.constant 6 : index
    %c0_106 = arith.constant 0 : index
    %c0_107 = arith.constant 0 : index
    %131 = vector.load %arg3[%c6_105, %c0_106, %c0_107] : memref<9x8x8xbf16, #tpu.memory_space<vmem>>, vector<1x8x8xbf16>
    %132 = vector.shape_cast %131 : vector<1x8x8xbf16> to vector<8x8xbf16>
    %cst_108 = arith.constant dense<0.000000e+00> : vector<88x8xf32>
    %133 = tpu.matmul %130, %132, %cst_108 {dimension_numbers = #tpu.dot_dimension_numbers<[1], [0], [0], [1], [0, 0, 1, 1], [], []>} : vector<88x8xbf16>, vector<8x8xbf16>, vector<88x8xf32> -> vector<88x8xf32>
    %134 = arith.addf %129, %133 : vector<88x8xf32>
    %c25_109 = arith.constant 25 : index
    %c0_110 = arith.constant 0 : index
    %135 = vector.load %arg7[%c25_109, %c0_110] : memref<120x8xbf16, #tpu.memory_space<vmem>>, vector<88x8xbf16>
    %c7_111 = arith.constant 7 : index
    %c0_112 = arith.constant 0 : index
    %c0_113 = arith.constant 0 : index
    %136 = vector.load %arg3[%c7_111, %c0_112, %c0_113] : memref<9x8x8xbf16, #tpu.memory_space<vmem>>, vector<1x8x8xbf16>
    %137 = vector.shape_cast %136 : vector<1x8x8xbf16> to vector<8x8xbf16>
    %cst_114 = arith.constant dense<0.000000e+00> : vector<88x8xf32>
    %138 = tpu.matmul %135, %137, %cst_114 {dimension_numbers = #tpu.dot_dimension_numbers<[1], [0], [0], [1], [0, 0, 1, 1], [], []>} : vector<88x8xbf16>, vector<8x8xbf16>, vector<88x8xf32> -> vector<88x8xf32>
    %139 = arith.addf %134, %138 : vector<88x8xf32>
    %c26_115 = arith.constant 26 : index
    %c0_116 = arith.constant 0 : index
    %140 = vector.load %arg7[%c26_115, %c0_116] : memref<120x8xbf16, #tpu.memory_space<vmem>>, vector<88x8xbf16>
    %c8_117 = arith.constant 8 : index
    %c0_118 = arith.constant 0 : index
    %c0_119 = arith.constant 0 : index
    %141 = vector.load %arg3[%c8_117, %c0_118, %c0_119] : memref<9x8x8xbf16, #tpu.memory_space<vmem>>, vector<1x8x8xbf16>
    %142 = vector.shape_cast %141 : vector<1x8x8xbf16> to vector<8x8xbf16>
    %cst_120 = arith.constant dense<0.000000e+00> : vector<88x8xf32>
    %143 = tpu.matmul %140, %142, %cst_120 {dimension_numbers = #tpu.dot_dimension_numbers<[1], [0], [0], [1], [0, 0, 1, 1], [], []>} : vector<88x8xbf16>, vector<8x8xbf16>, vector<88x8xf32> -> vector<88x8xf32>
    %144 = arith.addf %139, %143 : vector<88x8xf32>
    %145 = vector.shape_cast %144 : vector<88x8xf32> to vector<1x88x8xf32>
    %146 = vector.broadcast %9 : vector<1x88x1xf32> to vector<1x88x8xf32>
    %147 = arith.mulf %145, %146 : vector<1x88x8xf32>
    %cst_121 = arith.constant dense<0.000000e+00> : vector<1x8xf32>
    %148 = vector.multi_reduction <add>, %147, %cst_121 [1] : vector<1x88x8xf32> to vector<1x8xf32>
    %149 = vector.shape_cast %148 : vector<1x8xf32> to vector<1x1x8xf32>
    %cst_122 = arith.constant 1.562500e-02 : f32
    %150 = vector.broadcast %cst_122 : f32 to vector<1x1x8xf32>
    %151 = arith.mulf %149, %150 : vector<1x1x8xf32>
    %152 = vector.broadcast %151 : vector<1x1x8xf32> to vector<1x88x8xf32>
    %153 = arith.subf %145, %152 : vector<1x88x8xf32>
    %154 = arith.mulf %153, %153 : vector<1x88x8xf32>
    %155 = vector.broadcast %9 : vector<1x88x1xf32> to vector<1x88x8xf32>
    %156 = arith.mulf %154, %155 : vector<1x88x8xf32>
    %cst_123 = arith.constant dense<0.000000e+00> : vector<1x8xf32>
    %157 = vector.multi_reduction <add>, %156, %cst_123 [1] : vector<1x88x8xf32> to vector<1x8xf32>
    %158 = vector.shape_cast %157 : vector<1x8xf32> to vector<1x1x8xf32>
    %cst_124 = arith.constant 1.562500e-02 : f32
    %159 = vector.broadcast %cst_124 : f32 to vector<1x1x8xf32>
    %160 = arith.mulf %158, %159 : vector<1x1x8xf32>
    %cst_125 = arith.constant 9.99999974E-6 : f32
    %161 = vector.broadcast %cst_125 : f32 to vector<1x1x8xf32>
    %162 = arith.addf %160, %161 : vector<1x1x8xf32>
    %163 = math.rsqrt %162 : vector<1x1x8xf32>
    %164 = vector.broadcast %163 : vector<1x1x8xf32> to vector<1x88x8xf32>
    %165 = arith.mulf %153, %164 : vector<1x88x8xf32>
    %cst_126 = arith.constant 0.000000e+00 : f32
    %166 = vector.broadcast %cst_126 : f32 to vector<1x88x8xf32>
    %167 = arith.maximumf %165, %166 : vector<1x88x8xf32>
    %168 = vector.broadcast %9 : vector<1x88x1xf32> to vector<1x88x8xf32>
    %169 = arith.mulf %167, %168 : vector<1x88x8xf32>
    %c0_127 = arith.constant 0 : index
    %c0_128 = arith.constant 0 : index
    %c0_129 = arith.constant 0 : index
    %170 = vector.load %arg5[%c0_127, %c0_128, %c0_129] : memref<1x88x8xf32, #tpu.memory_space<vmem>>, vector<1x88x8xf32>
    tpu.vector_store %arg5[%c0_127, %c0_128, %c0_129], %169 {strides = array<i32>} : memref<1x88x8xf32, #tpu.memory_space<vmem>>, vector<1x88x8xf32>,
    return
  }
  func.func @transform_0(%arg0: i32) -> (i32, i32, i32, i32) {
    %c0_i32 = arith.constant 0 : i32
    %c0_i32_0 = arith.constant 0 : i32
    %c0_i32_1 = arith.constant 0 : i32
    %c0_i32_2 = arith.constant 0 : i32
    return %arg0, %c0_i32, %c0_i32_0, %c0_i32_1 : i32, i32, i32, i32
  }
  func.func @transform_1(%arg0: i32) -> (i32, i32, i32) {
    %c0_i32 = arith.constant 0 : i32
    %c0_i32_0 = arith.constant 0 : i32
    %c0_i32_1 = arith.constant 0 : i32
    %c0_i32_2 = arith.constant 0 : i32
    return %c0_i32, %c0_i32_0, %c0_i32_1 : i32, i32, i32
  }
  func.func @transform_2(%arg0: i32) -> (i32, i32, i32) {
    %c0_i32 = arith.constant 0 : i32
    %c0_i32_0 = arith.constant 0 : i32
    %c0_i32_1 = arith.constant 0 : i32
    %c0_i32_2 = arith.constant 0 : i32
    return %c0_i32, %c0_i32_0, %c0_i32_1 : i32, i32, i32
  }
  func.func @transform_3(%arg0: i32) -> (i32, i32) {
    %c0_i32 = arith.constant 0 : i32
    %c0_i32_0 = arith.constant 0 : i32
    %c0_i32_1 = arith.constant 0 : i32
    return %c0_i32, %c0_i32_0 : i32, i32
  }
  func.func @transform_4(%arg0: i32) -> (i32, i32, i32) {
    %c0_i32 = arith.constant 0 : i32
    %c0_i32_0 = arith.constant 0 : i32
    %c0_i32_1 = arith.constant 0 : i32
    return %arg0, %c0_i32, %c0_i32_0 : i32, i32, i32
  }
}

</mosaic_0001>

<llo_original>
// kernel: tpu_custom_call.1
$region0: #{tpu_custom_call.1}
  #allocation0 [shape = 'u32[]', space=smem, size = 0x4, offset = 0x4, fixed_abs, tag = 'smem constant byte address 0x4 - core index']
  #allocation1 [shape = 'u32[144,128]{1,0:T(1,128)}', space=vmem, size = 0x12000, scoped, tag = 'internal scratch']
  #allocation2 [shape = 'bf16[120,4]{1,0:T(8,128)(2,1)}', space=vmem, size = 0x7800, scoped, tag = 'scratch operand']
  #allocation3 [shape = 'bf16[120,8]{1,0:T(8,128)(2,1)}', space=vmem, size = 0x7800, scoped, tag = 'scratch operand']
  %s0 = inlined_call_operand.vmem [shape: f32[2,4,88,4], index: 0, kind: input, shape index: {}]
  %s1 = inlined_call_operand.vmem [shape: bf16[9,4,8], index: 1, kind: input, shape index: {}]
  %s2 = inlined_call_operand.vmem [shape: bf16[9,8,8], index: 2, kind: input, shape index: {}]
  %s3 = inlined_call_operand.vmem [shape: f32[88,1], index: 3, kind: input, shape index: {}]
  %s4 = inlined_call_operand.vmem [shape: f32[2,88,8], index: 4, kind: output, shape index: {}]
  %s5 = sld [smem:[#allocation0]]
  $region49: #{tpu_custom_call.1} parent=0
    _
  %s7 = ssub.s32 1, %s5
  %s8 = scalar_select 0, %s7, %s5
  loop: start=0, step=1, limit=4
  $region2: #{tpu_custom_call.1} parent=0 // loop_pre_header
    _
  $region3: #{tpu_custom_call.1} parent=0 // loop_header
    %s10 = sphi 0, %s14
    %p11 = scmp.ge.s32.totalorder %s10, 4
    %s20 = sphi 0, %s22
    %s23 = sphi 0, %s20
    %s24 = sphi 0, %s23
    %s40 = sphi 0, %s24
    %s44 = sphi 0, %s44
    %s46 = sphi 0, %s44
    %s47 = sphi 0, %s46
    %s61 = sphi 0, %s47
    %s65 = sphi 0, %s65
    %s67 = sphi 0, %s65
    %s68 = sphi 0, %s67
    %s82 = sphi 0, %s68
    %s86 = sphi 0, %s86
    %s88 = sphi 0, %s86
    %s89 = sphi 0, %s88
    %s103 = sphi 0, %s89
    %s109 = sphi 0, %s111
    %s112 = sphi 0, %s109
    %s113 = sphi 0, %s112
    %s129 = sphi 0, %s113
  $region4: #{tpu_custom_call.1} parent=0 // loop_header_branch
    %13 = sbr.rel (%p11) target = $region8
  $region5: #{tpu_custom_call.1} parent=0 // loop_body
    %s15 = ssub.s32 %s10, 1
    %s16 = ssub.s32 %s10, 2
    %s17 = sadd.s32 %s10, 1
    %s18 = ssub.s32 %s10, %s17
    %p19 = scmp.eq.s32.totalorder %s18, 0
    %s21 = sadd.s32 %s20, 1
    %s22 = scalar_select %p19, %s20, %s21
    %p25 = pneg %p19
    %p26 = scmp.eq.s32.totalorder %s10, 1
    %p27 = por %p25, %p26
    %p28 = scmp.ne.s32.totalorder %s20, %s23
    %p29 = scmp.eq.s32.totalorder %s10, 0
    %p30 = por %p28, %p29
    %p31 = scmp.ne.s32.totalorder %s20, %s23
    %p32 = scmp.eq.s32.totalorder %s15, 1
    %p33 = por %p31, %p32
    %p34 = scmp.ne.s32.totalorder %s23, %s24
    %p35 = scmp.eq.s32.totalorder %s15, 0
    %p36 = por %p34, %p35
    %p37 = scmp.ne.s32.totalorder %s23, %s24
    %p38 = scmp.eq.s32.totalorder %s16, 1
    %p39 = por %p37, %p38
    %p41 = scmp.ne.s32.totalorder %s24, %s40
    %p42 = scmp.eq.s32.totalorder %s16, 0
    %p43 = por %p41, %p42
    %s45 = sadd.s32 %s44, 1
    %p48 = scmp.eq.s32.totalorder %s10, 1
    %p49 = scmp.ne.s32.totalorder %s44, %s46
    %p50 = scmp.eq.s32.totalorder %s10, 0
    %p51 = por %p49, %p50
    %p52 = scmp.ne.s32.totalorder %s44, %s46
    %p53 = scmp.eq.s32.totalorder %s15, 1
    %p54 = por %p52, %p53
    %p55 = scmp.ne.s32.totalorder %s46, %s47
    %p56 = scmp.eq.s32.totalorder %s15, 0
    %p57 = por %p55, %p56
    %p58 = scmp.ne.s32.totalorder %s46, %s47
    %p59 = scmp.eq.s32.totalorder %s16, 1
    %p60 = por %p58, %p59
    %p62 = scmp.ne.s32.totalorder %s47, %s61
    %p63 = scmp.eq.s32.totalorder %s16, 0
    %p64 = por %p62, %p63
    %s66 = sadd.s32 %s65, 1
    %p69 = scmp.eq.s32.totalorder %s10, 1
    %p70 = scmp.ne.s32.totalorder %s65, %s67
    %p71 = scmp.eq.s32.totalorder %s10, 0
    %p72 = por %p70, %p71
    %p73 = scmp.ne.s32.totalorder %s65, %s67
    %p74 = scmp.eq.s32.totalorder %s15, 1
    %p75 = por %p73, %p74
    %p76 = scmp.ne.s32.totalorder %s67, %s68
    %p77 = scmp.eq.s32.totalorder %s15, 0
    %p78 = por %p76, %p77
    %p79 = scmp.ne.s32.totalorder %s67, %s68
    %p80 = scmp.eq.s32.totalorder %s16, 1
    %p81 = por %p79, %p80
    %p83 = scmp.ne.s32.totalorder %s68, %s82
    %p84 = scmp.eq.s32.totalorder %s16, 0
    %p85 = por %p83, %p84
    %s87 = sadd.s32 %s86, 1
    %p90 = scmp.eq.s32.totalorder %s10, 1
    %p91 = scmp.ne.s32.totalorder %s86, %s88
    %p92 = scmp.eq.s32.totalorder %s10, 0
    %p93 = por %p91, %p92
    %p94 = scmp.ne.s32.totalorder %s86, %s88
    %p95 = scmp.eq.s32.totalorder %s15, 1
    %p96 = por %p94, %p95
    %p97 = scmp.ne.s32.totalorder %s88, %s89
    %p98 = scmp.eq.s32.totalorder %s15, 0
    %p99 = por %p97, %p98
    %p100 = scmp.ne.s32.totalorder %s88, %s89
    %p101 = scmp.eq.s32.totalorder %s16, 1
    %p102 = por %p100, %p101
    %p104 = scmp.ne.s32.totalorder %s89, %s103
    %p105 = scmp.eq.s32.totalorder %s16, 0
    %p106 = por %p104, %p105
    %s107 = ssub.s32 %s10, %s17
    %p108 = scmp.eq.s32.totalorder %s107, 0
    %s110 = sadd.s32 %s109, 1
    %s111 = scalar_select %p108, %s109, %s110
    %p114 = pneg %p108
    %p115 = scmp.eq.s32.totalorder %s10, 1
    %p116 = por %p114, %p115
    %p117 = scmp.ne.s32.totalorder %s109, %s112
    %p118 = scmp.eq.s32.totalorder %s10, 0
    %p119 = por %p117, %p118
    %p120 = scmp.ne.s32.totalorder %s109, %s112
    %p121 = scmp.eq.s32.totalorder %s15, 1
    %p122 = por %p120, %p121
    %p123 = scmp.ne.s32.totalorder %s112, %s113
    %p124 = scmp.eq.s32.totalorder %s15, 0
    %p125 = por %p123, %p124
    %p126 = scmp.ne.s32.totalorder %s112, %s113
    %p127 = scmp.eq.s32.totalorder %s16, 1
    %p128 = por %p126, %p127
    %p130 = scmp.ne.s32.totalorder %s113, %s129
    %p131 = scmp.eq.s32.totalorder %s16, 0
    %p132 = por %p130, %p131
    %p133 = scmp.le.s32.totalorder 1, %s10
    %p134 = scmp.lt.s32.totalorder %s10, 3
    %p135 = pnand %p133, %p134
    %p136 = pneg %p135
    // Predicated region
    $region9: #{tpu_custom_call.1} parent=5 // pred_check
      _
    $region10: #{tpu_custom_call.1} parent=5 // pred_check_branch
      %138 = sbr.rel (%p135) target = $region12
    $region11: #{tpu_custom_call.1} parent=5 // pred_region
      %s139 = ssub.s32 %s10, 1
      // Predicated region
      $region13: #{tpu_custom_call.1} parent=11 // pred_check
        %p140 = pneg %p57
      $region14: #{tpu_custom_call.1} parent=11 // pred_check_branch
        %142 = sbr.rel (%p140) target = $region16
      $region15: #{tpu_custom_call.1} parent=11 // pred_region
        _
      $region16: #{tpu_custom_call.1} parent=11 // pred_fallthru
        _
      // Predicated region
      $region17: #{tpu_custom_call.1} parent=11 // pred_check
        %p143 = pneg %p78
      $region18: #{tpu_custom_call.1} parent=11 // pred_check_branch
        %145 = sbr.rel (%p143) target = $region20
      $region19: #{tpu_custom_call.1} parent=11 // pred_region
        _
      $region20: #{tpu_custom_call.1} parent=11 // pred_fallthru
        _
      // Predicated region
      $region21: #{tpu_custom_call.1} parent=11 // pred_check
        %p146 = pneg %p99
      $region22: #{tpu_custom_call.1} parent=11 // pred_check_branch
        %148 = sbr.rel (%p146) target = $region24
      $region23: #{tpu_custom_call.1} parent=11 // pred_region
        _
      $region24: #{tpu_custom_call.1} parent=11 // pred_fallthru
        _
    $region12: #{tpu_custom_call.1} parent=5 // pred_fallthru
      _
    %p149 = scmp.lt.s32.totalorder %s10, 2
    // Predicated region
    $region25: #{tpu_custom_call.1} parent=5 // pred_check
      %p150 = pneg %p149
    $region26: #{tpu_custom_call.1} parent=5 // pred_check_branch
      %152 = sbr.rel (%p150) target = $region28
    $region27: #{tpu_custom_call.1} parent=5 // pred_region
      // Predicated region
      $region29: #{tpu_custom_call.1} parent=27 // pred_check
        %p153 = pneg %p30
      $region30: #{tpu_custom_call.1} parent=27 // pred_check_branch
        %155 = sbr.rel (%p153) target = $region32
      $region31: #{tpu_custom_call.1} parent=27 // pred_region
        %p156 = scmp.lt.s32.totalorder %s10, 1
        %s157 = scalar_select %p156, %s10, 1
        %s158 = smul.addr %s157, 44
        %s159 = smul.addr %s158, 8
        %s160 = scalar_lea.vmem %s0, %s159
      $region32: #{tpu_custom_call.1} parent=27 // pred_fallthru
        _
    $region28: #{tpu_custom_call.1} parent=5 // pred_fallthru
      _
    %p161 = scmp.le.s32.totalorder 1, %s10
    %p162 = scmp.lt.s32.totalorder %s10, 3
    %p163 = pnand %p161, %p162
    %p164 = pneg %p163
    // Predicated region
    $region33: #{tpu_custom_call.1} parent=5 // pred_check
      _
    $region34: #{tpu_custom_call.1} parent=5 // pred_check_branch
      %166 = sbr.rel (%p163) target = $region36
    $region35: #{tpu_custom_call.1} parent=5 // pred_region
      %s167 = ssub.s32 %s10, 1
      %p168 = scmp.lt.s32.totalorder %s15, 1
      %s169 = scalar_select %p168, %s15, 1
      %s170 = smul.addr %s169, 44
      %s171 = smul.addr %s170, 8
      %s172 = scalar_lea.vmem %s0, %s171
      %p173 = pneg %p36
      %p174 = pneg %p33
      %p175 = pneg %p57
      %p176 = pneg %p54
      %p177 = pneg %p78
      %p178 = pneg %p75
      %p179 = pneg %p99
      %p180 = pneg %p96
      %p181 = pneg %p125
      %p182 = pneg %p122
      %p183 = scmp.lt.s32.totalorder %s15, 1
      %s184 = scalar_select %p183, %s15, 1
      %s185 = smul.addr %s184, 11
      %s186 = smul.addr %s185, 8
      %s187 = scalar_lea.vmem %s4, %s186
      %p188 = scmp.lt.s32.totalorder %s15, 1
      %s189 = scalar_select %p188, %s15, 1
      %s190 = smul.addr %s189, 44
      %s191 = smul.addr %s190, 8
      %s192 = scalar_lea.vmem %s0, %s191
      %p193 = scmp.lt.s32.totalorder %s15, 1
      %s194 = scalar_select %p193, %s15, 1
      %s195 = smul.addr %s194, 11
      %s196 = smul.addr %s195, 8
      %s197 = scalar_lea.vmem %s4, %s196
      %vm199 = vcmask 27648
      %200 = vst.msk [vmem:[#allocation2] sm:$0xf] %vm199, 0
      %201 = vst.msk [vmem:[#allocation2 + $0x4] sm:$0xf] %vm199, 0
      %202 = vst.msk [vmem:[#allocation2 + $0x34] sm:$0xf] %vm199, 0
      %203 = vst.msk [vmem:[#allocation2 + $0x38] sm:$0xf] %vm199, 0
      %vm204 = vcmask 60416
      %205 = vst.msk [vmem:[#allocation3] sm:$0xf] %vm204, 0
      %206 = vst.msk [vmem:[#allocation3 + $0x4] sm:$0xf] %vm204, 0
      %207 = vst.msk [vmem:[#allocation3 + $0x34] sm:$0xf] %vm204, 0
      %208 = vst.msk [vmem:[#allocation3 + $0x38] sm:$0xf] %vm204, 0
      %v209 = vld [vmem:[%s3] sm:$0xff]
      %v210 = vld [vmem:[%s3 + $0x8] sm:$0xff]
      %v211 = vld [vmem:[%s3 + $0x10] sm:$0xff]
      %v212 = vld [vmem:[%s3 + $0x18] sm:$0xff]
      %v213 = vld [vmem:[%s3 + $0x20] sm:$0xff]
      %v214 = vld [vmem:[%s3 + $0x28] sm:$0xff]
      %v215 = vld [vmem:[%s3 + $0x30] sm:$0xff]
      %v216 = vld [vmem:[%s3 + $0x38] sm:$0xff]
      %v217 = vld [vmem:[%s3 + $0x40] sm:$0xff]
      %v218 = vld [vmem:[%s3 + $0x48] sm:$0xff]
      %v219 = vld [vmem:[%s3 + $0x50] sm:$0xff]
      %v220 = vld [vmem:[%s192] sm:$0xff]
      %v221 = vld [vmem:[%s192 + $0x8] sm:$0xff]
      %v222 = vld [vmem:[%s192 + $0x10] sm:$0xff]
      %v223 = vld [vmem:[%s192 + $0x18] sm:$0xff]
      %v224 = vld [vmem:[%s192 + $0x20] sm:$0xff]
      %v225 = vld [vmem:[%s192 + $0x28] sm:$0xff]
      %v226 = vld [vmem:[%s192 + $0x30] sm:$0xff]
      %v227 = vld [vmem:[%s192 + $0x38] sm:$0xff]
      %v228 = vld [vmem:[%s192 + $0x40] sm:$0xff]
      %v229 = vld [vmem:[%s192 + $0x48] sm:$0xff]
      %v230 = vld [vmem:[%s192 + $0x50] sm:$0xff]
      %v231 = vld [vmem:[%s192 + $0x58] sm:$0xff]
      %v232 = vld [vmem:[%s192 + $0x60] sm:$0xff]
      %v233 = vld [vmem:[%s192 + $0x68] sm:$0xff]
      %v234 = vld [vmem:[%s192 + $0x70] sm:$0xff]
      %v235 = vld [vmem:[%s192 + $0x78] sm:$0xff]
      %v236 = vld [vmem:[%s192 + $0x80] sm:$0xff]
      %v237 = vld [vmem:[%s192 + $0x88] sm:$0xff]
      %v238 = vld [vmem:[%s192 + $0x90] sm:$0xff]
      %v239 = vld [vmem:[%s192 + $0x98] sm:$0xff]
      %v240 = vld [vmem:[%s192 + $0xa0] sm:$0xff]
      %v241 = vld [vmem:[%s192 + $0xa8] sm:$0xff]
      %v242 = vld [vmem:[%s192 + $0xb0] sm:$0xff]
      %v243 = vld [vmem:[%s192 + $0xb8] sm:$0xff]
      %v244 = vld [vmem:[%s192 + $0xc0] sm:$0xff]
      %v245 = vld [vmem:[%s192 + $0xc8] sm:$0xff]
      %v246 = vld [vmem:[%s192 + $0xd0] sm:$0xff]
      %v247 = vld [vmem:[%s192 + $0xd8] sm:$0xff]
      %v248 = vld [vmem:[%s192 + $0xe0] sm:$0xff]
      %v249 = vld [vmem:[%s192 + $0xe8] sm:$0xff]
      %v250 = vld [vmem:[%s192 + $0xf0] sm:$0xff]
      %v251 = vld [vmem:[%s192 + $0xf8] sm:$0xff]
      %v252 = vld [vmem:[%s192 + $0x100] sm:$0xff]
      %v253 = vld [vmem:[%s192 + $0x108] sm:$0xff]
      %v254 = vld [vmem:[%s192 + $0x110] sm:$0xff]
      %v255 = vld [vmem:[%s192 + $0x118] sm:$0xff]
      %v256 = vld [vmem:[%s192 + $0x120] sm:$0xff]
      %v257 = vld [vmem:[%s192 + $0x128] sm:$0xff]
      %v258 = vld [vmem:[%s192 + $0x130] sm:$0xff]
      %v259 = vld [vmem:[%s192 + $0x138] sm:$0xff]
      %v260 = vld [vmem:[%s192 + $0x140] sm:$0xff]
      %v261 = vld [vmem:[%s192 + $0x148] sm:$0xff]
      %v262 = vld [vmem:[%s192 + $0x150] sm:$0xff]
      %v263 = vld [vmem:[%s192 + $0x158] sm:$0xff]
      %v264 = vmax.f32 %v220, %v231
      %v265 = vmax.f32 %v221, %v232
      %v266 = vmax.f32 %v222, %v233
      %v267 = vmax.f32 %v223, %v234
      %v268 = vmax.f32 %v224, %v235
      %v269 = vmax.f32 %v225, %v236
      %v270 = vmax.f32 %v226, %v237
      %v271 = vmax.f32 %v227, %v238
      %v272 = vmax.f32 %v228, %v239
      %v273 = vmax.f32 %v229, %v240
      %v274 = vmax.f32 %v230, %v241
      %v275 = vmax.f32 %v242, %v253
      %v276 = vmax.f32 %v243, %v254
      %v277 = vmax.f32 %v244, %v255
      %v278 = vmax.f32 %v245, %v256
      %v279 = vmax.f32 %v246, %v257
      %v280 = vmax.f32 %v247, %v258
      %v281 = vmax.f32 %v248, %v259
      %v282 = vmax.f32 %v249, %v260
      %v283 = vmax.f32 %v250, %v261
      %v284 = vmax.f32 %v251, %v262
      %v285 = vmax.f32 %v252, %v263
      %v286 = vmax.f32 %v264, %v275
      %v287 = vmax.f32 %v265, %v276
      %v288 = vmax.f32 %v266, %v277
      %v289 = vmax.f32 %v267, %v278
      %v290 = vmax.f32 %v268, %v279
      %v291 = vmax.f32 %v269, %v280
      %v292 = vmax.f32 %v270, %v281
      %v293 = vmax.f32 %v271, %v282
      %v294 = vmax.f32 %v272, %v283
      %v295 = vmax.f32 %v273, %v284
      %v296 = vmax.f32 %v274, %v285
      %v297 = vpack.c.bf16 %v287, %v286
      %v298 = vpack.c.bf16 %v289, %v288
      %v299 = vpack.c.bf16 %v291, %v290
      %v300 = vpack.c.bf16 %v293, %v292
      %v301 = vpack.c.bf16 %v295, %v294
      %v302 = vpack.c.bf16 %v296, %v296
      %v309 = vunpack.c.l.b16 %v297
      %v310 = vunpack.c.h.b16 %v297
      %v311 = vunpack.c.l.b16 %v298
      %v312 = vunpack.c.h.b16 %v298
      %v313 = vunpack.c.l.b16 %v299
      %v314 = vunpack.c.h.b16 %v299
      %v315 = vunpack.c.l.b16 %v300
      %v316 = vunpack.c.h.b16 %v300
      %v317 = vunpack.c.l.b16 %v301
      %v318 = vunpack.c.h.b16 %v301
      %v319 = vunpack.c.l.b16 %v302
      %v320 = vpack.c.b16 %v309, %v309
      %v321 = vpack.c.b16 %v310, %v310
      %v322 = vpack.c.b16 %v311, %v311
      %v323 = vpack.c.b16 %v312, %v312
      %v324 = vpack.c.b16 %v313, %v313
      %v325 = vpack.c.b16 %v314, %v314
      %v326 = vpack.c.b16 %v315, %v315
      %v327 = vpack.c.b16 %v316, %v316
      %v328 = vpack.c.b16 %v317, %v317
      %v329 = vpack.c.b16 %v318, %v318
      %v330 = vpack.c.b16 %v319, %v319
      %342 = vst.msk [vmem:[#allocation2 + $0x8] sm:$0xf] %vm199, %v320
      %343 = vst.msk [vmem:[#allocation2 + $0xc] sm:$0xf] %vm199, %v321
      %344 = vst.msk [vmem:[#allocation2 + $0x10] sm:$0xf] %vm199, %v322
      %345 = vst.msk [vmem:[#allocation2 + $0x14] sm:$0xf] %vm199, %v323
      %346 = vst.msk [vmem:[#allocation2 + $0x18] sm:$0xf] %vm199, %v324
      %347 = vst.msk [vmem:[#allocation2 + $0x1c] sm:$0xf] %vm199, %v325
      %348 = vst.msk [vmem:[#allocation2 + $0x20] sm:$0xf] %vm199, %v326
      %349 = vst.msk [vmem:[#allocation2 + $0x24] sm:$0xf] %vm199, %v327
      %350 = vst.msk [vmem:[#allocation2 + $0x28] sm:$0xf] %vm199, %v328
      %351 = vst.msk [vmem:[#allocation2 + $0x2c] sm:$0xf] %vm199, %v329
      %352 = vst.msk [vmem:[#allocation2 + $0x30] sm:$0xf] %vm199, %v330
      %v353 = vld [vmem:[#allocation2] sm:$0x8]
      %v354 = vld [vmem:[#allocation2 + $0x4] sm:$0xf]
      %v355 = vld [vmem:[#allocation2 + $0x8] sm:$0xf]
      %v356 = vld [vmem:[#allocation2 + $0xc] sm:$0xf]
      %v357 = vld [vmem:[#allocation2 + $0x10] sm:$0xf]
      %v358 = vld [vmem:[#allocation2 + $0x14] sm:$0xf]
      %v359 = vld [vmem:[#allocation2 + $0x18] sm:$0xf]
      %v360 = vld [vmem:[#allocation2 + $0x1c] sm:$0xf]
      %v361 = vld [vmem:[#allocation2 + $0x20] sm:$0xf]
      %v362 = vld [vmem:[#allocation2 + $0x24] sm:$0xf]
      %v363 = vld [vmem:[#allocation2 + $0x28] sm:$0xf]
      %v364 = vld [vmem:[#allocation2 + $0x2c] sm:$0x7]
      %v365 = vld [vmem:[%s1] sm:$0x3]
      %v366 = vld [vmem:[#allocation2 + $0x2c] sm:$0xf]
      %s367 = scalar_lea.vmem %s1, 2
      %v368 = vld [vmem:[%s367] sm:$0x3]
      %v381 = vunpack.c.l.b16 %v353
      %v382 = vunpack.c.l.b16 %v354
      %v383 = vunpack.c.l.b16 %v355
      %v384 = vunpack.c.l.b16 %v356
      %v385 = vunpack.c.l.b16 %v357
      %v386 = vunpack.c.l.b16 %v358
      %v387 = vunpack.c.l.b16 %v359
      %v388 = vunpack.c.l.b16 %v360
      %v389 = vunpack.c.l.b16 %v361
      %v390 = vunpack.c.l.b16 %v362
      %v391 = vunpack.c.l.b16 %v363
      %v392 = vunpack.c.l.b16 %v366
      %v393 = vpack.c.b16 %v382, %v381
      %v394 = vpack.c.b16 %v384, %v383
      %v395 = vpack.c.b16 %v386, %v385
      %v396 = vpack.c.b16 %v388, %v387
      %v397 = vpack.c.b16 %v390, %v389
      %v398 = vpack.c.b16 %v392, %v391
      %vm399 = vsmask.f32 4352
      %v401 = vshrl.u32 %v393, 16
      %v403 = vrot.slane %v401, 3
      %v404 = vshll.u32 %v393, 16
      %v406 = vrot.slane %v404, 4
      %v407 = vor.u32 %v403, %v406
      %v409 = vshrl.u32 %v394, 16
      %v411 = vrot.slane %v409, 3
      %v412 = vshll.u32 %v394, 16
      %v414 = vrot.slane %v412, 4
      %v415 = vor.u32 %v411, %v414
      %v416 = vsel %vm399, %v407, %v415
      %v418 = vshrl.u32 %v395, 16
      %v420 = vrot.slane %v418, 3
      %v421 = vshll.u32 %v395, 16
      %v423 = vrot.slane %v421, 4
      %v424 = vor.u32 %v420, %v423
      %v425 = vsel %vm399, %v415, %v424
      %v427 = vshrl.u32 %v396, 16
      %v429 = vrot.slane %v427, 3
      %v430 = vshll.u32 %v396, 16
      %v432 = vrot.slane %v430, 4
      %v433 = vor.u32 %v429, %v432
      %v434 = vsel %vm399, %v424, %v433
      %v436 = vshrl.u32 %v397, 16
      %v438 = vrot.slane %v436, 3
      %v439 = vshll.u32 %v397, 16
      %v441 = vrot.slane %v439, 4
      %v442 = vor.u32 %v438, %v441
      %v443 = vsel %vm399, %v433, %v442
      %v445 = vshrl.u32 %v398, 16
      %v447 = vrot.slane %v445, 3
      %v448 = vshll.u32 %v398, 16
      %v450 = vrot.slane %v448, 4
      %v451 = vor.u32 %v447, %v450
      %v452 = vsel %vm399, %v442, %v451
      %vm453 = vcmask 31744
      %v455 = vsel %vm453, %v416, 0
      %v458 = vsel %vm453, %v425, 0
      %v461 = vsel %vm453, %v434, 0
      %v464 = vsel %vm453, %v443, 0
      %v467 = vsel %vm453, %v452, 0
      %v470 = vsel %vm453, %v451, 0
      %vm472 = vcmask 1041408
      %v474 = vsel %vm472, %v368, 0
      %476 = vmatprep.subr.bf16.mxu0 0
      %477 = vmatpush1.bf16.msra.mxu0 0
      %478 = vmatprep.subr.bf16.mxu0 0
      %479 = vmatpush1.bf16.msra.mxu0 0
      %480 = vmatprep.subr.bf16.mxu0 0
      %481 = vmatpush1.bf16.msra.mxu0 0
      %482 = vmatprep.subr.bf16.mxu0 0
      %483 = vmatpush1.bf16.msra.mxu0 0
      %484 = vmatprep.subr.bf16.mxu0 0
      %485 = vmatpush1.bf16.msra.mxu0 0
      %486 = vmatprep.subr.bf16.mxu0 0
      %487 = vmatpush1.bf16.msra.mxu0 0
      %488 = vmatprep.subr.bf16.mxu0 0
      %489 = vmatpush1.bf16.msra.mxu0 0
      %490 = vmatprep.subr.bf16.mxu0 0
      %491 = vmatpush1.bf16.msra.mxu0 %v474
      %492 = vmatprep.subr.bf16.mxu0 0
      %493 = vmatpush2.bf16.msra.mxu0 0
      %494 = vmatprep.subr.bf16.mxu0 0
      %495 = vmatpush2.bf16.msra.mxu0 0
      %496 = vmatprep.subr.bf16.mxu0 0
      %497 = vmatpush2.bf16.msra.mxu0 0
      %498 = vmatprep.subr.bf16.mxu0 0
      %499 = vmatpush2.bf16.msra.mxu0 0
      %500 = vmatprep.subr.bf16.mxu0 0
      %501 = vmatpush2.bf16.msra.mxu0 0
      %502 = vmatprep.subr.bf16.mxu0 0
      %503 = vmatpush2.bf16.msra.mxu0 0
      %504 = vmatprep.subr.bf16.mxu0 0
      %505 = vmatpush2.bf16.msra.mxu0 0
      %506 = vmatprep.subr.bf16.mxu0 0
      %507 = vmatpush2.bf16.msra.mxu0 0
      %508 = vmatprep.mubr.bf16.mxu0 0
      %509 = vmatmul.mubr.bf16.gmra.mxu0 %v455
      %v510 = vpop.f32.mrf.mxu0
      %v511 = vadd.f32 0.0, %v510
      %v512 = vpop.f32.mrf.mxu0
      %v513 = vpop.f32.mrf.mxu0
      %v514 = vadd.f32 0.0, %v513
      %v515 = vpop.f32.mrf.mxu0
      %516 = vmatprep.mubr.bf16.mxu0 0
      %517 = vmatmul.mubr.bf16.gmra.mxu0 %v458
      %v518 = vpop.f32.mrf.mxu0
      %v519 = vadd.f32 0.0, %v518
      %v520 = vpop.f32.mrf.mxu0
      %v521 = vpop.f32.mrf.mxu0
      %v522 = vadd.f32 0.0, %v521
      %v523 = vpop.f32.mrf.mxu0
      %524 = vmatprep.mubr.bf16.mxu0 0
      %525 = vmatmul.mubr.bf16.gmra.mxu0 %v461
      %v526 = vpop.f32.mrf.mxu0
      %v527 = vadd.f32 0.0, %v526
      %v528 = vpop.f32.mrf.mxu0
      %v529 = vpop.f32.mrf.mxu0
      %v530 = vadd.f32 0.0, %v529
      %v531 = vpop.f32.mrf.mxu0
      %532 = vmatprep.mubr.bf16.mxu0 0
      %533 = vmatmul.mubr.bf16.gmra.mxu0 %v464
      %v534 = vpop.f32.mrf.mxu0
      %v535 = vadd.f32 0.0, %v534
      %v536 = vpop.f32.mrf.mxu0
      %v537 = vpop.f32.mrf.mxu0
      %v538 = vadd.f32 0.0, %v537
      %v539 = vpop.f32.mrf.mxu0
      %540 = vmatprep.mubr.bf16.mxu0 0
      %541 = vmatmul.mubr.bf16.gmra.mxu0 %v467
      %v542 = vpop.f32.mrf.mxu0
      %v543 = vadd.f32 0.0, %v542
      %v544 = vpop.f32.mrf.mxu0
      %v545 = vpop.f32.mrf.mxu0
      %v546 = vadd.f32 0.0, %v545
      %v547 = vpop.f32.mrf.mxu0
      %548 = vmatprep.mubr.bf16.mxu0 0
      %549 = vmatmul.mubr.bf16.gmra.mxu0 %v470
      %v550 = vpop.f32.mrf.mxu0
      %v551 = vadd.f32 0.0, %v550
      %v552 = vpop.f32.mrf.mxu0
      %v553 = vpop.f32.mrf.mxu0
      %v554 = vpop.f32.mrf.mxu0
      %555 = vdwg.mxu0
      %v557 = vunpack.c.l.b16 %v364
      %v558 = vpack.c.b16 %v557, %v391
      %vm559 = vcmask 1044480
      %v560 = vrot.slane %v393, 3
      %v561 = vrot.slane %v394, 3
      %v562 = vsel %vm559, %v560, %v561
      %v563 = vrot.slane %v395, 3
      %v564 = vsel %vm559, %v561, %v563
      %v565 = vrot.slane %v396, 3
      %v566 = vsel %vm559, %v563, %v565
      %v567 = vrot.slane %v397, 3
      %v568 = vsel %vm559, %v565, %v567
      %v569 = vrot.slane %v558, 3
      %v570 = vsel %vm559, %v567, %v569
      %v572 = vsel %vm453, %v562, 0
      %v575 = vsel %vm453, %v564, 0
      %v578 = vsel %vm453, %v566, 0
      %v581 = vsel %vm453, %v568, 0
      %v584 = vsel %vm453, %v570, 0
      %v587 = vsel %vm453, %v569, 0
      %v590 = vsel %vm472, %v365, 0
      %592 = vmatprep.subr.bf16.mxu0 0
      %593 = vmatpush1.bf16.msra.mxu0 0
      %594 = vmatprep.subr.bf16.mxu0 0
      %595 = vmatpush1.bf16.msra.mxu0 0
      %596 = vmatprep.subr.bf16.mxu0 0
      %597 = vmatpush1.bf16.msra.mxu0 0
      %598 = vmatprep.subr.bf16.mxu0 0
      %599 = vmatpush1.bf16.msra.mxu0 0
      %600 = vmatprep.subr.bf16.mxu0 0
      %601 = vmatpush1.bf16.msra.mxu0 0
      %602 = vmatprep.subr.bf16.mxu0 0
      %603 = vmatpush1.bf16.msra.mxu0 0
      %604 = vmatprep.subr.bf16.mxu0 0
      %605 = vmatpush1.bf16.msra.mxu0 0
      %606 = vmatprep.subr.bf16.mxu0 0
      %607 = vmatpush1.bf16.msra.mxu0 %v590
      %608 = vmatprep.subr.bf16.mxu0 0
      %609 = vmatpush2.bf16.msra.mxu0 0
      %610 = vmatprep.subr.bf16.mxu0 0
      %611 = vmatpush2.bf16.msra.mxu0 0
      %612 = vmatprep.subr.bf16.mxu0 0
      %613 = vmatpush2.bf16.msra.mxu0 0
      %614 = vmatprep.subr.bf16.mxu0 0
      %615 = vmatpush2.bf16.msra.mxu0 0
      %616 = vmatprep.subr.bf16.mxu0 0
      %617 = vmatpush2.bf16.msra.mxu0 0
      %618 = vmatprep.subr.bf16.mxu0 0
      %619 = vmatpush2.bf16.msra.mxu0 0
      %620 = vmatprep.subr.bf16.mxu0 0
      %621 = vmatpush2.bf16.msra.mxu0 0
      %622 = vmatprep.subr.bf16.mxu0 0
      %623 = vmatpush2.bf16.msra.mxu0 0
      %624 = vmatprep.mubr.bf16.mxu0 0
      %625 = vmatmul.mubr.bf16.gmra.mxu0 %v572
      %v626 = vpop.f32.mrf.mxu0
      %v627 = vadd.f32 %v511, %v626
      %v628 = vpop.f32.mrf.mxu0
      %v629 = vpop.f32.mrf.mxu0
      %v630 = vadd.f32 %v514, %v629
      %v631 = vpop.f32.mrf.mxu0
      %632 = vmatprep.mubr.bf16.mxu0 0
      %633 = vmatmul.mubr.bf16.gmra.mxu0 %v575
      %v634 = vpop.f32.mrf.mxu0
      %v635 = vadd.f32 %v519, %v634
      %v636 = vpop.f32.mrf.mxu0
      %v637 = vpop.f32.mrf.mxu0
      %v638 = vadd.f32 %v522, %v637
      %v639 = vpop.f32.mrf.mxu0
      %640 = vmatprep.mubr.bf16.mxu0 0
      %641 = vmatmul.mubr.bf16.gmra.mxu0 %v578
      %v642 = vpop.f32.mrf.mxu0
      %v643 = vadd.f32 %v527, %v642
      %v644 = vpop.f32.mrf.mxu0
      %v645 = vpop.f32.mrf.mxu0
      %v646 = vadd.f32 %v530, %v645
      %v647 = vpop.f32.mrf.mxu0
      %648 = vmatprep.mubr.bf16.mxu0 0
      %649 = vmatmul.mubr.bf16.gmra.mxu0 %v581
      %v650 = vpop.f32.mrf.mxu0
      %v651 = vadd.f32 %v535, %v650
      %v652 = vpop.f32.mrf.mxu0
      %v653 = vpop.f32.mrf.mxu0
      %v654 = vadd.f32 %v538, %v653
      %v655 = vpop.f32.mrf.mxu0
      %656 = vmatprep.mubr.bf16.mxu0 0
      %657 = vmatmul.mubr.bf16.gmra.mxu0 %v584
      %v658 = vpop.f32.mrf.mxu0
      %v659 = vadd.f32 %v543, %v658
      %v660 = vpop.f32.mrf.mxu0
      %v661 = vpop.f32.mrf.mxu0
      %v662 = vadd.f32 %v546, %v661
      %v663 = vpop.f32.mrf.mxu0
      %664 = vmatprep.mubr.bf16.mxu0 0
      %665 = vmatmul.mubr.bf16.gmra.mxu0 %v587
      %v666 = vpop.f32.mrf.mxu0
      %v667 = vadd.f32 %v551, %v666
      %v668 = vpop.f32.mrf.mxu0
      %v669 = vpop.f32.mrf.mxu0
      %v670 = vpop.f32.mrf.mxu0
      %671 = vdwg.mxu0
      %s672 = scalar_lea.vmem %s1, 4
      %v673 = vld [vmem:[%s672] sm:$0x3]
      %v674 = vpack.c.b16 %v383, %v382
      %v675 = vpack.c.b16 %v385, %v384
      %v676 = vpack.c.b16 %v387, %v386
      %v677 = vpack.c.b16 %v389, %v388
      %v678 = vpack.c.b16 %v391, %v390
      %v679 = vpack.c.b16 %v392, %v392
      %v681 = vsel %vm453, %v674, 0
      %v684 = vsel %vm453, %v675, 0
      %v687 = vsel %vm453, %v676, 0
      %v690 = vsel %vm453, %v677, 0
      %v693 = vsel %vm453, %v678, 0
      %v696 = vsel %vm453, %v679, 0
      %v699 = vsel %vm472, %v673, 0
      %701 = vmatprep.subr.bf16.mxu0 0
      %702 = vmatpush1.bf16.msra.mxu0 0
      %703 = vmatprep.subr.bf16.mxu0 0
      %704 = vmatpush1.bf16.msra.mxu0 0
      %705 = vmatprep.subr.bf16.mxu0 0
      %706 = vmatpush1.bf16.msra.mxu0 0
      %707 = vmatprep.subr.bf16.mxu0 0
      %708 = vmatpush1.bf16.msra.mxu0 0
      %709 = vmatprep.subr.bf16.mxu0 0
      %710 = vmatpush1.bf16.msra.mxu0 0
      %711 = vmatprep.subr.bf16.mxu0 0
      %712 = vmatpush1.bf16.msra.mxu0 0
      %713 = vmatprep.subr.bf16.mxu0 0
      %714 = vmatpush1.bf16.msra.mxu0 0
      %715 = vmatprep.subr.bf16.mxu0 0
      %716 = vmatpush1.bf16.msra.mxu0 %v699
      %717 = vmatprep.subr.bf16.mxu0 0
      %718 = vmatpush2.bf16.msra.mxu0 0
      %719 = vmatprep.subr.bf16.mxu0 0
      %720 = vmatpush2.bf16.msra.mxu0 0
      %721 = vmatprep.subr.bf16.mxu0 0
      %722 = vmatpush2.bf16.msra.mxu0 0
      %723 = vmatprep.subr.bf16.mxu0 0
      %724 = vmatpush2.bf16.msra.mxu0 0
      %725 = vmatprep.subr.bf16.mxu0 0
      %726 = vmatpush2.bf16.msra.mxu0 0
      %727 = vmatprep.subr.bf16.mxu0 0
      %728 = vmatpush2.bf16.msra.mxu0 0
      %729 = vmatprep.subr.bf16.mxu0 0
      %730 = vmatpush2.bf16.msra.mxu0 0
      %731 = vmatprep.subr.bf16.mxu0 0
      %732 = vmatpush2.bf16.msra.mxu0 0
      %733 = vmatprep.mubr.bf16.mxu0 0
      %734 = vmatmul.mubr.bf16.gmra.mxu0 %v681
      %v735 = vpop.f32.mrf.mxu0
      %v736 = vadd.f32 0.0, %v735
      %v737 = vpop.f32.mrf.mxu0
      %v738 = vpop.f32.mrf.mxu0
      %v739 = vadd.f32 0.0, %v738
      %v740 = vpop.f32.mrf.mxu0
      %741 = vmatprep.mubr.bf16.mxu0 0
      %742 = vmatmul.mubr.bf16.gmra.mxu0 %v684
      %v743 = vpop.f32.mrf.mxu0
      %v744 = vadd.f32 0.0, %v743
      %v745 = vpop.f32.mrf.mxu0
      %v746 = vpop.f32.mrf.mxu0
      %v747 = vadd.f32 0.0, %v746
      %v748 = vpop.f32.mrf.mxu0
      %749 = vmatprep.mubr.bf16.mxu0 0
      %750 = vmatmul.mubr.bf16.gmra.mxu0 %v687
      %v751 = vpop.f32.mrf.mxu0
      %v752 = vadd.f32 0.0, %v751
      %v753 = vpop.f32.mrf.mxu0
      %v754 = vpop.f32.mrf.mxu0
      %v755 = vadd.f32 0.0, %v754
      %v756 = vpop.f32.mrf.mxu0
      %757 = vmatprep.mubr.bf16.mxu0 0
      %758 = vmatmul.mubr.bf16.gmra.mxu0 %v690
      %v759 = vpop.f32.mrf.mxu0
      %v760 = vadd.f32 0.0, %v759
      %v761 = vpop.f32.mrf.mxu0
      %v762 = vpop.f32.mrf.mxu0
      %v763 = vadd.f32 0.0, %v762
      %v764 = vpop.f32.mrf.mxu0
      %765 = vmatprep.mubr.bf16.mxu0 0
      %766 = vmatmul.mubr.bf16.gmra.mxu0 %v693
      %v767 = vpop.f32.mrf.mxu0
      %v768 = vadd.f32 0.0, %v767
      %v769 = vpop.f32.mrf.mxu0
      %v770 = vpop.f32.mrf.mxu0
      %v771 = vadd.f32 0.0, %v770
      %v772 = vpop.f32.mrf.mxu0
      %773 = vmatprep.mubr.bf16.mxu0 0
      %774 = vmatmul.mubr.bf16.gmra.mxu0 %v696
      %v775 = vpop.f32.mrf.mxu0
      %v776 = vadd.f32 0.0, %v775
      %v777 = vpop.f32.mrf.mxu0
      %v778 = vpop.f32.mrf.mxu0
      %v779 = vpop.f32.mrf.mxu0
      %780 = vdwg.mxu0
      %v781 = vadd.f32 %v627, %v736
      %v782 = vadd.f32 %v630, %v739
      %v783 = vadd.f32 %v635, %v744
      %v784 = vadd.f32 %v638, %v747
      %v785 = vadd.f32 %v643, %v752
      %v786 = vadd.f32 %v646, %v755
      %v787 = vadd.f32 %v651, %v760
      %v788 = vadd.f32 %v654, %v763
      %v789 = vadd.f32 %v659, %v768
      %v790 = vadd.f32 %v662, %v771
      %v791 = vadd.f32 %v667, %v776
      %v792 = vld [vmem:[#allocation2 + $0x4] sm:$0x8]
      %v793 = vld [vmem:[#allocation2 + $0x8] sm:$0xf]
      %v794 = vld [vmem:[#allocation2 + $0xc] sm:$0xf]
      %v795 = vld [vmem:[#allocation2 + $0x10] sm:$0xf]
      %v796 = vld [vmem:[#allocation2 + $0x14] sm:$0xf]
      %v797 = vld [vmem:[#allocation2 + $0x18] sm:$0xf]
      %v798 = vld [vmem:[#allocation2 + $0x1c] sm:$0xf]
      %v799 = vld [vmem:[#allocation2 + $0x20] sm:$0xf]
      %v800 = vld [vmem:[#allocation2 + $0x24] sm:$0xf]
      %v801 = vld [vmem:[#allocation2 + $0x28] sm:$0xf]
      %v802 = vld [vmem:[#allocation2 + $0x2c] sm:$0xf]
      %v803 = vld [vmem:[#allocation2 + $0x30] sm:$0xf]
      %s804 = scalar_lea.vmem %s1, 6
      %v805 = vld [vmem:[%s804] sm:$0x3]
      %v818 = vunpack.c.l.b16 %v792
      %v819 = vunpack.c.l.b16 %v793
      %v820 = vunpack.c.l.b16 %v794
      %v821 = vunpack.c.l.b16 %v795
      %v822 = vunpack.c.l.b16 %v796
      %v823 = vunpack.c.l.b16 %v797
      %v824 = vunpack.c.l.b16 %v798
      %v825 = vunpack.c.l.b16 %v799
      %v826 = vunpack.c.l.b16 %v800
      %v827 = vunpack.c.l.b16 %v801
      %v828 = vunpack.c.l.b16 %v802
      %v829 = vunpack.c.l.b16 %v803
      %v830 = vpack.c.b16 %v819, %v818
      %v831 = vpack.c.b16 %v821, %v820
      %v832 = vpack.c.b16 %v823, %v822
      %v833 = vpack.c.b16 %v825, %v824
      %v834 = vpack.c.b16 %v827, %v826
      %v835 = vpack.c.b16 %v829, %v828
      %v837 = vshrl.u32 %v830, 16
      %v839 = vrot.slane %v837, 3
      %v840 = vshll.u32 %v830, 16
      %v842 = vrot.slane %v840, 4
      %v843 = vor.u32 %v839, %v842
      %v845 = vshrl.u32 %v831, 16
      %v847 = vrot.slane %v845, 3
      %v848 = vshll.u32 %v831, 16
      %v850 = vrot.slane %v848, 4
      %v851 = vor.u32 %v847, %v850
      %v852 = vsel %vm399, %v843, %v851
      %v854 = vshrl.u32 %v832, 16
      %v856 = vrot.slane %v854, 3
      %v857 = vshll.u32 %v832, 16
      %v859 = vrot.slane %v857, 4
      %v860 = vor.u32 %v856, %v859
      %v861 = vsel %vm399, %v851, %v860
      %v863 = vshrl.u32 %v833, 16
      %v865 = vrot.slane %v863, 3
      %v866 = vshll.u32 %v833, 16
      %v868 = vrot.slane %v866, 4
      %v869 = vor.u32 %v865, %v868
      %v870 = vsel %vm399, %v860, %v869
      %v872 = vshrl.u32 %v834, 16
      %v874 = vrot.slane %v872, 3
      %v875 = vshll.u32 %v834, 16
      %v877 = vrot.slane %v875, 4
      %v878 = vor.u32 %v874, %v877
      %v879 = vsel %vm399, %v869, %v878
      %v881 = vshrl.u32 %v835, 16
      %v883 = vrot.slane %v881, 3
      %v884 = vshll.u32 %v835, 16
      %v886 = vrot.slane %v884, 4
      %v887 = vor.u32 %v883, %v886
      %v888 = vsel %vm399, %v878, %v887
      %v890 = vsel %vm453, %v852, 0
      %v893 = vsel %vm453, %v861, 0
      %v896 = vsel %vm453, %v870, 0
      %v899 = vsel %vm453, %v879, 0
      %v902 = vsel %vm453, %v888, 0
      %v905 = vsel %vm453, %v887, 0
      %v908 = vsel %vm472, %v805, 0
      %910 = vmatprep.subr.bf16.mxu0 0
      %911 = vmatpush1.bf16.msra.mxu0 0
      %912 = vmatprep.subr.bf16.mxu0 0
      %913 = vmatpush1.bf16.msra.mxu0 0
      %914 = vmatprep.subr.bf16.mxu0 0
      %915 = vmatpush1.bf16.msra.mxu0 0
      %916 = vmatprep.subr.bf16.mxu0 0
      %917 = vmatpush1.bf16.msra.mxu0 0
      %918 = vmatprep.subr.bf16.mxu0 0
      %919 = vmatpush1.bf16.msra.mxu0 0
      %920 = vmatprep.subr.bf16.mxu0 0
      %921 = vmatpush1.bf16.msra.mxu0 0
      %922 = vmatprep.subr.bf16.mxu0 0
      %923 = vmatpush1.bf16.msra.mxu0 0
      %924 = vmatprep.subr.bf16.mxu0 0
      %925 = vmatpush1.bf16.msra.mxu0 %v908
      %926 = vmatprep.subr.bf16.mxu0 0
      %927 = vmatpush2.bf16.msra.mxu0 0
      %928 = vmatprep.subr.bf16.mxu0 0
      %929 = vmatpush2.bf16.msra.mxu0 0
      %930 = vmatprep.subr.bf16.mxu0 0
      %931 = vmatpush2.bf16.msra.mxu0 0
      %932 = vmatprep.subr.bf16.mxu0 0
      %933 = vmatpush2.bf16.msra.mxu0 0
      %934 = vmatprep.subr.bf16.mxu0 0
      %935 = vmatpush2.bf16.msra.mxu0 0
      %936 = vmatprep.subr.bf16.mxu0 0
      %937 = vmatpush2.bf16.msra.mxu0 0
      %938 = vmatprep.subr.bf16.mxu0 0
      %939 = vmatpush2.bf16.msra.mxu0 0
      %940 = vmatprep.subr.bf16.mxu0 0
      %941 = vmatpush2.bf16.msra.mxu0 0
      %942 = vmatprep.mubr.bf16.mxu0 0
      %943 = vmatmul.mubr.bf16.gmra.mxu0 %v890
      %v944 = vpop.f32.mrf.mxu0
      %v945 = vadd.f32 0.0, %v944
      %v946 = vpop.f32.mrf.mxu0
      %v947 = vpop.f32.mrf.mxu0
      %v948 = vadd.f32 0.0, %v947
      %v949 = vpop.f32.mrf.mxu0
      %950 = vmatprep.mubr.bf16.mxu0 0
      %951 = vmatmul.mubr.bf16.gmra.mxu0 %v893
      %v952 = vpop.f32.mrf.mxu0
      %v953 = vadd.f32 0.0, %v952
      %v954 = vpop.f32.mrf.mxu0
      %v955 = vpop.f32.mrf.mxu0
      %v956 = vadd.f32 0.0, %v955
      %v957 = vpop.f32.mrf.mxu0
      %958 = vmatprep.mubr.bf16.mxu0 0
      %959 = vmatmul.mubr.bf16.gmra.mxu0 %v896
      %v960 = vpop.f32.mrf.mxu0
      %v961 = vadd.f32 0.0, %v960
      %v962 = vpop.f32.mrf.mxu0
      %v963 = vpop.f32.mrf.mxu0
      %v964 = vadd.f32 0.0, %v963
      %v965 = vpop.f32.mrf.mxu0
      %966 = vmatprep.mubr.bf16.mxu0 0
      %967 = vmatmul.mubr.bf16.gmra.mxu0 %v899
      %v968 = vpop.f32.mrf.mxu0
      %v969 = vadd.f32 0.0, %v968
      %v970 = vpop.f32.mrf.mxu0
      %v971 = vpop.f32.mrf.mxu0
      %v972 = vadd.f32 0.0, %v971
      %v973 = vpop.f32.mrf.mxu0
      %974 = vmatprep.mubr.bf16.mxu0 0
      %975 = vmatmul.mubr.bf16.gmra.mxu0 %v902
      %v976 = vpop.f32.mrf.mxu0
      %v977 = vadd.f32 0.0, %v976
      %v978 = vpop.f32.mrf.mxu0
      %v979 = vpop.f32.mrf.mxu0
      %v980 = vadd.f32 0.0, %v979
      %v981 = vpop.f32.mrf.mxu0
      %982 = vmatprep.mubr.bf16.mxu0 0
      %983 = vmatmul.mubr.bf16.gmra.mxu0 %v905
      %v984 = vpop.f32.mrf.mxu0
      %v985 = vadd.f32 0.0, %v984
      %v986 = vpop.f32.mrf.mxu0
      %v987 = vpop.f32.mrf.mxu0
      %v988 = vpop.f32.mrf.mxu0
      %989 = vdwg.mxu0
      %v990 = vadd.f32 %v781, %v945
      %v991 = vadd.f32 %v782, %v948
      %v992 = vadd.f32 %v783, %v953
      %v993 = vadd.f32 %v784, %v956
      %v994 = vadd.f32 %v785, %v961
      %v995 = vadd.f32 %v786, %v964
      %v996 = vadd.f32 %v787, %v969
      %v997 = vadd.f32 %v788, %v972
      %v998 = vadd.f32 %v789, %v977
      %v999 = vadd.f32 %v790, %v980
      %v1000 = vadd.f32 %v791, %v985
      %s1001 = scalar_lea.vmem %s1, 8
      %v1002 = vld [vmem:[%s1001] sm:$0x3]
      %v1003 = vpack.c.b16 %v820, %v819
      %v1004 = vpack.c.b16 %v822, %v821
      %v1005 = vpack.c.b16 %v824, %v823
      %v1006 = vpack.c.b16 %v826, %v825
      %v1007 = vpack.c.b16 %v828, %v827
      %v1008 = vpack.c.b16 %v829, %v829
      %v1010 = vsel %vm453, %v1003, 0
      %v1013 = vsel %vm453, %v1004, 0
      %v1016 = vsel %vm453, %v1005, 0
      %v1019 = vsel %vm453, %v1006, 0
      %v1022 = vsel %vm453, %v1007, 0
      %v1025 = vsel %vm453, %v1008, 0
      %v1028 = vsel %vm472, %v1002, 0
      %1030 = vmatprep.subr.bf16.mxu0 0
      %1031 = vmatpush1.bf16.msra.mxu0 0
      %1032 = vmatprep.subr.bf16.mxu0 0
      %1033 = vmatpush1.bf16.msra.mxu0 0
      %1034 = vmatprep.subr.bf16.mxu0 0
      %1035 = vmatpush1.bf16.msra.mxu0 0
      %1036 = vmatprep.subr.bf16.mxu0 0
      %1037 = vmatpush1.bf16.msra.mxu0 0
      %1038 = vmatprep.subr.bf16.mxu0 0
      %1039 = vmatpush1.bf16.msra.mxu0 0
      %1040 = vmatprep.subr.bf16.mxu0 0
      %1041 = vmatpush1.bf16.msra.mxu0 0
      %1042 = vmatprep.subr.bf16.mxu0 0
      %1043 = vmatpush1.bf16.msra.mxu0 0
      %1044 = vmatprep.subr.bf16.mxu0 0
      %1045 = vmatpush1.bf16.msra.mxu0 %v1028
      %1046 = vmatprep.subr.bf16.mxu0 0
      %1047 = vmatpush2.bf16.msra.mxu0 0
      %1048 = vmatprep.subr.bf16.mxu0 0
      %1049 = vmatpush2.bf16.msra.mxu0 0
      %1050 = vmatprep.subr.bf16.mxu0 0
      %1051 = vmatpush2.bf16.msra.mxu0 0
      %1052 = vmatprep.subr.bf16.mxu0 0
      %1053 = vmatpush2.bf16.msra.mxu0 0
      %1054 = vmatprep.subr.bf16.mxu0 0
      %1055 = vmatpush2.bf16.msra.mxu0 0
      %1056 = vmatprep.subr.bf16.mxu0 0
      %1057 = vmatpush2.bf16.msra.mxu0 0
      %1058 = vmatprep.subr.bf16.mxu0 0
      %1059 = vmatpush2.bf16.msra.mxu0 0
      %1060 = vmatprep.subr.bf16.mxu0 0
      %1061 = vmatpush2.bf16.msra.mxu0 0
      %1062 = vmatprep.mubr.bf16.mxu0 0
      %1063 = vmatmul.mubr.bf16.gmra.mxu0 %v1010
      %v1064 = vpop.f32.mrf.mxu0
      %v1065 = vadd.f32 0.0, %v1064
      %v1066 = vpop.f32.mrf.mxu0
      %v1067 = vpop.f32.mrf.mxu0
      %v1068 = vadd.f32 0.0, %v1067
      %v1069 = vpop.f32.mrf.mxu0
      %1070 = vmatprep.mubr.bf16.mxu0 0
      %1071 = vmatmul.mubr.bf16.gmra.mxu0 %v1013
      %v1072 = vpop.f32.mrf.mxu0
      %v1073 = vadd.f32 0.0, %v1072
      %v1074 = vpop.f32.mrf.mxu0
      %v1075 = vpop.f32.mrf.mxu0
      %v1076 = vadd.f32 0.0, %v1075
      %v1077 = vpop.f32.mrf.mxu0
      %1078 = vmatprep.mubr.bf16.mxu0 0
      %1079 = vmatmul.mubr.bf16.gmra.mxu0 %v1016
      %v1080 = vpop.f32.mrf.mxu0
      %v1081 = vadd.f32 0.0, %v1080
      %v1082 = vpop.f32.mrf.mxu0
      %v1083 = vpop.f32.mrf.mxu0
      %v1084 = vadd.f32 0.0, %v1083
      %v1085 = vpop.f32.mrf.mxu0
      %1086 = vmatprep.mubr.bf16.mxu0 0
      %1087 = vmatmul.mubr.bf16.gmra.mxu0 %v1019
      %v1088 = vpop.f32.mrf.mxu0
      %v1089 = vadd.f32 0.0, %v1088
      %v1090 = vpop.f32.mrf.mxu0
      %v1091 = vpop.f32.mrf.mxu0
      %v1092 = vadd.f32 0.0, %v1091
      %v1093 = vpop.f32.mrf.mxu0
      %1094 = vmatprep.mubr.bf16.mxu0 0
      %1095 = vmatmul.mubr.bf16.gmra.mxu0 %v1022
      %v1096 = vpop.f32.mrf.mxu0
      %v1097 = vadd.f32 0.0, %v1096
      %v1098 = vpop.f32.mrf.mxu0
      %v1099 = vpop.f32.mrf.mxu0
      %v1100 = vadd.f32 0.0, %v1099
      %v1101 = vpop.f32.mrf.mxu0
      %1102 = vmatprep.mubr.bf16.mxu0 0
      %1103 = vmatmul.mubr.bf16.gmra.mxu0 %v1025
      %v1104 = vpop.f32.mrf.mxu0
      %v1105 = vadd.f32 0.0, %v1104
      %v1106 = vpop.f32.mrf.mxu0
      %v1107 = vpop.f32.mrf.mxu0
      %v1108 = vpop.f32.mrf.mxu0
      %1109 = vdwg.mxu0
      %v1110 = vadd.f32 %v990, %v1065
      %v1111 = vadd.f32 %v991, %v1068
      %v1112 = vadd.f32 %v992, %v1073
      %v1113 = vadd.f32 %v993, %v1076
      %v1114 = vadd.f32 %v994, %v1081
      %v1115 = vadd.f32 %v995, %v1084
      %v1116 = vadd.f32 %v996, %v1089
      %v1117 = vadd.f32 %v997, %v1092
      %v1118 = vadd.f32 %v998, %v1097
      %v1119 = vadd.f32 %v999, %v1100
      %v1120 = vadd.f32 %v1000, %v1105
      %v1121 = vld [vmem:[#allocation2 + $0x8] sm:$0xf]
      %v1122 = vld [vmem:[#allocation2 + $0xc] sm:$0xf]
      %v1123 = vld [vmem:[#allocation2 + $0x10] sm:$0xf]
      %v1124 = vld [vmem:[#allocation2 + $0x14] sm:$0xf]
      %v1125 = vld [vmem:[#allocation2 + $0x18] sm:$0xf]
      %v1126 = vld [vmem:[#allocation2 + $0x1c] sm:$0xf]
      %v1127 = vld [vmem:[#allocation2 + $0x20] sm:$0xf]
      %v1128 = vld [vmem:[#allocation2 + $0x24] sm:$0xf]
      %v1129 = vld [vmem:[#allocation2 + $0x28] sm:$0xf]
      %v1130 = vld [vmem:[#allocation2 + $0x2c] sm:$0xf]
      %v1131 = vld [vmem:[#allocation2 + $0x30] sm:$0xf]
      %v1132 = vld [vmem:[#allocation2 + $0x34] sm:$0x1]
      %s1133 = scalar_lea.vmem %s1, 10
      %v1134 = vld [vmem:[%s1133] sm:$0x3]
      %v1147 = vunpack.c.l.b16 %v1121
      %v1148 = vunpack.c.l.b16 %v1122
      %v1149 = vunpack.c.l.b16 %v1123
      %v1150 = vunpack.c.l.b16 %v1124
      %v1151 = vunpack.c.l.b16 %v1125
      %v1152 = vunpack.c.l.b16 %v1126
      %v1153 = vunpack.c.l.b16 %v1127
      %v1154 = vunpack.c.l.b16 %v1128
      %v1155 = vunpack.c.l.b16 %v1129
      %v1156 = vunpack.c.l.b16 %v1130
      %v1157 = vunpack.c.l.b16 %v1131
      %v1158 = vunpack.c.l.b16 %v1132
      %v1159 = vpack.c.b16 %v1148, %v1147
      %v1160 = vpack.c.b16 %v1150, %v1149
      %v1161 = vpack.c.b16 %v1152, %v1151
      %v1162 = vpack.c.b16 %v1154, %v1153
      %v1163 = vpack.c.b16 %v1156, %v1155
      %v1164 = vpack.c.b16 %v1158, %v1157
      %vm1165 = vsmask.f32 7424
      %v1167 = vshrl.u32 %v1159, 16
      %v1169 = vshll.u32 %v1159, 16
      %v1171 = vrot.slane %v1169, 1
      %v1172 = vor.u32 %v1167, %v1171
      %v1174 = vshll.u32 %v1160, 16
      %v1176 = vrot.slane %v1174, 1
      %v1177 = vsel %vm1165, %v1172, %v1176
      %v1178 = vshrl.u32 %v1160, 16
      %v1180 = vor.u32 %v1178, %v1176
      %v1182 = vshll.u32 %v1161, 16
      %v1184 = vrot.slane %v1182, 1
      %v1185 = vsel %vm1165, %v1180, %v1184
      %v1186 = vshrl.u32 %v1161, 16
      %v1188 = vor.u32 %v1186, %v1184
      %v1190 = vshll.u32 %v1162, 16
      %v1192 = vrot.slane %v1190, 1
      %v1193 = vsel %vm1165, %v1188, %v1192
      %v1194 = vshrl.u32 %v1162, 16
      %v1196 = vor.u32 %v1194, %v1192
      %v1198 = vshll.u32 %v1163, 16
      %v1200 = vrot.slane %v1198, 1
      %v1201 = vsel %vm1165, %v1196, %v1200
      %v1202 = vshrl.u32 %v1163, 16
      %v1204 = vor.u32 %v1202, %v1200
      %v1206 = vshll.u32 %v1164, 16
      %v1208 = vrot.slane %v1206, 1
      %v1209 = vsel %vm1165, %v1204, %v1208
      %v1210 = vshrl.u32 %v1164, 16
      %v1212 = vor.u32 %v1210, %v1208
      %v1214 = vsel %vm453, %v1177, 0
      %v1217 = vsel %vm453, %v1185, 0
      %v1220 = vsel %vm453, %v1193, 0
      %v1223 = vsel %vm453, %v1201, 0
      %v1226 = vsel %vm453, %v1209, 0
      %v1229 = vsel %vm453, %v1212, 0
      %v1232 = vsel %vm472, %v1134, 0
      %1234 = vmatprep.subr.bf16.mxu0 0
      %1235 = vmatpush1.bf16.msra.mxu0 0
      %1236 = vmatprep.subr.bf16.mxu0 0
      %1237 = vmatpush1.bf16.msra.mxu0 0
      %1238 = vmatprep.subr.bf16.mxu0 0
      %1239 = vmatpush1.bf16.msra.mxu0 0
      %1240 = vmatprep.subr.bf16.mxu0 0
      %1241 = vmatpush1.bf16.msra.mxu0 0
      %1242 = vmatprep.subr.bf16.mxu0 0
      %1243 = vmatpush1.bf16.msra.mxu0 0
      %1244 = vmatprep.subr.bf16.mxu0 0
      %1245 = vmatpush1.bf16.msra.mxu0 0
      %1246 = vmatprep.subr.bf16.mxu0 0
      %1247 = vmatpush1.bf16.msra.mxu0 0
      %1248 = vmatprep.subr.bf16.mxu0 0
      %1249 = vmatpush1.bf16.msra.mxu0 %v1232
      %1250 = vmatprep.subr.bf16.mxu0 0
      %1251 = vmatpush2.bf16.msra.mxu0 0
      %1252 = vmatprep.subr.bf16.mxu0 0
      %1253 = vmatpush2.bf16.msra.mxu0 0
      %1254 = vmatprep.subr.bf16.mxu0 0
      %1255 = vmatpush2.bf16.msra.mxu0 0
      %1256 = vmatprep.subr.bf16.mxu0 0
      %1257 = vmatpush2.bf16.msra.mxu0 0
      %1258 = vmatprep.subr.bf16.mxu0 0
      %1259 = vmatpush2.bf16.msra.mxu0 0
      %1260 = vmatprep.subr.bf16.mxu0 0
      %1261 = vmatpush2.bf16.msra.mxu0 0
      %1262 = vmatprep.subr.bf16.mxu0 0
      %1263 = vmatpush2.bf16.msra.mxu0 0
      %1264 = vmatprep.subr.bf16.mxu0 0
      %1265 = vmatpush2.bf16.msra.mxu0 0
      %1266 = vmatprep.mubr.bf16.mxu0 0
      %1267 = vmatmul.mubr.bf16.gmra.mxu0 %v1214
      %v1268 = vpop.f32.mrf.mxu0
      %v1269 = vadd.f32 0.0, %v1268
      %v1270 = vpop.f32.mrf.mxu0
      %v1271 = vpop.f32.mrf.mxu0
      %v1272 = vadd.f32 0.0, %v1271
      %v1273 = vpop.f32.mrf.mxu0
      %1274 = vmatprep.mubr.bf16.mxu0 0
      %1275 = vmatmul.mubr.bf16.gmra.mxu0 %v1217
      %v1276 = vpop.f32.mrf.mxu0
      %v1277 = vadd.f32 0.0, %v1276
      %v1278 = vpop.f32.mrf.mxu0
      %v1279 = vpop.f32.mrf.mxu0
      %v1280 = vadd.f32 0.0, %v1279
      %v1281 = vpop.f32.mrf.mxu0
      %1282 = vmatprep.mubr.bf16.mxu0 0
      %1283 = vmatmul.mubr.bf16.gmra.mxu0 %v1220
      %v1284 = vpop.f32.mrf.mxu0
      %v1285 = vadd.f32 0.0, %v1284
      %v1286 = vpop.f32.mrf.mxu0
      %v1287 = vpop.f32.mrf.mxu0
      %v1288 = vadd.f32 0.0, %v1287
      %v1289 = vpop.f32.mrf.mxu0
      %1290 = vmatprep.mubr.bf16.mxu0 0
      %1291 = vmatmul.mubr.bf16.gmra.mxu0 %v1223
      %v1292 = vpop.f32.mrf.mxu0
      %v1293 = vadd.f32 0.0, %v1292
      %v1294 = vpop.f32.mrf.mxu0
      %v1295 = vpop.f32.mrf.mxu0
      %v1296 = vadd.f32 0.0, %v1295
      %v1297 = vpop.f32.mrf.mxu0
      %1298 = vmatprep.mubr.bf16.mxu0 0
      %1299 = vmatmul.mubr.bf16.gmra.mxu0 %v1226
      %v1300 = vpop.f32.mrf.mxu0
      %v1301 = vadd.f32 0.0, %v1300
      %v1302 = vpop.f32.mrf.mxu0
      %v1303 = vpop.f32.mrf.mxu0
      %v1304 = vadd.f32 0.0, %v1303
      %v1305 = vpop.f32.mrf.mxu0
      %1306 = vmatprep.mubr.bf16.mxu0 0
      %1307 = vmatmul.mubr.bf16.gmra.mxu0 %v1229
      %v1308 = vpop.f32.mrf.mxu0
      %v1309 = vadd.f32 0.0, %v1308
      %v1310 = vpop.f32.mrf.mxu0
      %v1311 = vpop.f32.mrf.mxu0
      %v1312 = vpop.f32.mrf.mxu0
      %1313 = vdwg.mxu0
      %v1314 = vadd.f32 %v1110, %v1269
      %v1315 = vadd.f32 %v1111, %v1272
      %v1316 = vadd.f32 %v1112, %v1277
      %v1317 = vadd.f32 %v1113, %v1280
      %v1318 = vadd.f32 %v1114, %v1285
      %v1319 = vadd.f32 %v1115, %v1288
      %v1320 = vadd.f32 %v1116, %v1293
      %v1321 = vadd.f32 %v1117, %v1296
      %v1322 = vadd.f32 %v1118, %v1301
      %v1323 = vadd.f32 %v1119, %v1304
      %v1324 = vadd.f32 %v1120, %v1309
      %v1325 = vld [vmem:[#allocation2 + $0x34] sm:$0xf]
      %s1326 = scalar_lea.vmem %s1, 12
      %v1327 = vld [vmem:[%s1326] sm:$0x3]
      %v1329 = vunpack.c.l.b16 %v1325
      %v1330 = vpack.c.b16 %v1149, %v1148
      %v1331 = vpack.c.b16 %v1151, %v1150
      %v1332 = vpack.c.b16 %v1153, %v1152
      %v1333 = vpack.c.b16 %v1155, %v1154
      %v1334 = vpack.c.b16 %v1157, %v1156
      %v1335 = vpack.c.b16 %v1329, %v1329
      %v1337 = vsel %vm453, %v1330, 0
      %v1340 = vsel %vm453, %v1331, 0
      %v1343 = vsel %vm453, %v1332, 0
      %v1346 = vsel %vm453, %v1333, 0
      %v1349 = vsel %vm453, %v1334, 0
      %v1352 = vsel %vm453, %v1335, 0
      %v1355 = vsel %vm472, %v1327, 0
      %1357 = vmatprep.subr.bf16.mxu0 0
      %1358 = vmatpush1.bf16.msra.mxu0 0
      %1359 = vmatprep.subr.bf16.mxu0 0
      %1360 = vmatpush1.bf16.msra.mxu0 0
      %1361 = vmatprep.subr.bf16.mxu0 0
      %1362 = vmatpush1.bf16.msra.mxu0 0
      %1363 = vmatprep.subr.bf16.mxu0 0
      %1364 = vmatpush1.bf16.msra.mxu0 0
      %1365 = vmatprep.subr.bf16.mxu0 0
      %1366 = vmatpush1.bf16.msra.mxu0 0
      %1367 = vmatprep.subr.bf16.mxu0 0
      %1368 = vmatpush1.bf16.msra.mxu0 0
      %1369 = vmatprep.subr.bf16.mxu0 0
      %1370 = vmatpush1.bf16.msra.mxu0 0
      %1371 = vmatprep.subr.bf16.mxu0 0
      %1372 = vmatpush1.bf16.msra.mxu0 %v1355
      %1373 = vmatprep.subr.bf16.mxu0 0
      %1374 = vmatpush2.bf16.msra.mxu0 0
      %1375 = vmatprep.subr.bf16.mxu0 0
      %1376 = vmatpush2.bf16.msra.mxu0 0
      %1377 = vmatprep.subr.bf16.mxu0 0
      %1378 = vmatpush2.bf16.msra.mxu0 0
      %1379 = vmatprep.subr.bf16.mxu0 0
      %1380 = vmatpush2.bf16.msra.mxu0 0
      %1381 = vmatprep.subr.bf16.mxu0 0
      %1382 = vmatpush2.bf16.msra.mxu0 0
      %1383 = vmatprep.subr.bf16.mxu0 0
      %1384 = vmatpush2.bf16.msra.mxu0 0
      %1385 = vmatprep.subr.bf16.mxu0 0
      %1386 = vmatpush2.bf16.msra.mxu0 0
      %1387 = vmatprep.subr.bf16.mxu0 0
      %1388 = vmatpush2.bf16.msra.mxu0 0
      %1389 = vmatprep.mubr.bf16.mxu0 0
      %1390 = vmatmul.mubr.bf16.gmra.mxu0 %v1337
      %v1391 = vpop.f32.mrf.mxu0
      %v1392 = vadd.f32 0.0, %v1391
      %v1393 = vpop.f32.mrf.mxu0
      %v1394 = vpop.f32.mrf.mxu0
      %v1395 = vadd.f32 0.0, %v1394
      %v1396 = vpop.f32.mrf.mxu0
      %1397 = vmatprep.mubr.bf16.mxu0 0
      %1398 = vmatmul.mubr.bf16.gmra.mxu0 %v1340
      %v1399 = vpop.f32.mrf.mxu0
      %v1400 = vadd.f32 0.0, %v1399
      %v1401 = vpop.f32.mrf.mxu0
      %v1402 = vpop.f32.mrf.mxu0
      %v1403 = vadd.f32 0.0, %v1402
      %v1404 = vpop.f32.mrf.mxu0
      %1405 = vmatprep.mubr.bf16.mxu0 0
      %1406 = vmatmul.mubr.bf16.gmra.mxu0 %v1343
      %v1407 = vpop.f32.mrf.mxu0
      %v1408 = vadd.f32 0.0, %v1407
      %v1409 = vpop.f32.mrf.mxu0
      %v1410 = vpop.f32.mrf.mxu0
      %v1411 = vadd.f32 0.0, %v1410
      %v1412 = vpop.f32.mrf.mxu0
      %1413 = vmatprep.mubr.bf16.mxu0 0
      %1414 = vmatmul.mubr.bf16.gmra.mxu0 %v1346
      %v1415 = vpop.f32.mrf.mxu0
      %v1416 = vadd.f32 0.0, %v1415
      %v1417 = vpop.f32.mrf.mxu0
      %v1418 = vpop.f32.mrf.mxu0
      %v1419 = vadd.f32 0.0, %v1418
      %v1420 = vpop.f32.mrf.mxu0
      %1421 = vmatprep.mubr.bf16.mxu0 0
      %1422 = vmatmul.mubr.bf16.gmra.mxu0 %v1349
      %v1423 = vpop.f32.mrf.mxu0
      %v1424 = vadd.f32 0.0, %v1423
      %v1425 = vpop.f32.mrf.mxu0
      %v1426 = vpop.f32.mrf.mxu0
      %v1427 = vadd.f32 0.0, %v1426
      %v1428 = vpop.f32.mrf.mxu0
      %1429 = vmatprep.mubr.bf16.mxu0 0
      %1430 = vmatmul.mubr.bf16.gmra.mxu0 %v1352
      %v1431 = vpop.f32.mrf.mxu0
      %v1432 = vadd.f32 0.0, %v1431
      %v1433 = vpop.f32.mrf.mxu0
      %v1434 = vpop.f32.mrf.mxu0
      %v1435 = vpop.f32.mrf.mxu0
      %1436 = vdwg.mxu0
      %v1437 = vadd.f32 %v1314, %v1392
      %v1438 = vadd.f32 %v1315, %v1395
      %v1439 = vadd.f32 %v1316, %v1400
      %v1440 = vadd.f32 %v1317, %v1403
      %v1441 = vadd.f32 %v1318, %v1408
      %v1442 = vadd.f32 %v1319, %v1411
      %v1443 = vadd.f32 %v1320, %v1416
      %v1444 = vadd.f32 %v1321, %v1419
      %v1445 = vadd.f32 %v1322, %v1424
      %v1446 = vadd.f32 %v1323, %v1427
      %v1447 = vadd.f32 %v1324, %v1432
      %v1448 = vld [vmem:[#allocation2 + $0xc] sm:$0xf]
      %v1449 = vld [vmem:[#allocation2 + $0x10] sm:$0xf]
      %v1450 = vld [vmem:[#allocation2 + $0x14] sm:$0xf]
      %v1451 = vld [vmem:[#allocation2 + $0x18] sm:$0xf]
      %v1452 = vld [vmem:[#allocation2 + $0x1c] sm:$0xf]
      %v1453 = vld [vmem:[#allocation2 + $0x20] sm:$0xf]
      %v1454 = vld [vmem:[#allocation2 + $0x24] sm:$0xf]
      %v1455 = vld [vmem:[#allocation2 + $0x28] sm:$0xf]
      %v1456 = vld [vmem:[#allocation2 + $0x2c] sm:$0xf]
      %v1457 = vld [vmem:[#allocation2 + $0x30] sm:$0xf]
      %v1458 = vld [vmem:[#allocation2 + $0x34] sm:$0xf]
      %v1459 = vld [vmem:[#allocation2 + $0x38] sm:$0x1]
      %s1460 = scalar_lea.vmem %s1, 14
      %v1461 = vld [vmem:[%s1460] sm:$0x3]
      %v1474 = vunpack.c.l.b16 %v1448
      %v1475 = vunpack.c.l.b16 %v1449
      %v1476 = vunpack.c.l.b16 %v1450
      %v1477 = vunpack.c.l.b16 %v1451
      %v1478 = vunpack.c.l.b16 %v1452
      %v1479 = vunpack.c.l.b16 %v1453
      %v1480 = vunpack.c.l.b16 %v1454
      %v1481 = vunpack.c.l.b16 %v1455
      %v1482 = vunpack.c.l.b16 %v1456
      %v1483 = vunpack.c.l.b16 %v1457
      %v1484 = vunpack.c.l.b16 %v1458
      %v1485 = vunpack.c.l.b16 %v1459
      %v1486 = vpack.c.b16 %v1475, %v1474
      %v1487 = vpack.c.b16 %v1477, %v1476
      %v1488 = vpack.c.b16 %v1479, %v1478
      %v1489 = vpack.c.b16 %v1481, %v1480
      %v1490 = vpack.c.b16 %v1483, %v1482
      %v1491 = vpack.c.b16 %v1485, %v1484
      %v1493 = vshrl.u32 %v1486, 16
      %v1495 = vshll.u32 %v1486, 16
      %v1497 = vrot.slane %v1495, 1
      %v1498 = vor.u32 %v1493, %v1497
      %v1500 = vshll.u32 %v1487, 16
      %v1502 = vrot.slane %v1500, 1
      %v1503 = vsel %vm1165, %v1498, %v1502
      %v1504 = vshrl.u32 %v1487, 16
      %v1506 = vor.u32 %v1504, %v1502
      %v1508 = vshll.u32 %v1488, 16
      %v1510 = vrot.slane %v1508, 1
      %v1511 = vsel %vm1165, %v1506, %v1510
      %v1512 = vshrl.u32 %v1488, 16
      %v1514 = vor.u32 %v1512, %v1510
      %v1516 = vshll.u32 %v1489, 16
      %v1518 = vrot.slane %v1516, 1
      %v1519 = vsel %vm1165, %v1514, %v1518
      %v1520 = vshrl.u32 %v1489, 16
      %v1522 = vor.u32 %v1520, %v1518
      %v1524 = vshll.u32 %v1490, 16
      %v1526 = vrot.slane %v1524, 1
      %v1527 = vsel %vm1165, %v1522, %v1526
      %v1528 = vshrl.u32 %v1490, 16
      %v1530 = vor.u32 %v1528, %v1526
      %v1532 = vshll.u32 %v1491, 16
      %v1534 = vrot.slane %v1532, 1
      %v1535 = vsel %vm1165, %v1530, %v1534
      %v1536 = vshrl.u32 %v1491, 16
      %v1538 = vor.u32 %v1536, %v1534
      %v1540 = vsel %vm453, %v1503, 0
      %v1543 = vsel %vm453, %v1511, 0
      %v1546 = vsel %vm453, %v1519, 0
      %v1549 = vsel %vm453, %v1527, 0
      %v1552 = vsel %vm453, %v1535, 0
      %v1555 = vsel %vm453, %v1538, 0
      %v1558 = vsel %vm472, %v1461, 0
      %1560 = vmatprep.subr.bf16.mxu0 0
      %1561 = vmatpush1.bf16.msra.mxu0 0
      %1562 = vmatprep.subr.bf16.mxu0 0
      %1563 = vmatpush1.bf16.msra.mxu0 0
      %1564 = vmatprep.subr.bf16.mxu0 0
      %1565 = vmatpush1.bf16.msra.mxu0 0
      %1566 = vmatprep.subr.bf16.mxu0 0
      %1567 = vmatpush1.bf16.msra.mxu0 0
      %1568 = vmatprep.subr.bf16.mxu0 0
      %1569 = vmatpush1.bf16.msra.mxu0 0
      %1570 = vmatprep.subr.bf16.mxu0 0
      %1571 = vmatpush1.bf16.msra.mxu0 0
      %1572 = vmatprep.subr.bf16.mxu0 0
      %1573 = vmatpush1.bf16.msra.mxu0 0
      %1574 = vmatprep.subr.bf16.mxu0 0
      %1575 = vmatpush1.bf16.msra.mxu0 %v1558
      %1576 = vmatprep.subr.bf16.mxu0 0
      %1577 = vmatpush2.bf16.msra.mxu0 0
      %1578 = vmatprep.subr.bf16.mxu0 0
      %1579 = vmatpush2.bf16.msra.mxu0 0
      %1580 = vmatprep.subr.bf16.mxu0 0
      %1581 = vmatpush2.bf16.msra.mxu0 0
      %1582 = vmatprep.subr.bf16.mxu0 0
      %1583 = vmatpush2.bf16.msra.mxu0 0
      %1584 = vmatprep.subr.bf16.mxu0 0
      %1585 = vmatpush2.bf16.msra.mxu0 0
      %1586 = vmatprep.subr.bf16.mxu0 0
      %1587 = vmatpush2.bf16.msra.mxu0 0
      %1588 = vmatprep.subr.bf16.mxu0 0
      %1589 = vmatpush2.bf16.msra.mxu0 0
      %1590 = vmatprep.subr.bf16.mxu0 0
      %1591 = vmatpush2.bf16.msra.mxu0 0
      %1592 = vmatprep.mubr.bf16.mxu0 0
      %1593 = vmatmul.mubr.bf16.gmra.mxu0 %v1540
      %v1594 = vpop.f32.mrf.mxu0
      %v1595 = vadd.f32 0.0, %v1594
      %v1596 = vpop.f32.mrf.mxu0
      %v1597 = vpop.f32.mrf.mxu0
      %v1598 = vadd.f32 0.0, %v1597
      %v1599 = vpop.f32.mrf.mxu0
      %1600 = vmatprep.mubr.bf16.mxu0 0
      %1601 = vmatmul.mubr.bf16.gmra.mxu0 %v1543
      %v1602 = vpop.f32.mrf.mxu0
      %v1603 = vadd.f32 0.0, %v1602
      %v1604 = vpop.f32.mrf.mxu0
      %v1605 = vpop.f32.mrf.mxu0
      %v1606 = vadd.f32 0.0, %v1605
      %v1607 = vpop.f32.mrf.mxu0
      %1608 = vmatprep.mubr.bf16.mxu0 0
      %1609 = vmatmul.mubr.bf16.gmra.mxu0 %v1546
      %v1610 = vpop.f32.mrf.mxu0
      %v1611 = vadd.f32 0.0, %v1610
      %v1612 = vpop.f32.mrf.mxu0
      %v1613 = vpop.f32.mrf.mxu0
      %v1614 = vadd.f32 0.0, %v1613
      %v1615 = vpop.f32.mrf.mxu0
      %1616 = vmatprep.mubr.bf16.mxu0 0
      %1617 = vmatmul.mubr.bf16.gmra.mxu0 %v1549
      %v1618 = vpop.f32.mrf.mxu0
      %v1619 = vadd.f32 0.0, %v1618
      %v1620 = vpop.f32.mrf.mxu0
      %v1621 = vpop.f32.mrf.mxu0
      %v1622 = vadd.f32 0.0, %v1621
      %v1623 = vpop.f32.mrf.mxu0
      %1624 = vmatprep.mubr.bf16.mxu0 0
      %1625 = vmatmul.mubr.bf16.gmra.mxu0 %v1552
      %v1626 = vpop.f32.mrf.mxu0
      %v1627 = vadd.f32 0.0, %v1626
      %v1628 = vpop.f32.mrf.mxu0
      %v1629 = vpop.f32.mrf.mxu0
      %v1630 = vadd.f32 0.0, %v1629
      %v1631 = vpop.f32.mrf.mxu0
      %1632 = vmatprep.mubr.bf16.mxu0 0
      %1633 = vmatmul.mubr.bf16.gmra.mxu0 %v1555
      %v1634 = vpop.f32.mrf.mxu0
      %v1635 = vadd.f32 0.0, %v1634
      %v1636 = vpop.f32.mrf.mxu0
      %v1637 = vpop.f32.mrf.mxu0
      %v1638 = vpop.f32.mrf.mxu0
      %1639 = vdwg.mxu0
      %v1640 = vadd.f32 %v1437, %v1595
      %v1641 = vadd.f32 %v1438, %v1598
      %v1642 = vadd.f32 %v1439, %v1603
      %v1643 = vadd.f32 %v1440, %v1606
      %v1644 = vadd.f32 %v1441, %v1611
      %v1645 = vadd.f32 %v1442, %v1614
      %v1646 = vadd.f32 %v1443, %v1619
      %v1647 = vadd.f32 %v1444, %v1622
      %v1648 = vadd.f32 %v1445, %v1627
      %v1649 = vadd.f32 %v1446, %v1630
      %v1650 = vadd.f32 %v1447, %v1635
      %v1651 = vld [vmem:[#allocation2 + $0xc] sm:$0xe]
      %s1652 = scalar_lea.vmem %s1, 16
      %v1653 = vld [vmem:[%s1652] sm:$0x3]
      %v1655 = vunpack.c.l.b16 %v1651
      %v1656 = vpack.c.b16 %v1475, %v1655
      %vm1657 = vcmask 1046528
      %v1658 = vrot.slane %v1656, 1
      %v1659 = vrot.slane %v1487, 1
      %v1660 = vsel %vm1657, %v1658, %v1659
      %v1661 = vrot.slane %v1488, 1
      %v1662 = vsel %vm1657, %v1659, %v1661
      %v1663 = vrot.slane %v1489, 1
      %v1664 = vsel %vm1657, %v1661, %v1663
      %v1665 = vrot.slane %v1490, 1
      %v1666 = vsel %vm1657, %v1663, %v1665
      %v1667 = vrot.slane %v1491, 1
      %v1668 = vsel %vm1657, %v1665, %v1667
      %v1670 = vsel %vm453, %v1660, 0
      %v1673 = vsel %vm453, %v1662, 0
      %v1676 = vsel %vm453, %v1664, 0
      %v1679 = vsel %vm453, %v1666, 0
      %v1682 = vsel %vm453, %v1668, 0
      %v1685 = vsel %vm453, %v1667, 0
      %v1688 = vsel %vm472, %v1653, 0
      %1690 = vmatprep.subr.bf16.mxu0 0
      %1691 = vmatpush1.bf16.msra.mxu0 0
      %1692 = vmatprep.subr.bf16.mxu0 0
      %1693 = vmatpush1.bf16.msra.mxu0 0
      %1694 = vmatprep.subr.bf16.mxu0 0
      %1695 = vmatpush1.bf16.msra.mxu0 0
      %1696 = vmatprep.subr.bf16.mxu0 0
      %1697 = vmatpush1.bf16.msra.mxu0 0
      %1698 = vmatprep.subr.bf16.mxu0 0
      %1699 = vmatpush1.bf16.msra.mxu0 0
      %1700 = vmatprep.subr.bf16.mxu0 0
      %1701 = vmatpush1.bf16.msra.mxu0 0
      %1702 = vmatprep.subr.bf16.mxu0 0
      %1703 = vmatpush1.bf16.msra.mxu0 0
      %1704 = vmatprep.subr.bf16.mxu0 0
      %1705 = vmatpush1.bf16.msra.mxu0 %v1688
      %1706 = vmatprep.subr.bf16.mxu0 0
      %1707 = vmatpush2.bf16.msra.mxu0 0
      %1708 = vmatprep.subr.bf16.mxu0 0
      %1709 = vmatpush2.bf16.msra.mxu0 0
      %1710 = vmatprep.subr.bf16.mxu0 0
      %1711 = vmatpush2.bf16.msra.mxu0 0
      %1712 = vmatprep.subr.bf16.mxu0 0
      %1713 = vmatpush2.bf16.msra.mxu0 0
      %1714 = vmatprep.subr.bf16.mxu0 0
      %1715 = vmatpush2.bf16.msra.mxu0 0
      %1716 = vmatprep.subr.bf16.mxu0 0
      %1717 = vmatpush2.bf16.msra.mxu0 0
      %1718 = vmatprep.subr.bf16.mxu0 0
      %1719 = vmatpush2.bf16.msra.mxu0 0
      %1720 = vmatprep.subr.bf16.mxu0 0
      %1721 = vmatpush2.bf16.msra.mxu0 0
      %1722 = vmatprep.mubr.bf16.mxu0 0
      %1723 = vmatmul.mubr.bf16.gmra.mxu0 %v1670
      %v1724 = vpop.f32.mrf.mxu0
      %v1725 = vadd.f32 0.0, %v1724
      %v1726 = vpop.f32.mrf.mxu0
      %v1727 = vpop.f32.mrf.mxu0
      %v1728 = vadd.f32 0.0, %v1727
      %v1729 = vpop.f32.mrf.mxu0
      %1730 = vmatprep.mubr.bf16.mxu0 0
      %1731 = vmatmul.mubr.bf16.gmra.mxu0 %v1673
      %v1732 = vpop.f32.mrf.mxu0
      %v1733 = vadd.f32 0.0, %v1732
      %v1734 = vpop.f32.mrf.mxu0
      %v1735 = vpop.f32.mrf.mxu0
      %v1736 = vadd.f32 0.0, %v1735
      %v1737 = vpop.f32.mrf.mxu0
      %1738 = vmatprep.mubr.bf16.mxu0 0
      %1739 = vmatmul.mubr.bf16.gmra.mxu0 %v1676
      %v1740 = vpop.f32.mrf.mxu0
      %v1741 = vadd.f32 0.0, %v1740
      %v1742 = vpop.f32.mrf.mxu0
      %v1743 = vpop.f32.mrf.mxu0
      %v1744 = vadd.f32 0.0, %v1743
      %v1745 = vpop.f32.mrf.mxu0
      %1746 = vmatprep.mubr.bf16.mxu0 0
      %1747 = vmatmul.mubr.bf16.gmra.mxu0 %v1679
      %v1748 = vpop.f32.mrf.mxu0
      %v1749 = vadd.f32 0.0, %v1748
      %v1750 = vpop.f32.mrf.mxu0
      %v1751 = vpop.f32.mrf.mxu0
      %v1752 = vadd.f32 0.0, %v1751
      %v1753 = vpop.f32.mrf.mxu0
      %1754 = vmatprep.mubr.bf16.mxu0 0
      %1755 = vmatmul.mubr.bf16.gmra.mxu0 %v1682
      %v1756 = vpop.f32.mrf.mxu0
      %v1757 = vadd.f32 0.0, %v1756
      %v1758 = vpop.f32.mrf.mxu0
      %v1759 = vpop.f32.mrf.mxu0
      %v1760 = vadd.f32 0.0, %v1759
      %v1761 = vpop.f32.mrf.mxu0
      %1762 = vmatprep.mubr.bf16.mxu0 0
      %1763 = vmatmul.mubr.bf16.gmra.mxu0 %v1685
      %v1764 = vpop.f32.mrf.mxu0
      %v1765 = vadd.f32 0.0, %v1764
      %v1766 = vpop.f32.mrf.mxu0
      %v1767 = vpop.f32.mrf.mxu0
      %v1768 = vpop.f32.mrf.mxu0
      %1769 = vdwg.mxu0
      %v1770 = vadd.f32 %v1640, %v1725
      %v1771 = vadd.f32 %v1641, %v1728
      %v1772 = vadd.f32 %v1642, %v1733
      %v1773 = vadd.f32 %v1643, %v1736
      %v1774 = vadd.f32 %v1644, %v1741
      %v1775 = vadd.f32 %v1645, %v1744
      %v1776 = vadd.f32 %v1646, %v1749
      %v1777 = vadd.f32 %v1647, %v1752
      %v1778 = vadd.f32 %v1648, %v1757
      %v1779 = vadd.f32 %v1649, %v1760
      %v1780 = vadd.f32 %v1650, %v1765
      %1782 = vset.pattern.permute.xlu0 0
      %1783 = vperm.xlu0 %1782, %v209
      %v1784 = vpop.permute.xlu0 %1783
      %1787 = vset.pattern.permute.xlu0 0
      %1788 = vperm.xlu0 %1787, %v210
      %v1789 = vpop.permute.xlu0 %1788
      %1792 = vset.pattern.permute.xlu0 0
      %1793 = vperm.xlu0 %1792, %v211
      %v1794 = vpop.permute.xlu0 %1793
      %1797 = vset.pattern.permute.xlu0 0
      %1798 = vperm.xlu0 %1797, %v212
      %v1799 = vpop.permute.xlu0 %1798
      %1802 = vset.pattern.permute.xlu0 0
      %1803 = vperm.xlu0 %1802, %v213
      %v1804 = vpop.permute.xlu0 %1803
      %1807 = vset.pattern.permute.xlu0 0
      %1808 = vperm.xlu0 %1807, %v214
      %v1809 = vpop.permute.xlu0 %1808
      %1812 = vset.pattern.permute.xlu0 0
      %1813 = vperm.xlu0 %1812, %v215
      %v1814 = vpop.permute.xlu0 %1813
      %1817 = vset.pattern.permute.xlu0 0
      %1818 = vperm.xlu0 %1817, %v216
      %v1819 = vpop.permute.xlu0 %1818
      %1822 = vset.pattern.permute.xlu0 0
      %1823 = vperm.xlu0 %1822, %v217
      %v1824 = vpop.permute.xlu0 %1823
      %1827 = vset.pattern.permute.xlu0 0
      %1828 = vperm.xlu0 %1827, %v218
      %v1829 = vpop.permute.xlu0 %1828
      %1832 = vset.pattern.permute.xlu0 0
      %1833 = vperm.xlu0 %1832, %v219
      %v1834 = vpop.permute.xlu0 %1833
      %v1836 = vmul.f32 %v1770, %v1784
      %v1837 = vmul.f32 %v1771, %v1789
      %v1838 = vmul.f32 %v1772, %v1794
      %v1839 = vmul.f32 %v1773, %v1799
      %v1840 = vmul.f32 %v1774, %v1804
      %v1841 = vmul.f32 %v1775, %v1809
      %v1842 = vmul.f32 %v1776, %v1814
      %v1843 = vmul.f32 %v1777, %v1819
      %v1844 = vmul.f32 %v1778, %v1824
      %v1845 = vmul.f32 %v1779, %v1829
      %v1846 = vmul.f32 %v1780, %v1834
      %vm1847 = vcmask 64512
      %v1848 = vsel %vm1847, %v1836, 0.0
      %v1849 = vsel %vm1847, %v1837, 0.0
      %v1850 = vadd.f32 %v1848, %v1849
      %v1851 = vsel %vm1847, %v1838, 0.0
      %v1852 = vadd.f32 %v1850, %v1851
      %v1853 = vsel %vm1847, %v1839, 0.0
      %v1854 = vadd.f32 %v1852, %v1853
      %v1855 = vsel %vm1847, %v1840, 0.0
      %v1856 = vadd.f32 %v1854, %v1855
      %v1857 = vsel %vm1847, %v1841, 0.0
      %v1858 = vadd.f32 %v1856, %v1857
      %v1859 = vsel %vm1847, %v1842, 0.0
      %v1860 = vadd.f32 %v1858, %v1859
      %v1861 = vsel %vm1847, %v1843, 0.0
      %v1862 = vadd.f32 %v1860, %v1861
      %v1863 = vsel %vm1847, %v1844, 0.0
      %v1864 = vadd.f32 %v1862, %v1863
      %v1865 = vsel %vm1847, %v1845, 0.0
      %v1866 = vadd.f32 %v1864, %v1865
      %v1867 = vsel %vm1847, %v1846, 0.0
      %v1868 = vadd.f32 %v1866, %v1867
      %v1869 = vrot.slane %v1868, 4
      %v1870 = vadd.f32 %v1868, %v1869
      %v1871 = vrot.slane %v1870, 2
      %v1872 = vadd.f32 %v1870, %v1871
      %v1873 = vrot.slane %v1872, 1
      %v1874 = vadd.f32 %v1872, %v1873
      %v1875 = vmul.f32 %v1874, 0.015625
      %v1876 = vsub.f32 %v1770, %v1875
      %v1877 = vsub.f32 %v1771, %v1875
      %v1878 = vsub.f32 %v1772, %v1875
      %v1879 = vsub.f32 %v1773, %v1875
      %v1880 = vsub.f32 %v1774, %v1875
      %v1881 = vsub.f32 %v1775, %v1875
      %v1882 = vsub.f32 %v1776, %v1875
      %v1883 = vsub.f32 %v1777, %v1875
      %v1884 = vsub.f32 %v1778, %v1875
      %v1885 = vsub.f32 %v1779, %v1875
      %v1886 = vsub.f32 %v1780, %v1875
      %v1887 = vmul.f32 %v1876, %v1876
      %v1888 = vmul.f32 %v1877, %v1877
      %v1889 = vmul.f32 %v1878, %v1878
      %v1890 = vmul.f32 %v1879, %v1879
      %v1891 = vmul.f32 %v1880, %v1880
      %v1892 = vmul.f32 %v1881, %v1881
      %v1893 = vmul.f32 %v1882, %v1882
      %v1894 = vmul.f32 %v1883, %v1883
      %v1895 = vmul.f32 %v1884, %v1884
      %v1896 = vmul.f32 %v1885, %v1885
      %v1897 = vmul.f32 %v1886, %v1886
      %v1898 = vmul.f32 %v1887, %v1784
      %v1899 = vmul.f32 %v1888, %v1789
      %v1900 = vmul.f32 %v1889, %v1794
      %v1901 = vmul.f32 %v1890, %v1799
      %v1902 = vmul.f32 %v1891, %v1804
      %v1903 = vmul.f32 %v1892, %v1809
      %v1904 = vmul.f32 %v1893, %v1814
      %v1905 = vmul.f32 %v1894, %v1819
      %v1906 = vmul.f32 %v1895, %v1824
      %v1907 = vmul.f32 %v1896, %v1829
      %v1908 = vmul.f32 %v1897, %v1834
      %v1909 = vsel %vm1847, %v1898, 0.0
      %v1910 = vsel %vm1847, %v1899, 0.0
      %v1911 = vadd.f32 %v1909, %v1910
      %v1912 = vsel %vm1847, %v1900, 0.0
      %v1913 = vadd.f32 %v1911, %v1912
      %v1914 = vsel %vm1847, %v1901, 0.0
      %v1915 = vadd.f32 %v1913, %v1914
      %v1916 = vsel %vm1847, %v1902, 0.0
      %v1917 = vadd.f32 %v1915, %v1916
      %v1918 = vsel %vm1847, %v1903, 0.0
      %v1919 = vadd.f32 %v1917, %v1918
      %v1920 = vsel %vm1847, %v1904, 0.0
      %v1921 = vadd.f32 %v1919, %v1920
      %v1922 = vsel %vm1847, %v1905, 0.0
      %v1923 = vadd.f32 %v1921, %v1922
      %v1924 = vsel %vm1847, %v1906, 0.0
      %v1925 = vadd.f32 %v1923, %v1924
      %v1926 = vsel %vm1847, %v1907, 0.0
      %v1927 = vadd.f32 %v1925, %v1926
      %v1928 = vsel %vm1847, %v1908, 0.0
      %v1929 = vadd.f32 %v1927, %v1928
      %v1930 = vrot.slane %v1929, 4
      %v1931 = vadd.f32 %v1929, %v1930
      %v1932 = vrot.slane %v1931, 2
      %v1933 = vadd.f32 %v1931, %v1932
      %v1934 = vrot.slane %v1933, 1
      %v1935 = vadd.f32 %v1933, %v1934
      %v1936 = vmul.f32 %v1935, 0.015625
      %v1937 = vadd.f32 %v1936, 1e-05
      %v1938 = vrsqrt.pop %v1937
      %v1939 = vmul.f32 %v1876, %v1938
      %v1940 = vmul.f32 %v1877, %v1938
      %v1941 = vmul.f32 %v1878, %v1938
      %v1942 = vmul.f32 %v1879, %v1938
      %v1943 = vmul.f32 %v1880, %v1938
      %v1944 = vmul.f32 %v1881, %v1938
      %v1945 = vmul.f32 %v1882, %v1938
      %v1946 = vmul.f32 %v1883, %v1938
      %v1947 = vmul.f32 %v1884, %v1938
      %v1948 = vmul.f32 %v1885, %v1938
      %v1949 = vmul.f32 %v1886, %v1938
      %v1950 = vmax.f32 %v1939, 0.0
      %v1951 = vmax.f32 %v1940, 0.0
      %v1952 = vmax.f32 %v1941, 0.0
      %v1953 = vmax.f32 %v1942, 0.0
      %v1954 = vmax.f32 %v1943, 0.0
      %v1955 = vmax.f32 %v1944, 0.0
      %v1956 = vmax.f32 %v1945, 0.0
      %v1957 = vmax.f32 %v1946, 0.0
      %v1958 = vmax.f32 %v1947, 0.0
      %v1959 = vmax.f32 %v1948, 0.0
      %v1960 = vmax.f32 %v1949, 0.0
      %v1961 = vmul.f32 %v1950, %v1784
      %v1962 = vmul.f32 %v1951, %v1789
      %v1963 = vmul.f32 %v1952, %v1794
      %v1964 = vmul.f32 %v1953, %v1799
      %v1965 = vmul.f32 %v1954, %v1804
      %v1966 = vmul.f32 %v1955, %v1809
      %v1967 = vmul.f32 %v1956, %v1814
      %v1968 = vmul.f32 %v1957, %v1819
      %v1969 = vmul.f32 %v1958, %v1824
      %v1970 = vmul.f32 %v1959, %v1829
      %v1971 = vmul.f32 %v1960, %v1834
      %v1972 = vpack.c.bf16 %v1962, %v1961
      %v1973 = vpack.c.bf16 %v1964, %v1963
      %v1974 = vpack.c.bf16 %v1966, %v1965
      %v1975 = vpack.c.bf16 %v1968, %v1967
      %v1976 = vpack.c.bf16 %v1970, %v1969
      %v1977 = vpack.c.bf16 %v1971, %v1971
      %v1984 = vunpack.c.l.b16 %v1972
      %v1985 = vunpack.c.h.b16 %v1972
      %v1986 = vunpack.c.l.b16 %v1973
      %v1987 = vunpack.c.h.b16 %v1973
      %v1988 = vunpack.c.l.b16 %v1974
      %v1989 = vunpack.c.h.b16 %v1974
      %v1990 = vunpack.c.l.b16 %v1975
      %v1991 = vunpack.c.h.b16 %v1975
      %v1992 = vunpack.c.l.b16 %v1976
      %v1993 = vunpack.c.h.b16 %v1976
      %v1994 = vunpack.c.l.b16 %v1977
      %v1995 = vpack.c.b16 %v1984, %v1984
      %v1996 = vpack.c.b16 %v1985, %v1985
      %v1997 = vpack.c.b16 %v1986, %v1986
      %v1998 = vpack.c.b16 %v1987, %v1987
      %v1999 = vpack.c.b16 %v1988, %v1988
      %v2000 = vpack.c.b16 %v1989, %v1989
      %v2001 = vpack.c.b16 %v1990, %v1990
      %v2002 = vpack.c.b16 %v1991, %v1991
      %v2003 = vpack.c.b16 %v1992, %v1992
      %v2004 = vpack.c.b16 %v1993, %v1993
      %v2005 = vpack.c.b16 %v1994, %v1994
      %2017 = vst.msk [vmem:[#allocation3 + $0x8] sm:$0xf] %vm204, %v1995
      %2018 = vst.msk [vmem:[#allocation3 + $0xc] sm:$0xf] %vm204, %v1996
      %2019 = vst.msk [vmem:[#allocation3 + $0x10] sm:$0xf] %vm204, %v1997
      %2020 = vst.msk [vmem:[#allocation3 + $0x14] sm:$0xf] %vm204, %v1998
      %2021 = vst.msk [vmem:[#allocation3 + $0x18] sm:$0xf] %vm204, %v1999
      %2022 = vst.msk [vmem:[#allocation3 + $0x1c] sm:$0xf] %vm204, %v2000
      %2023 = vst.msk [vmem:[#allocation3 + $0x20] sm:$0xf] %vm204, %v2001
      %2024 = vst.msk [vmem:[#allocation3 + $0x24] sm:$0xf] %vm204, %v2002
      %2025 = vst.msk [vmem:[#allocation3 + $0x28] sm:$0xf] %vm204, %v2003
      %2026 = vst.msk [vmem:[#allocation3 + $0x2c] sm:$0xf] %vm204, %v2004
      %2027 = vst.msk [vmem:[#allocation3 + $0x30] sm:$0xf] %vm204, %v2005
      %v2028 = vld [vmem:[#allocation3] sm:$0x8]
      %v2029 = vld [vmem:[#allocation3 + $0x4] sm:$0xf]
      %v2030 = vld [vmem:[#allocation3 + $0x8] sm:$0xf]
      %v2031 = vld [vmem:[#allocation3 + $0xc] sm:$0xf]
      %v2032 = vld [vmem:[#allocation3 + $0x10] sm:$0xf]
      %v2033 = vld [vmem:[#allocation3 + $0x14] sm:$0xf]
      %v2034 = vld [vmem:[#allocation3 + $0x18] sm:$0xf]
      %v2035 = vld [vmem:[#allocation3 + $0x1c] sm:$0xf]
      %v2036 = vld [vmem:[#allocation3 + $0x20] sm:$0xf]
      %v2037 = vld [vmem:[#allocation3 + $0x24] sm:$0xf]
      %v2038 = vld [vmem:[#allocation3 + $0x28] sm:$0xf]
      %v2039 = vld [vmem:[#allocation3 + $0x2c] sm:$0x7]
      %v2040 = vld [vmem:[%s2] sm:$0xf]
      %v2041 = vld [vmem:[#allocation3 + $0x2c] sm:$0xf]
      %s2042 = scalar_lea.vmem %s2, 4
      %v2043 = vld [vmem:[%s2042] sm:$0xf]
      %v2056 = vunpack.c.l.b16 %v2028
      %v2057 = vunpack.c.l.b16 %v2029
      %v2058 = vunpack.c.l.b16 %v2030
      %v2059 = vunpack.c.l.b16 %v2031
      %v2060 = vunpack.c.l.b16 %v2032
      %v2061 = vunpack.c.l.b16 %v2033
      %v2062 = vunpack.c.l.b16 %v2034
      %v2063 = vunpack.c.l.b16 %v2035
      %v2064 = vunpack.c.l.b16 %v2036
      %v2065 = vunpack.c.l.b16 %v2037
      %v2066 = vunpack.c.l.b16 %v2038
      %v2067 = vunpack.c.l.b16 %v2041
      %v2068 = vpack.c.b16 %v2057, %v2056
      %v2069 = vpack.c.b16 %v2059, %v2058
      %v2070 = vpack.c.b16 %v2061, %v2060
      %v2071 = vpack.c.b16 %v2063, %v2062
      %v2072 = vpack.c.b16 %v2065, %v2064
      %v2073 = vpack.c.b16 %v2067, %v2066
      %v2075 = vshrl.u32 %v2068, 16
      %v2077 = vrot.slane %v2075, 3
      %v2078 = vshll.u32 %v2068, 16
      %v2080 = vrot.slane %v2078, 4
      %v2081 = vor.u32 %v2077, %v2080
      %v2083 = vshrl.u32 %v2069, 16
      %v2085 = vrot.slane %v2083, 3
      %v2086 = vshll.u32 %v2069, 16
      %v2088 = vrot.slane %v2086, 4
      %v2089 = vor.u32 %v2085, %v2088
      %v2090 = vsel %vm399, %v2081, %v2089
      %v2092 = vshrl.u32 %v2070, 16
      %v2094 = vrot.slane %v2092, 3
      %v2095 = vshll.u32 %v2070, 16
      %v2097 = vrot.slane %v2095, 4
      %v2098 = vor.u32 %v2094, %v2097
      %v2099 = vsel %vm399, %v2089, %v2098
      %v2101 = vshrl.u32 %v2071, 16
      %v2103 = vrot.slane %v2101, 3
      %v2104 = vshll.u32 %v2071, 16
      %v2106 = vrot.slane %v2104, 4
      %v2107 = vor.u32 %v2103, %v2106
      %v2108 = vsel %vm399, %v2098, %v2107
      %v2110 = vshrl.u32 %v2072, 16
      %v2112 = vrot.slane %v2110, 3
      %v2113 = vshll.u32 %v2072, 16
      %v2115 = vrot.slane %v2113, 4
      %v2116 = vor.u32 %v2112, %v2115
      %v2117 = vsel %vm399, %v2107, %v2116
      %v2119 = vshrl.u32 %v2073, 16
      %v2121 = vrot.slane %v2119, 3
      %v2122 = vshll.u32 %v2073, 16
      %v2124 = vrot.slane %v2122, 4
      %v2125 = vor.u32 %v2121, %v2124
      %v2126 = vsel %vm399, %v2116, %v2125
      %v2128 = vsel %vm1847, %v2090, 0
      %v2131 = vsel %vm1847, %v2099, 0
      %v2134 = vsel %vm1847, %v2108, 0
      %v2137 = vsel %vm1847, %v2117, 0
      %v2140 = vsel %vm1847, %v2126, 0
      %v2143 = vsel %vm1847, %v2125, 0
      %vm2145 = vcmask 1043456
      %v2147 = vsel %vm2145, %v2043, 0
      %2149 = vmatprep.subr.bf16.mxu0 0
      %2150 = vmatpush1.bf16.msra.mxu0 0
      %2151 = vmatprep.subr.bf16.mxu0 0
      %2152 = vmatpush1.bf16.msra.mxu0 0
      %2153 = vmatprep.subr.bf16.mxu0 0
      %2154 = vmatpush1.bf16.msra.mxu0 0
      %2155 = vmatprep.subr.bf16.mxu0 0
      %2156 = vmatpush1.bf16.msra.mxu0 0
      %2157 = vmatprep.subr.bf16.mxu0 0
      %2158 = vmatpush1.bf16.msra.mxu0 0
      %2159 = vmatprep.subr.bf16.mxu0 0
      %2160 = vmatpush1.bf16.msra.mxu0 0
      %2161 = vmatprep.subr.bf16.mxu0 0
      %2162 = vmatpush1.bf16.msra.mxu0 0
      %2163 = vmatprep.subr.bf16.mxu0 0
      %2164 = vmatpush1.bf16.msra.mxu0 %v2147
      %2165 = vmatprep.subr.bf16.mxu0 0
      %2166 = vmatpush2.bf16.msra.mxu0 0
      %2167 = vmatprep.subr.bf16.mxu0 0
      %2168 = vmatpush2.bf16.msra.mxu0 0
      %2169 = vmatprep.subr.bf16.mxu0 0
      %2170 = vmatpush2.bf16.msra.mxu0 0
      %2171 = vmatprep.subr.bf16.mxu0 0
      %2172 = vmatpush2.bf16.msra.mxu0 0
      %2173 = vmatprep.subr.bf16.mxu0 0
      %2174 = vmatpush2.bf16.msra.mxu0 0
      %2175 = vmatprep.subr.bf16.mxu0 0
      %2176 = vmatpush2.bf16.msra.mxu0 0
      %2177 = vmatprep.subr.bf16.mxu0 0
      %2178 = vmatpush2.bf16.msra.mxu0 0
      %2179 = vmatprep.subr.bf16.mxu0 0
      %2180 = vmatpush2.bf16.msra.mxu0 0
      %2181 = vmatprep.mubr.bf16.mxu0 0
      %2182 = vmatmul.mubr.bf16.gmra.mxu0 %v2128
      %v2183 = vpop.f32.mrf.mxu0
      %v2184 = vadd.f32 0.0, %v2183
      %v2185 = vpop.f32.mrf.mxu0
      %v2186 = vpop.f32.mrf.mxu0
      %v2187 = vadd.f32 0.0, %v2186
      %v2188 = vpop.f32.mrf.mxu0
      %2189 = vmatprep.mubr.bf16.mxu0 0
      %2190 = vmatmul.mubr.bf16.gmra.mxu0 %v2131
      %v2191 = vpop.f32.mrf.mxu0
      %v2192 = vadd.f32 0.0, %v2191
      %v2193 = vpop.f32.mrf.mxu0
      %v2194 = vpop.f32.mrf.mxu0
      %v2195 = vadd.f32 0.0, %v2194
      %v2196 = vpop.f32.mrf.mxu0
      %2197 = vmatprep.mubr.bf16.mxu0 0
      %2198 = vmatmul.mubr.bf16.gmra.mxu0 %v2134
      %v2199 = vpop.f32.mrf.mxu0
      %v2200 = vadd.f32 0.0, %v2199
      %v2201 = vpop.f32.mrf.mxu0
      %v2202 = vpop.f32.mrf.mxu0
      %v2203 = vadd.f32 0.0, %v2202
      %v2204 = vpop.f32.mrf.mxu0
      %2205 = vmatprep.mubr.bf16.mxu0 0
      %2206 = vmatmul.mubr.bf16.gmra.mxu0 %v2137
      %v2207 = vpop.f32.mrf.mxu0
      %v2208 = vadd.f32 0.0, %v2207
      %v2209 = vpop.f32.mrf.mxu0
      %v2210 = vpop.f32.mrf.mxu0
      %v2211 = vadd.f32 0.0, %v2210
      %v2212 = vpop.f32.mrf.mxu0
      %2213 = vmatprep.mubr.bf16.mxu0 0
      %2214 = vmatmul.mubr.bf16.gmra.mxu0 %v2140
      %v2215 = vpop.f32.mrf.mxu0
      %v2216 = vadd.f32 0.0, %v2215
      %v2217 = vpop.f32.mrf.mxu0
      %v2218 = vpop.f32.mrf.mxu0
      %v2219 = vadd.f32 0.0, %v2218
      %v2220 = vpop.f32.mrf.mxu0
      %2221 = vmatprep.mubr.bf16.mxu0 0
      %2222 = vmatmul.mubr.bf16.gmra.mxu0 %v2143
      %v2223 = vpop.f32.mrf.mxu0
      %v2224 = vadd.f32 0.0, %v2223
      %v2225 = vpop.f32.mrf.mxu0
      %v2226 = vpop.f32.mrf.mxu0
      %v2227 = vpop.f32.mrf.mxu0
      %2228 = vdwg.mxu0
      %v2230 = vunpack.c.l.b16 %v2039
      %v2231 = vpack.c.b16 %v2230, %v2066
      %v2232 = vrot.slane %v2068, 3
      %v2233 = vrot.slane %v2069, 3
      %v2234 = vsel %vm559, %v2232, %v2233
      %v2235 = vrot.slane %v2070, 3
      %v2236 = vsel %vm559, %v2233, %v2235
      %v2237 = vrot.slane %v2071, 3
      %v2238 = vsel %vm559, %v2235, %v2237
      %v2239 = vrot.slane %v2072, 3
      %v2240 = vsel %vm559, %v2237, %v2239
      %v2241 = vrot.slane %v2231, 3
      %v2242 = vsel %vm559, %v2239, %v2241
      %v2244 = vsel %vm1847, %v2234, 0
      %v2247 = vsel %vm1847, %v2236, 0
      %v2250 = vsel %vm1847, %v2238, 0
      %v2253 = vsel %vm1847, %v2240, 0
      %v2256 = vsel %vm1847, %v2242, 0
      %v2259 = vsel %vm1847, %v2241, 0
      %v2262 = vsel %vm2145, %v2040, 0
      %2264 = vmatprep.subr.bf16.mxu0 0
      %2265 = vmatpush1.bf16.msra.mxu0 0
      %2266 = vmatprep.subr.bf16.mxu0 0
      %2267 = vmatpush1.bf16.msra.mxu0 0
      %2268 = vmatprep.subr.bf16.mxu0 0
      %2269 = vmatpush1.bf16.msra.mxu0 0
      %2270 = vmatprep.subr.bf16.mxu0 0
      %2271 = vmatpush1.bf16.msra.mxu0 0
      %2272 = vmatprep.subr.bf16.mxu0 0
      %2273 = vmatpush1.bf16.msra.mxu0 0
      %2274 = vmatprep.subr.bf16.mxu0 0
      %2275 = vmatpush1.bf16.msra.mxu0 0
      %2276 = vmatprep.subr.bf16.mxu0 0
      %2277 = vmatpush1.bf16.msra.mxu0 0
      %2278 = vmatprep.subr.bf16.mxu0 0
      %2279 = vmatpush1.bf16.msra.mxu0 %v2262
      %2280 = vmatprep.subr.bf16.mxu0 0
      %2281 = vmatpush2.bf16.msra.mxu0 0
      %2282 = vmatprep.subr.bf16.mxu0 0
      %2283 = vmatpush2.bf16.msra.mxu0 0
      %2284 = vmatprep.subr.bf16.mxu0 0
      %2285 = vmatpush2.bf16.msra.mxu0 0
      %2286 = vmatprep.subr.bf16.mxu0 0
      %2287 = vmatpush2.bf16.msra.mxu0 0
      %2288 = vmatprep.subr.bf16.mxu0 0
      %2289 = vmatpush2.bf16.msra.mxu0 0
      %2290 = vmatprep.subr.bf16.mxu0 0
      %2291 = vmatpush2.bf16.msra.mxu0 0
      %2292 = vmatprep.subr.bf16.mxu0 0
      %2293 = vmatpush2.bf16.msra.mxu0 0
      %2294 = vmatprep.subr.bf16.mxu0 0
      %2295 = vmatpush2.bf16.msra.mxu0 0
      %2296 = vmatprep.mubr.bf16.mxu0 0
      %2297 = vmatmul.mubr.bf16.gmra.mxu0 %v2244
      %v2298 = vpop.f32.mrf.mxu0
      %v2299 = vadd.f32 %v2184, %v2298
      %v2300 = vpop.f32.mrf.mxu0
      %v2301 = vpop.f32.mrf.mxu0
      %v2302 = vadd.f32 %v2187, %v2301
      %v2303 = vpop.f32.mrf.mxu0
      %2304 = vmatprep.mubr.bf16.mxu0 0
      %2305 = vmatmul.mubr.bf16.gmra.mxu0 %v2247
      %v2306 = vpop.f32.mrf.mxu0
      %v2307 = vadd.f32 %v2192, %v2306
      %v2308 = vpop.f32.mrf.mxu0
      %v2309 = vpop.f32.mrf.mxu0
      %v2310 = vadd.f32 %v2195, %v2309
      %v2311 = vpop.f32.mrf.mxu0
      %2312 = vmatprep.mubr.bf16.mxu0 0
      %2313 = vmatmul.mubr.bf16.gmra.mxu0 %v2250
      %v2314 = vpop.f32.mrf.mxu0
      %v2315 = vadd.f32 %v2200, %v2314
      %v2316 = vpop.f32.mrf.mxu0
      %v2317 = vpop.f32.mrf.mxu0
      %v2318 = vadd.f32 %v2203, %v2317
      %v2319 = vpop.f32.mrf.mxu0
      %2320 = vmatprep.mubr.bf16.mxu0 0
      %2321 = vmatmul.mubr.bf16.gmra.mxu0 %v2253
      %v2322 = vpop.f32.mrf.mxu0
      %v2323 = vadd.f32 %v2208, %v2322
      %v2324 = vpop.f32.mrf.mxu0
      %v2325 = vpop.f32.mrf.mxu0
      %v2326 = vadd.f32 %v2211, %v2325
      %v2327 = vpop.f32.mrf.mxu0
      %2328 = vmatprep.mubr.bf16.mxu0 0
      %2329 = vmatmul.mubr.bf16.gmra.mxu0 %v2256
      %v2330 = vpop.f32.mrf.mxu0
      %v2331 = vadd.f32 %v2216, %v2330
      %v2332 = vpop.f32.mrf.mxu0
      %v2333 = vpop.f32.mrf.mxu0
      %v2334 = vadd.f32 %v2219, %v2333
      %v2335 = vpop.f32.mrf.mxu0
      %2336 = vmatprep.mubr.bf16.mxu0 0
      %2337 = vmatmul.mubr.bf16.gmra.mxu0 %v2259
      %v2338 = vpop.f32.mrf.mxu0
      %v2339 = vadd.f32 %v2224, %v2338
      %v2340 = vpop.f32.mrf.mxu0
      %v2341 = vpop.f32.mrf.mxu0
      %v2342 = vpop.f32.mrf.mxu0
      %2343 = vdwg.mxu0
      %s2344 = scalar_lea.vmem %s2, 8
      %v2345 = vld [vmem:[%s2344] sm:$0xf]
      %v2346 = vpack.c.b16 %v2058, %v2057
      %v2347 = vpack.c.b16 %v2060, %v2059
      %v2348 = vpack.c.b16 %v2062, %v2061
      %v2349 = vpack.c.b16 %v2064, %v2063
      %v2350 = vpack.c.b16 %v2066, %v2065
      %v2351 = vpack.c.b16 %v2067, %v2067
      %v2353 = vsel %vm1847, %v2346, 0
      %v2356 = vsel %vm1847, %v2347, 0
      %v2359 = vsel %vm1847, %v2348, 0
      %v2362 = vsel %vm1847, %v2349, 0
      %v2365 = vsel %vm1847, %v2350, 0
      %v2368 = vsel %vm1847, %v2351, 0
      %v2371 = vsel %vm2145, %v2345, 0
      %2373 = vmatprep.subr.bf16.mxu0 0
      %2374 = vmatpush1.bf16.msra.mxu0 0
      %2375 = vmatprep.subr.bf16.mxu0 0
      %2376 = vmatpush1.bf16.msra.mxu0 0
      %2377 = vmatprep.subr.bf16.mxu0 0
      %2378 = vmatpush1.bf16.msra.mxu0 0
      %2379 = vmatprep.subr.bf16.mxu0 0
      %2380 = vmatpush1.bf16.msra.mxu0 0
      %2381 = vmatprep.subr.bf16.mxu0 0
      %2382 = vmatpush1.bf16.msra.mxu0 0
      %2383 = vmatprep.subr.bf16.mxu0 0
      %2384 = vmatpush1.bf16.msra.mxu0 0
      %2385 = vmatprep.subr.bf16.mxu0 0
      %2386 = vmatpush1.bf16.msra.mxu0 0
      %2387 = vmatprep.subr.bf16.mxu0 0
      %2388 = vmatpush1.bf16.msra.mxu0 %v2371
      %2389 = vmatprep.subr.bf16.mxu0 0
      %2390 = vmatpush2.bf16.msra.mxu0 0
      %2391 = vmatprep.subr.bf16.mxu0 0
      %2392 = vmatpush2.bf16.msra.mxu0 0
      %2393 = vmatprep.subr.bf16.mxu0 0
      %2394 = vmatpush2.bf16.msra.mxu0 0
      %2395 = vmatprep.subr.bf16.mxu0 0
      %2396 = vmatpush2.bf16.msra.mxu0 0
      %2397 = vmatprep.subr.bf16.mxu0 0
      %2398 = vmatpush2.bf16.msra.mxu0 0
      %2399 = vmatprep.subr.bf16.mxu0 0
      %2400 = vmatpush2.bf16.msra.mxu0 0
      %2401 = vmatprep.subr.bf16.mxu0 0
      %2402 = vmatpush2.bf16.msra.mxu0 0
      %2403 = vmatprep.subr.bf16.mxu0 0
      %2404 = vmatpush2.bf16.msra.mxu0 0
      %2405 = vmatprep.mubr.bf16.mxu0 0
      %2406 = vmatmul.mubr.bf16.gmra.mxu0 %v2353
      %v2407 = vpop.f32.mrf.mxu0
      %v2408 = vadd.f32 0.0, %v2407
      %v2409 = vpop.f32.mrf.mxu0
      %v2410 = vpop.f32.mrf.mxu0
      %v2411 = vadd.f32 0.0, %v2410
      %v2412 = vpop.f32.mrf.mxu0
      %2413 = vmatprep.mubr.bf16.mxu0 0
      %2414 = vmatmul.mubr.bf16.gmra.mxu0 %v2356
      %v2415 = vpop.f32.mrf.mxu0
      %v2416 = vadd.f32 0.0, %v2415
      %v2417 = vpop.f32.mrf.mxu0
      %v2418 = vpop.f32.mrf.mxu0
      %v2419 = vadd.f32 0.0, %v2418
      %v2420 = vpop.f32.mrf.mxu0
      %2421 = vmatprep.mubr.bf16.mxu0 0
      %2422 = vmatmul.mubr.bf16.gmra.mxu0 %v2359
      %v2423 = vpop.f32.mrf.mxu0
      %v2424 = vadd.f32 0.0, %v2423
      %v2425 = vpop.f32.mrf.mxu0
      %v2426 = vpop.f32.mrf.mxu0
      %v2427 = vadd.f32 0.0, %v2426
      %v2428 = vpop.f32.mrf.mxu0
      %2429 = vmatprep.mubr.bf16.mxu0 0
      %2430 = vmatmul.mubr.bf16.gmra.mxu0 %v2362
      %v2431 = vpop.f32.mrf.mxu0
      %v2432 = vadd.f32 0.0, %v2431
      %v2433 = vpop.f32.mrf.mxu0
      %v2434 = vpop.f32.mrf.mxu0
      %v2435 = vadd.f32 0.0, %v2434
      %v2436 = vpop.f32.mrf.mxu0
      %2437 = vmatprep.mubr.bf16.mxu0 0
      %2438 = vmatmul.mubr.bf16.gmra.mxu0 %v2365
      %v2439 = vpop.f32.mrf.mxu0
      %v2440 = vadd.f32 0.0, %v2439
      %v2441 = vpop.f32.mrf.mxu0
      %v2442 = vpop.f32.mrf.mxu0
      %v2443 = vadd.f32 0.0, %v2442
      %v2444 = vpop.f32.mrf.mxu0
      %2445 = vmatprep.mubr.bf16.mxu0 0
      %2446 = vmatmul.mubr.bf16.gmra.mxu0 %v2368
      %v2447 = vpop.f32.mrf.mxu0
      %v2448 = vadd.f32 0.0, %v2447
      %v2449 = vpop.f32.mrf.mxu0
      %v2450 = vpop.f32.mrf.mxu0
      %v2451 = vpop.f32.mrf.mxu0
      %2452 = vdwg.mxu0
      %v2453 = vadd.f32 %v2299, %v2408
      %v2454 = vadd.f32 %v2302, %v2411
      %v2455 = vadd.f32 %v2307, %v2416
      %v2456 = vadd.f32 %v2310, %v2419
      %v2457 = vadd.f32 %v2315, %v2424
      %v2458 = vadd.f32 %v2318, %v2427
      %v2459 = vadd.f32 %v2323, %v2432
      %v2460 = vadd.f32 %v2326, %v2435
      %v2461 = vadd.f32 %v2331, %v2440
      %v2462 = vadd.f32 %v2334, %v2443
      %v2463 = vadd.f32 %v2339, %v2448
      %v2464 = vld [vmem:[#allocation3 + $0x4] sm:$0x8]
      %v2465 = vld [vmem:[#allocation3 + $0x8] sm:$0xf]
      %v2466 = vld [vmem:[#allocation3 + $0xc] sm:$0xf]
      %v2467 = vld [vmem:[#allocation3 + $0x10] sm:$0xf]
      %v2468 = vld [vmem:[#allocation3 + $0x14] sm:$0xf]
      %v2469 = vld [vmem:[#allocation3 + $0x18] sm:$0xf]
      %v2470 = vld [vmem:[#allocation3 + $0x1c] sm:$0xf]
      %v2471 = vld [vmem:[#allocation3 + $0x20] sm:$0xf]
      %v2472 = vld [vmem:[#allocation3 + $0x24] sm:$0xf]
      %v2473 = vld [vmem:[#allocation3 + $0x28] sm:$0xf]
      %v2474 = vld [vmem:[#allocation3 + $0x2c] sm:$0xf]
      %v2475 = vld [vmem:[#allocation3 + $0x30] sm:$0xf]
      %s2476 = scalar_lea.vmem %s2, 12
      %v2477 = vld [vmem:[%s2476] sm:$0xf]
      %v2490 = vunpack.c.l.b16 %v2464
      %v2491 = vunpack.c.l.b16 %v2465
      %v2492 = vunpack.c.l.b16 %v2466
      %v2493 = vunpack.c.l.b16 %v2467
      %v2494 = vunpack.c.l.b16 %v2468
      %v2495 = vunpack.c.l.b16 %v2469
      %v2496 = vunpack.c.l.b16 %v2470
      %v2497 = vunpack.c.l.b16 %v2471
      %v2498 = vunpack.c.l.b16 %v2472
      %v2499 = vunpack.c.l.b16 %v2473
      %v2500 = vunpack.c.l.b16 %v2474
      %v2501 = vunpack.c.l.b16 %v2475
      %v2502 = vpack.c.b16 %v2491, %v2490
      %v2503 = vpack.c.b16 %v2493, %v2492
      %v2504 = vpack.c.b16 %v2495, %v2494
      %v2505 = vpack.c.b16 %v2497, %v2496
      %v2506 = vpack.c.b16 %v2499, %v2498
      %v2507 = vpack.c.b16 %v2501, %v2500
      %v2509 = vshrl.u32 %v2502, 16
      %v2511 = vrot.slane %v2509, 3
      %v2512 = vshll.u32 %v2502, 16
      %v2514 = vrot.slane %v2512, 4
      %v2515 = vor.u32 %v2511, %v2514
      %v2517 = vshrl.u32 %v2503, 16
      %v2519 = vrot.slane %v2517, 3
      %v2520 = vshll.u32 %v2503, 16
      %v2522 = vrot.slane %v2520, 4
      %v2523 = vor.u32 %v2519, %v2522
      %v2524 = vsel %vm399, %v2515, %v2523
      %v2526 = vshrl.u32 %v2504, 16
      %v2528 = vrot.slane %v2526, 3
      %v2529 = vshll.u32 %v2504, 16
      %v2531 = vrot.slane %v2529, 4
      %v2532 = vor.u32 %v2528, %v2531
      %v2533 = vsel %vm399, %v2523, %v2532
      %v2535 = vshrl.u32 %v2505, 16
      %v2537 = vrot.slane %v2535, 3
      %v2538 = vshll.u32 %v2505, 16
      %v2540 = vrot.slane %v2538, 4
      %v2541 = vor.u32 %v2537, %v2540
      %v2542 = vsel %vm399, %v2532, %v2541
      %v2544 = vshrl.u32 %v2506, 16
      %v2546 = vrot.slane %v2544, 3
      %v2547 = vshll.u32 %v2506, 16
      %v2549 = vrot.slane %v2547, 4
      %v2550 = vor.u32 %v2546, %v2549
      %v2551 = vsel %vm399, %v2541, %v2550
      %v2553 = vshrl.u32 %v2507, 16
      %v2555 = vrot.slane %v2553, 3
      %v2556 = vshll.u32 %v2507, 16
      %v2558 = vrot.slane %v2556, 4
      %v2559 = vor.u32 %v2555, %v2558
      %v2560 = vsel %vm399, %v2550, %v2559
      %v2562 = vsel %vm1847, %v2524, 0
      %v2565 = vsel %vm1847, %v2533, 0
      %v2568 = vsel %vm1847, %v2542, 0
      %v2571 = vsel %vm1847, %v2551, 0
      %v2574 = vsel %vm1847, %v2560, 0
      %v2577 = vsel %vm1847, %v2559, 0
      %v2580 = vsel %vm2145, %v2477, 0
      %2582 = vmatprep.subr.bf16.mxu0 0
      %2583 = vmatpush1.bf16.msra.mxu0 0
      %2584 = vmatprep.subr.bf16.mxu0 0
      %2585 = vmatpush1.bf16.msra.mxu0 0
      %2586 = vmatprep.subr.bf16.mxu0 0
      %2587 = vmatpush1.bf16.msra.mxu0 0
      %2588 = vmatprep.subr.bf16.mxu0 0
      %2589 = vmatpush1.bf16.msra.mxu0 0
      %2590 = vmatprep.subr.bf16.mxu0 0
      %2591 = vmatpush1.bf16.msra.mxu0 0
      %2592 = vmatprep.subr.bf16.mxu0 0
      %2593 = vmatpush1.bf16.msra.mxu0 0
      %2594 = vmatprep.subr.bf16.mxu0 0
      %2595 = vmatpush1.bf16.msra.mxu0 0
      %2596 = vmatprep.subr.bf16.mxu0 0
      %2597 = vmatpush1.bf16.msra.mxu0 %v2580
      %2598 = vmatprep.subr.bf16.mxu0 0
      %2599 = vmatpush2.bf16.msra.mxu0 0
      %2600 = vmatprep.subr.bf16.mxu0 0
      %2601 = vmatpush2.bf16.msra.mxu0 0
      %2602 = vmatprep.subr.bf16.mxu0 0
      %2603 = vmatpush2.bf16.msra.mxu0 0
      %2604 = vmatprep.subr.bf16.mxu0 0
      %2605 = vmatpush2.bf16.msra.mxu0 0
      %2606 = vmatprep.subr.bf16.mxu0 0
      %2607 = vmatpush2.bf16.msra.mxu0 0
      %2608 = vmatprep.subr.bf16.mxu0 0
      %2609 = vmatpush2.bf16.msra.mxu0 0
      %2610 = vmatprep.subr.bf16.mxu0 0
      %2611 = vmatpush2.bf16.msra.mxu0 0
      %2612 = vmatprep.subr.bf16.mxu0 0
      %2613 = vmatpush2.bf16.msra.mxu0 0
      %2614 = vmatprep.mubr.bf16.mxu0 0
      %2615 = vmatmul.mubr.bf16.gmra.mxu0 %v2562
      %v2616 = vpop.f32.mrf.mxu0
      %v2617 = vadd.f32 0.0, %v2616
      %v2618 = vpop.f32.mrf.mxu0
      %v2619 = vpop.f32.mrf.mxu0
      %v2620 = vadd.f32 0.0, %v2619
      %v2621 = vpop.f32.mrf.mxu0
      %2622 = vmatprep.mubr.bf16.mxu0 0
      %2623 = vmatmul.mubr.bf16.gmra.mxu0 %v2565
      %v2624 = vpop.f32.mrf.mxu0
      %v2625 = vadd.f32 0.0, %v2624
      %v2626 = vpop.f32.mrf.mxu0
      %v2627 = vpop.f32.mrf.mxu0
      %v2628 = vadd.f32 0.0, %v2627
      %v2629 = vpop.f32.mrf.mxu0
      %2630 = vmatprep.mubr.bf16.mxu0 0
      %2631 = vmatmul.mubr.bf16.gmra.mxu0 %v2568
      %v2632 = vpop.f32.mrf.mxu0
      %v2633 = vadd.f32 0.0, %v2632
      %v2634 = vpop.f32.mrf.mxu0
      %v2635 = vpop.f32.mrf.mxu0
      %v2636 = vadd.f32 0.0, %v2635
      %v2637 = vpop.f32.mrf.mxu0
      %2638 = vmatprep.mubr.bf16.mxu0 0
      %2639 = vmatmul.mubr.bf16.gmra.mxu0 %v2571
      %v2640 = vpop.f32.mrf.mxu0
      %v2641 = vadd.f32 0.0, %v2640
      %v2642 = vpop.f32.mrf.mxu0
      %v2643 = vpop.f32.mrf.mxu0
      %v2644 = vadd.f32 0.0, %v2643
      %v2645 = vpop.f32.mrf.mxu0
      %2646 = vmatprep.mubr.bf16.mxu0 0
      %2647 = vmatmul.mubr.bf16.gmra.mxu0 %v2574
      %v2648 = vpop.f32.mrf.mxu0
      %v2649 = vadd.f32 0.0, %v2648
      %v2650 = vpop.f32.mrf.mxu0
      %v2651 = vpop.f32.mrf.mxu0
      %v2652 = vadd.f32 0.0, %v2651
      %v2653 = vpop.f32.mrf.mxu0
      %2654 = vmatprep.mubr.bf16.mxu0 0
      %2655 = vmatmul.mubr.bf16.gmra.mxu0 %v2577
      %v2656 = vpop.f32.mrf.mxu0
      %v2657 = vadd.f32 0.0, %v2656
      %v2658 = vpop.f32.mrf.mxu0
      %v2659 = vpop.f32.mrf.mxu0
      %v2660 = vpop.f32.mrf.mxu0
      %2661 = vdwg.mxu0
      %v2662 = vadd.f32 %v2453, %v2617
      %v2663 = vadd.f32 %v2454, %v2620
      %v2664 = vadd.f32 %v2455, %v2625
      %v2665 = vadd.f32 %v2456, %v2628
      %v2666 = vadd.f32 %v2457, %v2633
      %v2667 = vadd.f32 %v2458, %v2636
      %v2668 = vadd.f32 %v2459, %v2641
      %v2669 = vadd.f32 %v2460, %v2644
      %v2670 = vadd.f32 %v2461, %v2649
      %v2671 = vadd.f32 %v2462, %v2652
      %v2672 = vadd.f32 %v2463, %v2657
      %s2673 = scalar_lea.vmem %s2, 16
      %v2674 = vld [vmem:[%s2673] sm:$0xf]
      %v2675 = vpack.c.b16 %v2492, %v2491
      %v2676 = vpack.c.b16 %v2494, %v2493
      %v2677 = vpack.c.b16 %v2496, %v2495
      %v2678 = vpack.c.b16 %v2498, %v2497
      %v2679 = vpack.c.b16 %v2500, %v2499
      %v2680 = vpack.c.b16 %v2501, %v2501
      %v2682 = vsel %vm1847, %v2675, 0
      %v2685 = vsel %vm1847, %v2676, 0
      %v2688 = vsel %vm1847, %v2677, 0
      %v2691 = vsel %vm1847, %v2678, 0
      %v2694 = vsel %vm1847, %v2679, 0
      %v2697 = vsel %vm1847, %v2680, 0
      %v2700 = vsel %vm2145, %v2674, 0
      %2702 = vmatprep.subr.bf16.mxu0 0
      %2703 = vmatpush1.bf16.msra.mxu0 0
      %2704 = vmatprep.subr.bf16.mxu0 0
      %2705 = vmatpush1.bf16.msra.mxu0 0
      %2706 = vmatprep.subr.bf16.mxu0 0
      %2707 = vmatpush1.bf16.msra.mxu0 0
      %2708 = vmatprep.subr.bf16.mxu0 0
      %2709 = vmatpush1.bf16.msra.mxu0 0
      %2710 = vmatprep.subr.bf16.mxu0 0
      %2711 = vmatpush1.bf16.msra.mxu0 0
      %2712 = vmatprep.subr.bf16.mxu0 0
      %2713 = vmatpush1.bf16.msra.mxu0 0
      %2714 = vmatprep.subr.bf16.mxu0 0
      %2715 = vmatpush1.bf16.msra.mxu0 0
      %2716 = vmatprep.subr.bf16.mxu0 0
      %2717 = vmatpush1.bf16.msra.mxu0 %v2700
      %2718 = vmatprep.subr.bf16.mxu0 0
      %2719 = vmatpush2.bf16.msra.mxu0 0
      %2720 = vmatprep.subr.bf16.mxu0 0
      %2721 = vmatpush2.bf16.msra.mxu0 0
      %2722 = vmatprep.subr.bf16.mxu0 0
      %2723 = vmatpush2.bf16.msra.mxu0 0
      %2724 = vmatprep.subr.bf16.mxu0 0
      %2725 = vmatpush2.bf16.msra.mxu0 0
      %2726 = vmatprep.subr.bf16.mxu0 0
      %2727 = vmatpush2.bf16.msra.mxu0 0
      %2728 = vmatprep.subr.bf16.mxu0 0
      %2729 = vmatpush2.bf16.msra.mxu0 0
      %2730 = vmatprep.subr.bf16.mxu0 0
      %2731 = vmatpush2.bf16.msra.mxu0 0
      %2732 = vmatprep.subr.bf16.mxu0 0
      %2733 = vmatpush2.bf16.msra.mxu0 0
      %2734 = vmatprep.mubr.bf16.mxu0 0
      %2735 = vmatmul.mubr.bf16.gmra.mxu0 %v2682
      %v2736 = vpop.f32.mrf.mxu0
      %v2737 = vadd.f32 0.0, %v2736
      %v2738 = vpop.f32.mrf.mxu0
      %v2739 = vpop.f32.mrf.mxu0
      %v2740 = vadd.f32 0.0, %v2739
      %v2741 = vpop.f32.mrf.mxu0
      %2742 = vmatprep.mubr.bf16.mxu0 0
      %2743 = vmatmul.mubr.bf16.gmra.mxu0 %v2685
      %v2744 = vpop.f32.mrf.mxu0
      %v2745 = vadd.f32 0.0, %v2744
      %v2746 = vpop.f32.mrf.mxu0
      %v2747 = vpop.f32.mrf.mxu0
      %v2748 = vadd.f32 0.0, %v2747
      %v2749 = vpop.f32.mrf.mxu0
      %2750 = vmatprep.mubr.bf16.mxu0 0
      %2751 = vmatmul.mubr.bf16.gmra.mxu0 %v2688
      %v2752 = vpop.f32.mrf.mxu0
      %v2753 = vadd.f32 0.0, %v2752
      %v2754 = vpop.f32.mrf.mxu0
      %v2755 = vpop.f32.mrf.mxu0
      %v2756 = vadd.f32 0.0, %v2755
      %v2757 = vpop.f32.mrf.mxu0
      %2758 = vmatprep.mubr.bf16.mxu0 0
      %2759 = vmatmul.mubr.bf16.gmra.mxu0 %v2691
      %v2760 = vpop.f32.mrf.mxu0
      %v2761 = vadd.f32 0.0, %v2760
      %v2762 = vpop.f32.mrf.mxu0
      %v2763 = vpop.f32.mrf.mxu0
      %v2764 = vadd.f32 0.0, %v2763
      %v2765 = vpop.f32.mrf.mxu0
      %2766 = vmatprep.mubr.bf16.mxu0 0
      %2767 = vmatmul.mubr.bf16.gmra.mxu0 %v2694
      %v2768 = vpop.f32.mrf.mxu0
      %v2769 = vadd.f32 0.0, %v2768
      %v2770 = vpop.f32.mrf.mxu0
      %v2771 = vpop.f32.mrf.mxu0
      %v2772 = vadd.f32 0.0, %v2771
      %v2773 = vpop.f32.mrf.mxu0
      %2774 = vmatprep.mubr.bf16.mxu0 0
      %2775 = vmatmul.mubr.bf16.gmra.mxu0 %v2697
      %v2776 = vpop.f32.mrf.mxu0
      %v2777 = vadd.f32 0.0, %v2776
      %v2778 = vpop.f32.mrf.mxu0
      %v2779 = vpop.f32.mrf.mxu0
      %v2780 = vpop.f32.mrf.mxu0
      %2781 = vdwg.mxu0
      %v2782 = vadd.f32 %v2662, %v2737
      %v2783 = vadd.f32 %v2663, %v2740
      %v2784 = vadd.f32 %v2664, %v2745
      %v2785 = vadd.f32 %v2665, %v2748
      %v2786 = vadd.f32 %v2666, %v2753
      %v2787 = vadd.f32 %v2667, %v2756
      %v2788 = vadd.f32 %v2668, %v2761
      %v2789 = vadd.f32 %v2669, %v2764
      %v2790 = vadd.f32 %v2670, %v2769
      %v2791 = vadd.f32 %v2671, %v2772
      %v2792 = vadd.f32 %v2672, %v2777
      %v2793 = vld [vmem:[#allocation3 + $0x8] sm:$0xf]
      %v2794 = vld [vmem:[#allocation3 + $0xc] sm:$0xf]
      %v2795 = vld [vmem:[#allocation3 + $0x10] sm:$0xf]
      %v2796 = vld [vmem:[#allocation3 + $0x14] sm:$0xf]
      %v2797 = vld [vmem:[#allocation3 + $0x18] sm:$0xf]
      %v2798 = vld [vmem:[#allocation3 + $0x1c] sm:$0xf]
      %v2799 = vld [vmem:[#allocation3 + $0x20] sm:$0xf]
      %v2800 = vld [vmem:[#allocation3 + $0x24] sm:$0xf]
      %v2801 = vld [vmem:[#allocation3 + $0x28] sm:$0xf]
      %v2802 = vld [vmem:[#allocation3 + $0x2c] sm:$0xf]
      %v2803 = vld [vmem:[#allocation3 + $0x30] sm:$0xf]
      %v2804 = vld [vmem:[#allocation3 + $0x34] sm:$0x1]
      %s2805 = scalar_lea.vmem %s2, 20
      %v2806 = vld [vmem:[%s2805] sm:$0xf]
      %v2819 = vunpack.c.l.b16 %v2793
      %v2820 = vunpack.c.l.b16 %v2794
      %v2821 = vunpack.c.l.b16 %v2795
      %v2822 = vunpack.c.l.b16 %v2796
      %v2823 = vunpack.c.l.b16 %v2797
      %v2824 = vunpack.c.l.b16 %v2798
      %v2825 = vunpack.c.l.b16 %v2799
      %v2826 = vunpack.c.l.b16 %v2800
      %v2827 = vunpack.c.l.b16 %v2801
      %v2828 = vunpack.c.l.b16 %v2802
      %v2829 = vunpack.c.l.b16 %v2803
      %v2830 = vunpack.c.l.b16 %v2804
      %v2831 = vpack.c.b16 %v2820, %v2819
      %v2832 = vpack.c.b16 %v2822, %v2821
      %v2833 = vpack.c.b16 %v2824, %v2823
      %v2834 = vpack.c.b16 %v2826, %v2825
      %v2835 = vpack.c.b16 %v2828, %v2827
      %v2836 = vpack.c.b16 %v2830, %v2829
      %v2838 = vshrl.u32 %v2831, 16
      %v2840 = vshll.u32 %v2831, 16
      %v2842 = vrot.slane %v2840, 1
      %v2843 = vor.u32 %v2838, %v2842
      %v2845 = vshll.u32 %v2832, 16
      %v2847 = vrot.slane %v2845, 1
      %v2848 = vsel %vm1165, %v2843, %v2847
      %v2849 = vshrl.u32 %v2832, 16
      %v2851 = vor.u32 %v2849, %v2847
      %v2853 = vshll.u32 %v2833, 16
      %v2855 = vrot.slane %v2853, 1
      %v2856 = vsel %vm1165, %v2851, %v2855
      %v2857 = vshrl.u32 %v2833, 16
      %v2859 = vor.u32 %v2857, %v2855
      %v2861 = vshll.u32 %v2834, 16
      %v2863 = vrot.slane %v2861, 1
      %v2864 = vsel %vm1165, %v2859, %v2863
      %v2865 = vshrl.u32 %v2834, 16
      %v2867 = vor.u32 %v2865, %v2863
      %v2869 = vshll.u32 %v2835, 16
      %v2871 = vrot.slane %v2869, 1
      %v2872 = vsel %vm1165, %v2867, %v2871
      %v2873 = vshrl.u32 %v2835, 16
      %v2875 = vor.u32 %v2873, %v2871
      %v2877 = vshll.u32 %v2836, 16
      %v2879 = vrot.slane %v2877, 1
      %v2880 = vsel %vm1165, %v2875, %v2879
      %v2881 = vshrl.u32 %v2836, 16
      %v2883 = vor.u32 %v2881, %v2879
      %v2885 = vsel %vm1847, %v2848, 0
      %v2888 = vsel %vm1847, %v2856, 0
      %v2891 = vsel %vm1847, %v2864, 0
      %v2894 = vsel %vm1847, %v2872, 0
      %v2897 = vsel %vm1847, %v2880, 0
      %v2900 = vsel %vm1847, %v2883, 0
      %v2903 = vsel %vm2145, %v2806, 0
      %2905 = vmatprep.subr.bf16.mxu0 0
      %2906 = vmatpush1.bf16.msra.mxu0 0
      %2907 = vmatprep.subr.bf16.mxu0 0
      %2908 = vmatpush1.bf16.msra.mxu0 0
      %2909 = vmatprep.subr.bf16.mxu0 0
      %2910 = vmatpush1.bf16.msra.mxu0 0
      %2911 = vmatprep.subr.bf16.mxu0 0
      %2912 = vmatpush1.bf16.msra.mxu0 0
      %2913 = vmatprep.subr.bf16.mxu0 0
      %2914 = vmatpush1.bf16.msra.mxu0 0
      %2915 = vmatprep.subr.bf16.mxu0 0
      %2916 = vmatpush1.bf16.msra.mxu0 0
      %2917 = vmatprep.subr.bf16.mxu0 0
      %2918 = vmatpush1.bf16.msra.mxu0 0
      %2919 = vmatprep.subr.bf16.mxu0 0
      %2920 = vmatpush1.bf16.msra.mxu0 %v2903
      %2921 = vmatprep.subr.bf16.mxu0 0
      %2922 = vmatpush2.bf16.msra.mxu0 0
      %2923 = vmatprep.subr.bf16.mxu0 0
      %2924 = vmatpush2.bf16.msra.mxu0 0
      %2925 = vmatprep.subr.bf16.mxu0 0
      %2926 = vmatpush2.bf16.msra.mxu0 0
      %2927 = vmatprep.subr.bf16.mxu0 0
      %2928 = vmatpush2.bf16.msra.mxu0 0
      %2929 = vmatprep.subr.bf16.mxu0 0
      %2930 = vmatpush2.bf16.msra.mxu0 0
      %2931 = vmatprep.subr.bf16.mxu0 0
      %2932 = vmatpush2.bf16.msra.mxu0 0
      %2933 = vmatprep.subr.bf16.mxu0 0
      %2934 = vmatpush2.bf16.msra.mxu0 0
      %2935 = vmatprep.subr.bf16.mxu0 0
      %2936 = vmatpush2.bf16.msra.mxu0 0
      %2937 = vmatprep.mubr.bf16.mxu0 0
      %2938 = vmatmul.mubr.bf16.gmra.mxu0 %v2885
      %v2939 = vpop.f32.mrf.mxu0
      %v2940 = vadd.f32 0.0, %v2939
      %v2941 = vpop.f32.mrf.mxu0
      %v2942 = vpop.f32.mrf.mxu0
      %v2943 = vadd.f32 0.0, %v2942
      %v2944 = vpop.f32.mrf.mxu0
      %2945 = vmatprep.mubr.bf16.mxu0 0
      %2946 = vmatmul.mubr.bf16.gmra.mxu0 %v2888
      %v2947 = vpop.f32.mrf.mxu0
      %v2948 = vadd.f32 0.0, %v2947
      %v2949 = vpop.f32.mrf.mxu0
      %v2950 = vpop.f32.mrf.mxu0
      %v2951 = vadd.f32 0.0, %v2950
      %v2952 = vpop.f32.mrf.mxu0
      %2953 = vmatprep.mubr.bf16.mxu0 0
      %2954 = vmatmul.mubr.bf16.gmra.mxu0 %v2891
      %v2955 = vpop.f32.mrf.mxu0
      %v2956 = vadd.f32 0.0, %v2955
      %v2957 = vpop.f32.mrf.mxu0
      %v2958 = vpop.f32.mrf.mxu0
      %v2959 = vadd.f32 0.0, %v2958
      %v2960 = vpop.f32.mrf.mxu0
      %2961 = vmatprep.mubr.bf16.mxu0 0
      %2962 = vmatmul.mubr.bf16.gmra.mxu0 %v2894
      %v2963 = vpop.f32.mrf.mxu0
      %v2964 = vadd.f32 0.0, %v2963
      %v2965 = vpop.f32.mrf.mxu0
      %v2966 = vpop.f32.mrf.mxu0
      %v2967 = vadd.f32 0.0, %v2966
      %v2968 = vpop.f32.mrf.mxu0
      %2969 = vmatprep.mubr.bf16.mxu0 0
      %2970 = vmatmul.mubr.bf16.gmra.mxu0 %v2897
      %v2971 = vpop.f32.mrf.mxu0
      %v2972 = vadd.f32 0.0, %v2971
      %v2973 = vpop.f32.mrf.mxu0
      %v2974 = vpop.f32.mrf.mxu0
      %v2975 = vadd.f32 0.0, %v2974
      %v2976 = vpop.f32.mrf.mxu0
      %2977 = vmatprep.mubr.bf16.mxu0 0
      %2978 = vmatmul.mubr.bf16.gmra.mxu0 %v2900
      %v2979 = vpop.f32.mrf.mxu0
      %v2980 = vadd.f32 0.0, %v2979
      %v2981 = vpop.f32.mrf.mxu0
      %v2982 = vpop.f32.mrf.mxu0
      %v2983 = vpop.f32.mrf.mxu0
      %2984 = vdwg.mxu0
      %v2985 = vadd.f32 %v2782, %v2940
      %v2986 = vadd.f32 %v2783, %v2943
      %v2987 = vadd.f32 %v2784, %v2948
      %v2988 = vadd.f32 %v2785, %v2951
      %v2989 = vadd.f32 %v2786, %v2956
      %v2990 = vadd.f32 %v2787, %v2959
      %v2991 = vadd.f32 %v2788, %v2964
      %v2992 = vadd.f32 %v2789, %v2967
      %v2993 = vadd.f32 %v2790, %v2972
      %v2994 = vadd.f32 %v2791, %v2975
      %v2995 = vadd.f32 %v2792, %v2980
      %v2996 = vld [vmem:[#allocation3 + $0x34] sm:$0xf]
      %s2997 = scalar_lea.vmem %s2, 24
      %v2998 = vld [vmem:[%s2997] sm:$0xf]
      %v3000 = vunpack.c.l.b16 %v2996
      %v3001 = vpack.c.b16 %v2821, %v2820
      %v3002 = vpack.c.b16 %v2823, %v2822
      %v3003 = vpack.c.b16 %v2825, %v2824
      %v3004 = vpack.c.b16 %v2827, %v2826
      %v3005 = vpack.c.b16 %v2829, %v2828
      %v3006 = vpack.c.b16 %v3000, %v3000
      %v3008 = vsel %vm1847, %v3001, 0
      %v3011 = vsel %vm1847, %v3002, 0
      %v3014 = vsel %vm1847, %v3003, 0
      %v3017 = vsel %vm1847, %v3004, 0
      %v3020 = vsel %vm1847, %v3005, 0
      %v3023 = vsel %vm1847, %v3006, 0
      %v3026 = vsel %vm2145, %v2998, 0
      %3028 = vmatprep.subr.bf16.mxu0 0
      %3029 = vmatpush1.bf16.msra.mxu0 0
      %3030 = vmatprep.subr.bf16.mxu0 0
      %3031 = vmatpush1.bf16.msra.mxu0 0
      %3032 = vmatprep.subr.bf16.mxu0 0
      %3033 = vmatpush1.bf16.msra.mxu0 0
      %3034 = vmatprep.subr.bf16.mxu0 0
      %3035 = vmatpush1.bf16.msra.mxu0 0
      %3036 = vmatprep.subr.bf16.mxu0 0
      %3037 = vmatpush1.bf16.msra.mxu0 0
      %3038 = vmatprep.subr.bf16.mxu0 0
      %3039 = vmatpush1.bf16.msra.mxu0 0
      %3040 = vmatprep.subr.bf16.mxu0 0
      %3041 = vmatpush1.bf16.msra.mxu0 0
      %3042 = vmatprep.subr.bf16.mxu0 0
      %3043 = vmatpush1.bf16.msra.mxu0 %v3026
      %3044 = vmatprep.subr.bf16.mxu0 0
      %3045 = vmatpush2.bf16.msra.mxu0 0
      %3046 = vmatprep.subr.bf16.mxu0 0
      %3047 = vmatpush2.bf16.msra.mxu0 0
      %3048 = vmatprep.subr.bf16.mxu0 0
      %3049 = vmatpush2.bf16.msra.mxu0 0
      %3050 = vmatprep.subr.bf16.mxu0 0
      %3051 = vmatpush2.bf16.msra.mxu0 0
      %3052 = vmatprep.subr.bf16.mxu0 0
      %3053 = vmatpush2.bf16.msra.mxu0 0
      %3054 = vmatprep.subr.bf16.mxu0 0
      %3055 = vmatpush2.bf16.msra.mxu0 0
      %3056 = vmatprep.subr.bf16.mxu0 0
      %3057 = vmatpush2.bf16.msra.mxu0 0
      %3058 = vmatprep.subr.bf16.mxu0 0
      %3059 = vmatpush2.bf16.msra.mxu0 0
      %3060 = vmatprep.mubr.bf16.mxu0 0
      %3061 = vmatmul.mubr.bf16.gmra.mxu0 %v3008
      %v3062 = vpop.f32.mrf.mxu0
      %v3063 = vadd.f32 0.0, %v3062
      %v3064 = vpop.f32.mrf.mxu0
      %v3065 = vpop.f32.mrf.mxu0
      %v3066 = vadd.f32 0.0, %v3065
      %v3067 = vpop.f32.mrf.mxu0
      %3068 = vmatprep.mubr.bf16.mxu0 0
      %3069 = vmatmul.mubr.bf16.gmra.mxu0 %v3011
      %v3070 = vpop.f32.mrf.mxu0
      %v3071 = vadd.f32 0.0, %v3070
      %v3072 = vpop.f32.mrf.mxu0
      %v3073 = vpop.f32.mrf.mxu0
      %v3074 = vadd.f32 0.0, %v3073
      %v3075 = vpop.f32.mrf.mxu0
      %3076 = vmatprep.mubr.bf16.mxu0 0
      %3077 = vmatmul.mubr.bf16.gmra.mxu0 %v3014
      %v3078 = vpop.f32.mrf.mxu0
      %v3079 = vadd.f32 0.0, %v3078
      %v3080 = vpop.f32.mrf.mxu0
      %v3081 = vpop.f32.mrf.mxu0
      %v3082 = vadd.f32 0.0, %v3081
      %v3083 = vpop.f32.mrf.mxu0
      %3084 = vmatprep.mubr.bf16.mxu0 0
      %3085 = vmatmul.mubr.bf16.gmra.mxu0 %v3017
      %v3086 = vpop.f32.mrf.mxu0
      %v3087 = vadd.f32 0.0, %v3086
      %v3088 = vpop.f32.mrf.mxu0
      %v3089 = vpop.f32.mrf.mxu0
      %v3090 = vadd.f32 0.0, %v3089
      %v3091 = vpop.f32.mrf.mxu0
      %3092 = vmatprep.mubr.bf16.mxu0 0
      %3093 = vmatmul.mubr.bf16.gmra.mxu0 %v3020
      %v3094 = vpop.f32.mrf.mxu0
      %v3095 = vadd.f32 0.0, %v3094
      %v3096 = vpop.f32.mrf.mxu0
      %v3097 = vpop.f32.mrf.mxu0
      %v3098 = vadd.f32 0.0, %v3097
      %v3099 = vpop.f32.mrf.mxu0
      %3100 = vmatprep.mubr.bf16.mxu0 0
      %3101 = vmatmul.mubr.bf16.gmra.mxu0 %v3023
      %v3102 = vpop.f32.mrf.mxu0
      %v3103 = vadd.f32 0.0, %v3102
      %v3104 = vpop.f32.mrf.mxu0
      %v3105 = vpop.f32.mrf.mxu0
      %v3106 = vpop.f32.mrf.mxu0
      %3107 = vdwg.mxu0
      %v3108 = vadd.f32 %v2985, %v3063
      %v3109 = vadd.f32 %v2986, %v3066
      %v3110 = vadd.f32 %v2987, %v3071
      %v3111 = vadd.f32 %v2988, %v3074
      %v3112 = vadd.f32 %v2989, %v3079
      %v3113 = vadd.f32 %v2990, %v3082
      %v3114 = vadd.f32 %v2991, %v3087
      %v3115 = vadd.f32 %v2992, %v3090
      %v3116 = vadd.f32 %v2993, %v3095
      %v3117 = vadd.f32 %v2994, %v3098
      %v3118 = vadd.f32 %v2995, %v3103
      %v3119 = vld [vmem:[#allocation3 + $0xc] sm:$0xf]
      %v3120 = vld [vmem:[#allocation3 + $0x10] sm:$0xf]
      %v3121 = vld [vmem:[#allocation3 + $0x14] sm:$0xf]
      %v3122 = vld [vmem:[#allocation3 + $0x18] sm:$0xf]
      %v3123 = vld [vmem:[#allocation3 + $0x1c] sm:$0xf]
      %v3124 = vld [vmem:[#allocation3 + $0x20] sm:$0xf]
      %v3125 = vld [vmem:[#allocation3 + $0x24] sm:$0xf]
      %v3126 = vld [vmem:[#allocation3 + $0x28] sm:$0xf]
      %v3127 = vld [vmem:[#allocation3 + $0x2c] sm:$0xf]
      %v3128 = vld [vmem:[#allocation3 + $0x30] sm:$0xf]
      %v3129 = vld [vmem:[#allocation3 + $0x34] sm:$0xf]
      %v3130 = vld [vmem:[#allocation3 + $0x38] sm:$0x1]
      %s3131 = scalar_lea.vmem %s2, 28
      %v3132 = vld [vmem:[%s3131] sm:$0xf]
      %v3145 = vunpack.c.l.b16 %v3119
      %v3146 = vunpack.c.l.b16 %v3120
      %v3147 = vunpack.c.l.b16 %v3121
      %v3148 = vunpack.c.l.b16 %v3122
      %v3149 = vunpack.c.l.b16 %v3123
      %v3150 = vunpack.c.l.b16 %v3124
      %v3151 = vunpack.c.l.b16 %v3125
      %v3152 = vunpack.c.l.b16 %v3126
      %v3153 = vunpack.c.l.b16 %v3127
      %v3154 = vunpack.c.l.b16 %v3128
      %v3155 = vunpack.c.l.b16 %v3129
      %v3156 = vunpack.c.l.b16 %v3130
      %v3157 = vpack.c.b16 %v3146, %v3145
      %v3158 = vpack.c.b16 %v3148, %v3147
      %v3159 = vpack.c.b16 %v3150, %v3149
      %v3160 = vpack.c.b16 %v3152, %v3151
      %v3161 = vpack.c.b16 %v3154, %v3153
      %v3162 = vpack.c.b16 %v3156, %v3155
      %v3164 = vshrl.u32 %v3157, 16
      %v3166 = vshll.u32 %v3157, 16
      %v3168 = vrot.slane %v3166, 1
      %v3169 = vor.u32 %v3164, %v3168
      %v3171 = vshll.u32 %v3158, 16
      %v3173 = vrot.slane %v3171, 1
      %v3174 = vsel %vm1165, %v3169, %v3173
      %v3175 = vshrl.u32 %v3158, 16
      %v3177 = vor.u32 %v3175, %v3173
      %v3179 = vshll.u32 %v3159, 16
      %v3181 = vrot.slane %v3179, 1
      %v3182 = vsel %vm1165, %v3177, %v3181
      %v3183 = vshrl.u32 %v3159, 16
      %v3185 = vor.u32 %v3183, %v3181
      %v3187 = vshll.u32 %v3160, 16
      %v3189 = vrot.slane %v3187, 1
      %v3190 = vsel %vm1165, %v3185, %v3189
      %v3191 = vshrl.u32 %v3160, 16
      %v3193 = vor.u32 %v3191, %v3189
      %v3195 = vshll.u32 %v3161, 16
      %v3197 = vrot.slane %v3195, 1
      %v3198 = vsel %vm1165, %v3193, %v3197
      %v3199 = vshrl.u32 %v3161, 16
      %v3201 = vor.u32 %v3199, %v3197
      %v3203 = vshll.u32 %v3162, 16
      %v3205 = vrot.slane %v3203, 1
      %v3206 = vsel %vm1165, %v3201, %v3205
      %v3207 = vshrl.u32 %v3162, 16
      %v3209 = vor.u32 %v3207, %v3205
      %v3211 = vsel %vm1847, %v3174, 0
      %v3214 = vsel %vm1847, %v3182, 0
      %v3217 = vsel %vm1847, %v3190, 0
      %v3220 = vsel %vm1847, %v3198, 0
      %v3223 = vsel %vm1847, %v3206, 0
      %v3226 = vsel %vm1847, %v3209, 0
      %v3229 = vsel %vm2145, %v3132, 0
      %3231 = vmatprep.subr.bf16.mxu0 0
      %3232 = vmatpush1.bf16.msra.mxu0 0
      %3233 = vmatprep.subr.bf16.mxu0 0
      %3234 = vmatpush1.bf16.msra.mxu0 0
      %3235 = vmatprep.subr.bf16.mxu0 0
      %3236 = vmatpush1.bf16.msra.mxu0 0
      %3237 = vmatprep.subr.bf16.mxu0 0
      %3238 = vmatpush1.bf16.msra.mxu0 0
      %3239 = vmatprep.subr.bf16.mxu0 0
      %3240 = vmatpush1.bf16.msra.mxu0 0
      %3241 = vmatprep.subr.bf16.mxu0 0
      %3242 = vmatpush1.bf16.msra.mxu0 0
      %3243 = vmatprep.subr.bf16.mxu0 0
      %3244 = vmatpush1.bf16.msra.mxu0 0
      %3245 = vmatprep.subr.bf16.mxu0 0
      %3246 = vmatpush1.bf16.msra.mxu0 %v3229
      %3247 = vmatprep.subr.bf16.mxu0 0
      %3248 = vmatpush2.bf16.msra.mxu0 0
      %3249 = vmatprep.subr.bf16.mxu0 0
      %3250 = vmatpush2.bf16.msra.mxu0 0
      %3251 = vmatprep.subr.bf16.mxu0 0
      %3252 = vmatpush2.bf16.msra.mxu0 0
      %3253 = vmatprep.subr.bf16.mxu0 0
      %3254 = vmatpush2.bf16.msra.mxu0 0
      %3255 = vmatprep.subr.bf16.mxu0 0
      %3256 = vmatpush2.bf16.msra.mxu0 0
      %3257 = vmatprep.subr.bf16.mxu0 0
      %3258 = vmatpush2.bf16.msra.mxu0 0
      %3259 = vmatprep.subr.bf16.mxu0 0
      %3260 = vmatpush2.bf16.msra.mxu0 0
      %3261 = vmatprep.subr.bf16.mxu0 0
      %3262 = vmatpush2.bf16.msra.mxu0 0
      %3263 = vmatprep.mubr.bf16.mxu0 0
      %3264 = vmatmul.mubr.bf16.gmra.mxu0 %v3211
      %v3265 = vpop.f32.mrf.mxu0
      %v3266 = vadd.f32 0.0, %v3265
      %v3267 = vpop.f32.mrf.mxu0
      %v3268 = vpop.f32.mrf.mxu0
      %v3269 = vadd.f32 0.0, %v3268
      %v3270 = vpop.f32.mrf.mxu0
      %3271 = vmatprep.mubr.bf16.mxu0 0
      %3272 = vmatmul.mubr.bf16.gmra.mxu0 %v3214
      %v3273 = vpop.f32.mrf.mxu0
      %v3274 = vadd.f32 0.0, %v3273
      %v3275 = vpop.f32.mrf.mxu0
      %v3276 = vpop.f32.mrf.mxu0
      %v3277 = vadd.f32 0.0, %v3276
      %v3278 = vpop.f32.mrf.mxu0
      %3279 = vmatprep.mubr.bf16.mxu0 0
      %3280 = vmatmul.mubr.bf16.gmra.mxu0 %v3217
      %v3281 = vpop.f32.mrf.mxu0
      %v3282 = vadd.f32 0.0, %v3281
      %v3283 = vpop.f32.mrf.mxu0
      %v3284 = vpop.f32.mrf.mxu0
      %v3285 = vadd.f32 0.0, %v3284
      %v3286 = vpop.f32.mrf.mxu0
      %3287 = vmatprep.mubr.bf16.mxu0 0
      %3288 = vmatmul.mubr.bf16.gmra.mxu0 %v3220
      %v3289 = vpop.f32.mrf.mxu0
      %v3290 = vadd.f32 0.0, %v3289
      %v3291 = vpop.f32.mrf.mxu0
      %v3292 = vpop.f32.mrf.mxu0
      %v3293 = vadd.f32 0.0, %v3292
      %v3294 = vpop.f32.mrf.mxu0
      %3295 = vmatprep.mubr.bf16.mxu0 0
      %3296 = vmatmul.mubr.bf16.gmra.mxu0 %v3223
      %v3297 = vpop.f32.mrf.mxu0
      %v3298 = vadd.f32 0.0, %v3297
      %v3299 = vpop.f32.mrf.mxu0
      %v3300 = vpop.f32.mrf.mxu0
      %v3301 = vadd.f32 0.0, %v3300
      %v3302 = vpop.f32.mrf.mxu0
      %3303 = vmatprep.mubr.bf16.mxu0 0
      %3304 = vmatmul.mubr.bf16.gmra.mxu0 %v3226
      %v3305 = vpop.f32.mrf.mxu0
      %v3306 = vadd.f32 0.0, %v3305
      %v3307 = vpop.f32.mrf.mxu0
      %v3308 = vpop.f32.mrf.mxu0
      %v3309 = vpop.f32.mrf.mxu0
      %3310 = vdwg.mxu0
      %v3311 = vadd.f32 %v3108, %v3266
      %v3312 = vadd.f32 %v3109, %v3269
      %v3313 = vadd.f32 %v3110, %v3274
      %v3314 = vadd.f32 %v3111, %v3277
      %v3315 = vadd.f32 %v3112, %v3282
      %v3316 = vadd.f32 %v3113, %v3285
      %v3317 = vadd.f32 %v3114, %v3290
      %v3318 = vadd.f32 %v3115, %v3293
      %v3319 = vadd.f32 %v3116, %v3298
      %v3320 = vadd.f32 %v3117, %v3301
      %v3321 = vadd.f32 %v3118, %v3306
      %v3322 = vld [vmem:[#allocation3 + $0xc] sm:$0xe]
      %s3323 = scalar_lea.vmem %s2, 32
      %v3324 = vld [vmem:[%s3323] sm:$0xf]
      %v3326 = vunpack.c.l.b16 %v3322
      %v3327 = vpack.c.b16 %v3146, %v3326
      %v3328 = vrot.slane %v3327, 1
      %v3329 = vrot.slane %v3158, 1
      %v3330 = vsel %vm1657, %v3328, %v3329
      %v3331 = vrot.slane %v3159, 1
      %v3332 = vsel %vm1657, %v3329, %v3331
      %v3333 = vrot.slane %v3160, 1
      %v3334 = vsel %vm1657, %v3331, %v3333
      %v3335 = vrot.slane %v3161, 1
      %v3336 = vsel %vm1657, %v3333, %v3335
      %v3337 = vrot.slane %v3162, 1
      %v3338 = vsel %vm1657, %v3335, %v3337
      %v3340 = vsel %vm1847, %v3330, 0
      %v3343 = vsel %vm1847, %v3332, 0
      %v3346 = vsel %vm1847, %v3334, 0
      %v3349 = vsel %vm1847, %v3336, 0
      %v3352 = vsel %vm1847, %v3338, 0
      %v3355 = vsel %vm1847, %v3337, 0
      %v3358 = vsel %vm2145, %v3324, 0
      %3360 = vmatprep.subr.bf16.mxu0 0
      %3361 = vmatpush1.bf16.msra.mxu0 0
      %3362 = vmatprep.subr.bf16.mxu0 0
      %3363 = vmatpush1.bf16.msra.mxu0 0
      %3364 = vmatprep.subr.bf16.mxu0 0
      %3365 = vmatpush1.bf16.msra.mxu0 0
      %3366 = vmatprep.subr.bf16.mxu0 0
      %3367 = vmatpush1.bf16.msra.mxu0 0
      %3368 = vmatprep.subr.bf16.mxu0 0
      %3369 = vmatpush1.bf16.msra.mxu0 0
      %3370 = vmatprep.subr.bf16.mxu0 0
      %3371 = vmatpush1.bf16.msra.mxu0 0
      %3372 = vmatprep.subr.bf16.mxu0 0
      %3373 = vmatpush1.bf16.msra.mxu0 0
      %3374 = vmatprep.subr.bf16.mxu0 0
      %3375 = vmatpush1.bf16.msra.mxu0 %v3358
      %3376 = vmatprep.subr.bf16.mxu0 0
      %3377 = vmatpush2.bf16.msra.mxu0 0
      %3378 = vmatprep.subr.bf16.mxu0 0
      %3379 = vmatpush2.bf16.msra.mxu0 0
      %3380 = vmatprep.subr.bf16.mxu0 0
      %3381 = vmatpush2.bf16.msra.mxu0 0
      %3382 = vmatprep.subr.bf16.mxu0 0
      %3383 = vmatpush2.bf16.msra.mxu0 0
      %3384 = vmatprep.subr.bf16.mxu0 0
      %3385 = vmatpush2.bf16.msra.mxu0 0
      %3386 = vmatprep.subr.bf16.mxu0 0
      %3387 = vmatpush2.bf16.msra.mxu0 0
      %3388 = vmatprep.subr.bf16.mxu0 0
      %3389 = vmatpush2.bf16.msra.mxu0 0
      %3390 = vmatprep.subr.bf16.mxu0 0
      %3391 = vmatpush2.bf16.msra.mxu0 0
      %3392 = vmatprep.mubr.bf16.mxu0 0
      %3393 = vmatmul.mubr.bf16.gmra.mxu0 %v3340
      %v3394 = vpop.f32.mrf.mxu0
      %v3395 = vadd.f32 0.0, %v3394
      %v3396 = vpop.f32.mrf.mxu0
      %v3397 = vpop.f32.mrf.mxu0
      %v3398 = vadd.f32 0.0, %v3397
      %v3399 = vpop.f32.mrf.mxu0
      %3400 = vmatprep.mubr.bf16.mxu0 0
      %3401 = vmatmul.mubr.bf16.gmra.mxu0 %v3343
      %v3402 = vpop.f32.mrf.mxu0
      %v3403 = vadd.f32 0.0, %v3402
      %v3404 = vpop.f32.mrf.mxu0
      %v3405 = vpop.f32.mrf.mxu0
      %v3406 = vadd.f32 0.0, %v3405
      %v3407 = vpop.f32.mrf.mxu0
      %3408 = vmatprep.mubr.bf16.mxu0 0
      %3409 = vmatmul.mubr.bf16.gmra.mxu0 %v3346
      %v3410 = vpop.f32.mrf.mxu0
      %v3411 = vadd.f32 0.0, %v3410
      %v3412 = vpop.f32.mrf.mxu0
      %v3413 = vpop.f32.mrf.mxu0
      %v3414 = vadd.f32 0.0, %v3413
      %v3415 = vpop.f32.mrf.mxu0
      %3416 = vmatprep.mubr.bf16.mxu0 0
      %3417 = vmatmul.mubr.bf16.gmra.mxu0 %v3349
      %v3418 = vpop.f32.mrf.mxu0
      %v3419 = vadd.f32 0.0, %v3418
      %v3420 = vpop.f32.mrf.mxu0
      %v3421 = vpop.f32.mrf.mxu0
      %v3422 = vadd.f32 0.0, %v3421
      %v3423 = vpop.f32.mrf.mxu0
      %3424 = vmatprep.mubr.bf16.mxu0 0
      %3425 = vmatmul.mubr.bf16.gmra.mxu0 %v3352
      %v3426 = vpop.f32.mrf.mxu0
      %v3427 = vadd.f32 0.0, %v3426
      %v3428 = vpop.f32.mrf.mxu0
      %v3429 = vpop.f32.mrf.mxu0
      %v3430 = vadd.f32 0.0, %v3429
      %v3431 = vpop.f32.mrf.mxu0
      %3432 = vmatprep.mubr.bf16.mxu0 0
      %3433 = vmatmul.mubr.bf16.gmra.mxu0 %v3355
      %v3434 = vpop.f32.mrf.mxu0
      %v3435 = vadd.f32 0.0, %v3434
      %v3436 = vpop.f32.mrf.mxu0
      %v3437 = vpop.f32.mrf.mxu0
      %v3438 = vpop.f32.mrf.mxu0
      %3439 = vdwg.mxu0
      %v3440 = vadd.f32 %v3311, %v3395
      %v3441 = vadd.f32 %v3312, %v3398
      %v3442 = vadd.f32 %v3313, %v3403
      %v3443 = vadd.f32 %v3314, %v3406
      %v3444 = vadd.f32 %v3315, %v3411
      %v3445 = vadd.f32 %v3316, %v3414
      %v3446 = vadd.f32 %v3317, %v3419
      %v3447 = vadd.f32 %v3318, %v3422
      %v3448 = vadd.f32 %v3319, %v3427
      %v3449 = vadd.f32 %v3320, %v3430
      %v3450 = vadd.f32 %v3321, %v3435
      %v3451 = vmul.f32 %v3440, %v1784
      %v3452 = vmul.f32 %v3441, %v1789
      %v3453 = vmul.f32 %v3442, %v1794
      %v3454 = vmul.f32 %v3443, %v1799
      %v3455 = vmul.f32 %v3444, %v1804
      %v3456 = vmul.f32 %v3445, %v1809
      %v3457 = vmul.f32 %v3446, %v1814
      %v3458 = vmul.f32 %v3447, %v1819
      %v3459 = vmul.f32 %v3448, %v1824
      %v3460 = vmul.f32 %v3449, %v1829
      %v3461 = vmul.f32 %v3450, %v1834
      %v3462 = vsel %vm1847, %v3451, 0.0
      %v3463 = vsel %vm1847, %v3452, 0.0
      %v3464 = vadd.f32 %v3462, %v3463
      %v3465 = vsel %vm1847, %v3453, 0.0
      %v3466 = vadd.f32 %v3464, %v3465
      %v3467 = vsel %vm1847, %v3454, 0.0
      %v3468 = vadd.f32 %v3466, %v3467
      %v3469 = vsel %vm1847, %v3455, 0.0
      %v3470 = vadd.f32 %v3468, %v3469
      %v3471 = vsel %vm1847, %v3456, 0.0
      %v3472 = vadd.f32 %v3470, %v3471
      %v3473 = vsel %vm1847, %v3457, 0.0
      %v3474 = vadd.f32 %v3472, %v3473
      %v3475 = vsel %vm1847, %v3458, 0.0
      %v3476 = vadd.f32 %v3474, %v3475
      %v3477 = vsel %vm1847, %v3459, 0.0
      %v3478 = vadd.f32 %v3476, %v3477
      %v3479 = vsel %vm1847, %v3460, 0.0
      %v3480 = vadd.f32 %v3478, %v3479
      %v3481 = vsel %vm1847, %v3461, 0.0
      %v3482 = vadd.f32 %v3480, %v3481
      %v3483 = vrot.slane %v3482, 4
      %v3484 = vadd.f32 %v3482, %v3483
      %v3485 = vrot.slane %v3484, 2
      %v3486 = vadd.f32 %v3484, %v3485
      %v3487 = vrot.slane %v3486, 1
      %v3488 = vadd.f32 %v3486, %v3487
      %v3489 = vmul.f32 %v3488, 0.015625
      %v3490 = vsub.f32 %v3440, %v3489
      %v3491 = vsub.f32 %v3441, %v3489
      %v3492 = vsub.f32 %v3442, %v3489
      %v3493 = vsub.f32 %v3443, %v3489
      %v3494 = vsub.f32 %v3444, %v3489
      %v3495 = vsub.f32 %v3445, %v3489
      %v3496 = vsub.f32 %v3446, %v3489
      %v3497 = vsub.f32 %v3447, %v3489
      %v3498 = vsub.f32 %v3448, %v3489
      %v3499 = vsub.f32 %v3449, %v3489
      %v3500 = vsub.f32 %v3450, %v3489
      %v3501 = vmul.f32 %v3490, %v3490
      %v3502 = vmul.f32 %v3491, %v3491
      %v3503 = vmul.f32 %v3492, %v3492
      %v3504 = vmul.f32 %v3493, %v3493
      %v3505 = vmul.f32 %v3494, %v3494
      %v3506 = vmul.f32 %v3495, %v3495
      %v3507 = vmul.f32 %v3496, %v3496
      %v3508 = vmul.f32 %v3497, %v3497
      %v3509 = vmul.f32 %v3498, %v3498
      %v3510 = vmul.f32 %v3499, %v3499
      %v3511 = vmul.f32 %v3500, %v3500
      %v3512 = vmul.f32 %v3501, %v1784
      %v3513 = vmul.f32 %v3502, %v1789
      %v3514 = vmul.f32 %v3503, %v1794
      %v3515 = vmul.f32 %v3504, %v1799
      %v3516 = vmul.f32 %v3505, %v1804
      %v3517 = vmul.f32 %v3506, %v1809
      %v3518 = vmul.f32 %v3507, %v1814
      %v3519 = vmul.f32 %v3508, %v1819
      %v3520 = vmul.f32 %v3509, %v1824
      %v3521 = vmul.f32 %v3510, %v1829
      %v3522 = vmul.f32 %v3511, %v1834
      %v3523 = vsel %vm1847, %v3512, 0.0
      %v3524 = vsel %vm1847, %v3513, 0.0
      %v3525 = vadd.f32 %v3523, %v3524
      %v3526 = vsel %vm1847, %v3514, 0.0
      %v3527 = vadd.f32 %v3525, %v3526
      %v3528 = vsel %vm1847, %v3515, 0.0
      %v3529 = vadd.f32 %v3527, %v3528
      %v3530 = vsel %vm1847, %v3516, 0.0
      %v3531 = vadd.f32 %v3529, %v3530
      %v3532 = vsel %vm1847, %v3517, 0.0
      %v3533 = vadd.f32 %v3531, %v3532
      %v3534 = vsel %vm1847, %v3518, 0.0
      %v3535 = vadd.f32 %v3533, %v3534
      %v3536 = vsel %vm1847, %v3519, 0.0
      %v3537 = vadd.f32 %v3535, %v3536
      %v3538 = vsel %vm1847, %v3520, 0.0
      %v3539 = vadd.f32 %v3537, %v3538
      %v3540 = vsel %vm1847, %v3521, 0.0
      %v3541 = vadd.f32 %v3539, %v3540
      %v3542 = vsel %vm1847, %v3522, 0.0
      %v3543 = vadd.f32 %v3541, %v3542
      %v3544 = vrot.slane %v3543, 4
      %v3545 = vadd.f32 %v3543, %v3544
      %v3546 = vrot.slane %v3545, 2
      %v3547 = vadd.f32 %v3545, %v3546
      %v3548 = vrot.slane %v3547, 1
      %v3549 = vadd.f32 %v3547, %v3548
      %v3550 = vmul.f32 %v3549, 0.015625
      %v3551 = vadd.f32 %v3550, 1e-05
      %v3552 = vrsqrt.pop %v3551
      %v3553 = vmul.f32 %v3490, %v3552
      %v3554 = vmul.f32 %v3491, %v3552
      %v3555 = vmul.f32 %v3492, %v3552
      %v3556 = vmul.f32 %v3493, %v3552
      %v3557 = vmul.f32 %v3494, %v3552
      %v3558 = vmul.f32 %v3495, %v3552
      %v3559 = vmul.f32 %v3496, %v3552
      %v3560 = vmul.f32 %v3497, %v3552
      %v3561 = vmul.f32 %v3498, %v3552
      %v3562 = vmul.f32 %v3499, %v3552
      %v3563 = vmul.f32 %v3500, %v3552
      %v3564 = vmax.f32 %v3553, 0.0
      %v3565 = vmax.f32 %v3554, 0.0
      %v3566 = vmax.f32 %v3555, 0.0
      %v3567 = vmax.f32 %v3556, 0.0
      %v3568 = vmax.f32 %v3557, 0.0
      %v3569 = vmax.f32 %v3558, 0.0
      %v3570 = vmax.f32 %v3559, 0.0
      %v3571 = vmax.f32 %v3560, 0.0
      %v3572 = vmax.f32 %v3561, 0.0
      %v3573 = vmax.f32 %v3562, 0.0
      %v3574 = vmax.f32 %v3563, 0.0
      %v3575 = vmul.f32 %v3564, %v1784
      %v3576 = vmul.f32 %v3565, %v1789
      %v3577 = vmul.f32 %v3566, %v1794
      %v3578 = vmul.f32 %v3567, %v1799
      %v3579 = vmul.f32 %v3568, %v1804
      %v3580 = vmul.f32 %v3569, %v1809
      %v3581 = vmul.f32 %v3570, %v1814
      %v3582 = vmul.f32 %v3571, %v1819
      %v3583 = vmul.f32 %v3572, %v1824
      %v3584 = vmul.f32 %v3573, %v1829
      %v3585 = vmul.f32 %v3574, %v1834
      %3586 = vst.msk [vmem:[%s197] sm:$0xff] %vm1847, %v3575
      %3587 = vst.msk [vmem:[%s197 + $0x8] sm:$0xff] %vm1847, %v3576
      %3588 = vst.msk [vmem:[%s197 + $0x10] sm:$0xff] %vm1847, %v3577
      %3589 = vst.msk [vmem:[%s197 + $0x18] sm:$0xff] %vm1847, %v3578
      %3590 = vst.msk [vmem:[%s197 + $0x20] sm:$0xff] %vm1847, %v3579
      %3591 = vst.msk [vmem:[%s197 + $0x28] sm:$0xff] %vm1847, %v3580
      %3592 = vst.msk [vmem:[%s197 + $0x30] sm:$0xff] %vm1847, %v3581
      %3593 = vst.msk [vmem:[%s197 + $0x38] sm:$0xff] %vm1847, %v3582
      %3594 = vst.msk [vmem:[%s197 + $0x40] sm:$0xff] %vm1847, %v3583
      %3595 = vst.msk [vmem:[%s197 + $0x48] sm:$0xff] %vm1847, %v3584
      %3596 = vst.msk [vmem:[%s197 + $0x50] sm:$0xff] %vm1847, %v3585
      %p3597 = scmp.lt.s32.totalorder %s15, 1
      %s3598 = scalar_select %p3597, %s15, 1
      %s3599 = smul.addr %s3598, 11
      %s3600 = smul.addr %s3599, 8
      %s3601 = scalar_lea.vmem %s4, %s3600
      // Predicated region
      $region37: #{tpu_custom_call.1} parent=35 // pred_check
        %p3602 = pneg %p122
      $region38: #{tpu_custom_call.1} parent=35 // pred_check_branch
        %3604 = sbr.rel (%p3602) target = $region40
      $region39: #{tpu_custom_call.1} parent=35 // pred_region
        _
      $region40: #{tpu_custom_call.1} parent=35 // pred_fallthru
        _
    $region36: #{tpu_custom_call.1} parent=5 // pred_fallthru
      _
    %p3605 = scmp.le.s32.totalorder 2, %s10
    // Predicated region
    $region41: #{tpu_custom_call.1} parent=5 // pred_check
      %p3606 = pneg %p3605
    $region42: #{tpu_custom_call.1} parent=5 // pred_check_branch
      %3608 = sbr.rel (%p3606) target = $region44
    $region43: #{tpu_custom_call.1} parent=5 // pred_region
      %s3609 = ssub.s32 %s10, 2
      // Predicated region
      $region45: #{tpu_custom_call.1} parent=43 // pred_check
        %p3610 = pneg %p128
      $region46: #{tpu_custom_call.1} parent=43 // pred_check_branch
        %3612 = sbr.rel (%p3610) target = $region48
      $region47: #{tpu_custom_call.1} parent=43 // pred_region
        %p3613 = scmp.lt.s32.totalorder %s16, 1
        %s3614 = scalar_select %p3613, %s16, 1
        %s3615 = smul.addr %s3614, 11
        %s3616 = smul.addr %s3615, 8
        %s3617 = scalar_lea.vmem %s4, %s3616
      $region48: #{tpu_custom_call.1} parent=43 // pred_fallthru
        _
    $region44: #{tpu_custom_call.1} parent=5 // pred_fallthru
      _
  $region6: #{tpu_custom_call.1} parent=0 // loop_footer
    %s14 = sadd.s32 1, %s10
  $region7: #{tpu_custom_call.1} parent=0 // loop_footer_branch
    %9 = sbr.rel target = $region3
  $region8: #{tpu_custom_call.1} parent=0 // loop_exit
    _

</llo_original>
